<compile_context>
chip_gen: v7x
topology: tpu7x:2x2x1
jax: 0.10.0
libtpu: 0.0.40
codegen_flags: <defaults>
</compile_context>

<pallas_src>
import functools

import jax
import jax.numpy as jnp
from jax.experimental import pallas as pl
from jax.experimental.pallas import tpu as pltpu

LEAKY_SLOPE = 0.2
BN_EPS = 1e-5
MAX_TILE_M = 256           # review: 128-256 rows per step
VMEM_LIMIT = 32 << 20      # safe on v5e/v6e (128 MiB) and v7x (64 MiB / TC)


# ---------------------------------------------------------------------------
# Pallas kernels
# ---------------------------------------------------------------------------
def _conv_leaky_kernel(p_ref, w_ref, y_ref):
    """y = LeakyReLU(patches @ W) on one (TILE_M, K) row tile (bf16 MXU)."""
    y = jnp.dot(p_ref[...], w_ref[...], preferred_element_type=jnp.float32)
    y_ref[...] = jnp.where(y >= 0.0, y, LEAKY_SLOPE * y).astype(y_ref.dtype)


def _conv_stats_kernel(*refs, pre_bn):
    """Conv-as-matmul + per-tile per-channel sum / sum-of-squares.

    If pre_bn, the *previous* layer's BatchNorm + LeakyReLU is applied to the
    raw patch tile first (scale/shift tiled along K).  The conv's spatial
    zero-padding was pre-encoded in the im2col with the per-channel raw value
    that this affine maps back to 0, so border taps still contribute zero.
    """
    if pre_bn:
        p_ref, w_ref, scale_ref, shift_ref, y_ref, psum_ref, psq_ref = refs
        p = p_ref[...].astype(jnp.float32) * scale_ref[...] + shift_ref[...]
        p = jnp.where(p >= 0.0, p, LEAKY_SLOPE * p).astype(jnp.bfloat16)
    else:
        p_ref, w_ref, y_ref, psum_ref, psq_ref = refs
        p = p_ref[...]
    y = jnp.dot(p, w_ref[...], preferred_element_type=jnp.float32)
    # Per-tile partials (distinct output block per grid step) keep the M axis
    # "parallel" / megacore-safe; the cross-tile reduce happens in JAX.
    psum_ref[...] = jnp.sum(y, axis=0, keepdims=True).reshape(psum_ref.shape)
    psq_ref[...] = jnp.sum(y * y, axis=0, keepdims=True).reshape(psq_ref.shape)
    y_ref[...] = y.astype(y_ref.dtype)          # raw conv output, bf16


# ---------------------------------------------------------------------------
# pallas_call wrappers
# ---------------------------------------------------------------------------
def _conv_leaky(patches, wmat, *, tm):
    m, k = patches.shape
    cout = wmat.shape[1]
    cost = pl.CostEstimate(
        flops=2 * m * k * cout, transcendentals=0,
        bytes_accessed=(m * k + k * cout + m * cout) * 2)
    return pl.pallas_call(
        _conv_leaky_kernel,
        out_shape=jax.ShapeDtypeStruct((m, cout), jnp.bfloat16),
        grid=(m // tm,),
        in_specs=[
            pl.BlockSpec((tm, k), lambda i: (i, 0)),
            pl.BlockSpec((k, cout), lambda i: (0, 0)),   # grid-invariant weight
        ],
        out_specs=pl.BlockSpec((tm, cout), lambda i: (i, 0)),
        compiler_params=pltpu.CompilerParams(
            dimension_semantics=("parallel",), vmem_limit_bytes=VMEM_LIMIT),
        cost_estimate=cost,
    )(patches, wmat)


def _conv_stats(patches, wmat, scale_k=None, shift_k=None, *, tm):
    m, k = patches.shape
    cout = wmat.shape[1]
    steps = m // tm
    pre_bn = scale_k is not None

    in_specs = [pl.BlockSpec((tm, k), lambda i: (i, 0)),
                pl.BlockSpec((k, cout), lambda i: (0, 0))]
    args = [patches, wmat]
    if pre_bn:
        in_specs += [pl.BlockSpec((1, k), lambda i: (0, 0)),
                     pl.BlockSpec((1, k), lambda i: (0, 0))]
        args += [scale_k, shift_k]

    cost = pl.CostEstimate(
        flops=2 * m * k * cout + 3 * m * cout + (4 * m * k if pre_bn else 0),
        transcendentals=0,
        bytes_accessed=(m * k + k * cout + m * cout) * 2 + 8 * steps * cout)

    y, psum, psq = pl.pallas_call(
        functools.partial(_conv_stats_kernel, pre_bn=pre_bn),
        out_shape=(
            jax.ShapeDtypeStruct((m, cout), jnp.bfloat16),     # raw conv out
            jax.ShapeDtypeStruct((steps, 1, cout), jnp.float32),
            jax.ShapeDtypeStruct((steps, 1, cout), jnp.float32),
        ),
        grid=(steps,),
        in_specs=in_specs,
        out_specs=(
            pl.BlockSpec((tm, cout), lambda i: (i, 0)),
            pl.BlockSpec((1, 1, cout), lambda i: (i, 0, 0)),
            pl.BlockSpec((1, 1, cout), lambda i: (i, 0, 0)),
        ),
        compiler_params=pltpu.CompilerParams(
            dimension_semantics=("parallel",), vmem_limit_bytes=VMEM_LIMIT),
        cost_estimate=cost,
    )(*args)
    return y, jnp.sum(psum, axis=(0, 1)), jnp.sum(psq, axis=(0, 1))


# ---------------------------------------------------------------------------
# Plain-JAX glue (layout plumbing, not the hot path)
# ---------------------------------------------------------------------------
def _im2col_nhwc(x, kh, kw, stride, pad, pad_value=None):
    """x (N,H,W,C) -> patches (N*Ho*Wo, kh*kw*C), K ordered (kh, kw, c).

    pad_value (per-channel, optional) is the value conv padding takes in the
    raw (pre-BN) domain so the fused in-kernel affine maps it back to 0.
    """
    n, h, w, c = x.shape
    if pad > 0:
        if pad_value is None:
            xp = jnp.pad(x, ((0, 0), (pad, pad), (pad, pad), (0, 0)))
        else:
            pv = pad_value.astype(x.dtype).reshape(1, 1, 1, c)
            xp = jnp.broadcast_to(pv, (n, h + 2 * pad, w + 2 * pad, c))
            xp = jax.lax.dynamic_update_slice(xp, x, (0, pad, pad, 0))
    else:
        xp = x
    ho = (h + 2 * pad - kh) // stride + 1
    wo = (w + 2 * pad - kw) // stride + 1
    cols = [xp[:, i:i + stride * ho:stride, j:j + stride * wo:stride, :]
            for i in range(kh) for j in range(kw)]
    p = jnp.concatenate(cols, axis=-1)                  # (N, Ho, Wo, kh*kw*C)
    return p.reshape(n * ho * wo, kh * kw * c), ho, wo


def _pack_weight(w, cin_pad):
    """PyTorch (Cout, Cin, kh, kw) -> (kh*kw*Cin_pad, Cout) bf16, K=(kh,kw,c)."""
    cout, cin, kh, kw = w.shape
    wp = jnp.pad(w, ((0, 0), (0, cin_pad - cin), (0, 0), (0, 0)))
    return (wp.transpose(2, 3, 1, 0)
              .reshape(kh * kw * cin_pad, cout).astype(jnp.bfloat16))


def _pick_tile_m(m):
    """Exact divisor of m (no padded rows -> exact BN stats), multiple of 8,
    <= MAX_TILE_M, aiming for >= 4 grid steps when there is enough work while
    keeping >= 16 rows per step (bf16 sublane-friendly tiles)."""
    desired = max(16, min(MAX_TILE_M, m // 4))
    desired -= desired % 8
    for tm in range(desired, 7, -8):
        if m % tm == 0:
            return tm
    return m                       # fallback: single grid step


# ---------------------------------------------------------------------------
# Discriminator: parameter init + forward
# ---------------------------------------------------------------------------
def init_discriminator_params(key, architecture=16):
    """Conv weights ~ N(0, 0.02), BN gamma ~ N(1, 0.02), beta = 0 (DCGAN init)."""
    assert architecture % 8 == 0, "need cout % 8 == 0 so K = 16*cout is lane-aligned"
    a = architecture
    chans = [(3, a), (a, 2 * a), (2 * a, 4 * a), (4 * a, 8 * a), (8 * a, 1)]
    params = []
    for cin, cout in chans:
        key, k_w, k_g = jax.random.split(key, 3)
        w = 0.02 * jax.random.normal(k_w, (cout, cin, 4, 4), jnp.float32)
        gamma = 1.0 + 0.02 * jax.random.normal(k_g, (cout,), jnp.float32)
        beta = jnp.zeros((cout,), jnp.float32)
        params.append((w, gamma, beta))
    return params


@jax.jit
def discriminator_forward(params, x):
    """x: (N, 3, 64, 64) f32 NCHW -> (N, 1, 1, 1) f32 sigmoid scores.

    Matches the PyTorch module in train() mode: bias-free convs,
    BatchNorm2d with batch statistics (biased variance, eps=1e-5),
    LeakyReLU(0.2), final sigmoid.
    """
    n = x.shape[0]

    # Single NCHW -> NHWC transpose; pad image channels 3 -> 8 so K1 = 128.
    cur = jnp.transpose(x, (0, 2, 3, 1))
    cur = jnp.pad(cur, ((0, 0), (0, 0), (0, 0), (0, 8 - cur.shape[-1])))
    cur = cur.astype(jnp.bfloat16)

    # --- layer 1: conv(3->a, 4, s2, p1) + LeakyReLU (no BN) ------------------
    w1 = params[0][0]
    patches, ho, wo = _im2col_nhwc(cur, 4, 4, 2, 1)
    act = _conv_leaky(patches, _pack_weight(w1, 8),
                      tm=_pick_tile_m(patches.shape[0]))
    cur = act.reshape(n, ho, wo, w1.shape[0])            # true channel count

    # --- layers 2-4: conv + BatchNorm + LeakyReLU ----------------------------
    # Each kernel consumes the previous layer's *raw* conv output and applies
    # the deferred BN + LeakyReLU to the patch tile in-kernel.
    pre_scale = pre_shift = pad_value = None
    for li in (1, 2, 3):
        w, gamma, beta = params[li]
        cin = cur.shape[-1]
        patches, ho, wo = _im2col_nhwc(cur, 4, 4, 2, 1, pad_value=pad_value)
        m = patches.shape[0]
        if pre_scale is not None:
            scale_k = jnp.tile(pre_scale, 16).reshape(1, 16 * cin)
            shift_k = jnp.tile(pre_shift, 16).reshape(1, 16 * cin)
        else:
            scale_k = shift_k = None
        y, ssum, ssq = _conv_stats(patches, _pack_weight(w, cin),
                                   scale_k, shift_k, tm=_pick_tile_m(m))
        # BN finalize (per-channel scalars) in plain JAX; the apply is fused
        # into the next consumer (layer li+1's kernel, or the JAX tail).
        mean = ssum / m
        var = jnp.maximum(ssq / m - mean * mean, 0.0)          # biased var
        pre_scale = gamma * jax.lax.rsqrt(var + BN_EPS)
        pre_shift = beta - mean * pre_scale
        pad_value = -pre_shift / pre_scale    # raw value that BN maps to 0
        cur = y.reshape(n, ho, wo, w.shape[0])

    # --- layer 5: conv(8a -> 1, 4, s1, p0) + sigmoid -------------------------
    # One scalar per image: folded into plain JAX per the perf review (a
    # pallas_call here would be pure dispatch overhead).
    w5 = params[4][0]
    a4 = cur.astype(jnp.float32) * pre_scale + pre_shift
    a4 = jnp.where(a4 >= 0.0, a4, LEAKY_SLOPE * a4)
    w5t = jnp.transpose(w5, (2, 3, 1, 0)).astype(jnp.float32)   # (kh,kw,cin,1)
    logits = jnp.einsum('nhwc,hwco->no', a4, w5t)
    return jax.nn.sigmoid(logits).reshape(n, 1, 1, 1)


if __name__ == "__main__":
    key = jax.random.PRNGKey(0)
    key, kx = jax.random.split(key)

    # Small config: architecture=16 (constructor arg; PyTorch default is 64).
    # Input must be (N, 3, 64, 64) so the final 4x4 valid conv reaches 1x1.
    batch = 2
    x = jax.random.normal(kx, (batch, 3, 64, 64), jnp.float32)
    params = init_discriminator_params(key, architecture=16)

    out = jax.block_until_ready(discriminator_forward(params, x))

    assert out.shape == (batch, 1, 1, 1), out.shape
    assert bool(jnp.all(jnp.isfinite(out)))
    assert bool(jnp.all((out >= 0.0) & (out <= 1.0)))
    print("KERNEL_OK")
</pallas_src>

<mosaic_0001>
module attributes {stable_mosaic.version = 11 : i64} {
  func.func @_conv_leaky_kernel(%arg0: i32, %arg1: memref<256x128xbf16, #tpu.memory_space<vmem>>, %arg2: memref<128x16xbf16, #tpu.memory_space<vmem>>, %arg3: memref<256x16xbf16, #tpu.memory_space<vmem>>) attributes {dimension_semantics = [#tpu.dimension_semantics<parallel>], iteration_bounds = array<i64: 8>, scalar_prefetch = 0 : i64, scratch_operands = 0 : i64, tpu.core_type = #tpu.core_type<tc>, window_params = [{transform_indices = @transform_0, window_bounds = array<i64: 256, 128>}, {pipeline_mode = #tpu.pipeline_mode<synchronous>, transform_indices = @transform_1, window_bounds = array<i64: 128, 16>}, {transform_indices = @transform_2, window_bounds = array<i64: 256, 16>}]} {
    %c0 = arith.constant 0 : index
    %c0_0 = arith.constant 0 : index
    %0 = vector.load %arg1[%c0, %c0_0] : memref<256x128xbf16, #tpu.memory_space<vmem>>, vector<256x128xbf16>
    %c0_1 = arith.constant 0 : index
    %c0_2 = arith.constant 0 : index
    %1 = vector.load %arg2[%c0_1, %c0_2] : memref<128x16xbf16, #tpu.memory_space<vmem>>, vector<128x16xbf16>
    %cst = arith.constant dense<0.000000e+00> : vector<256x16xf32>
    %2 = tpu.matmul %0, %1, %cst {dimension_numbers = #tpu.dot_dimension_numbers<[1], [0], [0], [1], [0, 0, 1, 1], [], []>} : vector<256x128xbf16>, vector<128x16xbf16>, vector<256x16xf32> -> vector<256x16xf32>
    %cst_3 = arith.constant 0.000000e+00 : f32
    %3 = vector.broadcast %cst_3 : f32 to vector<256x16xf32>
    %4 = arith.cmpf oge, %2, %3 : vector<256x16xf32>
    %cst_4 = arith.constant 2.000000e-01 : f32
    %5 = vector.broadcast %cst_4 : f32 to vector<256x16xf32>
    %6 = arith.mulf %5, %2 : vector<256x16xf32>
    %7 = arith.select %4, %2, %6 : vector<256x16xi1>, vector<256x16xf32>
    %8 = arith.truncf %7 : vector<256x16xf32> to vector<256x16xbf16>
    %c0_5 = arith.constant 0 : index
    %c0_6 = arith.constant 0 : index
    %9 = vector.load %arg3[%c0_5, %c0_6] : memref<256x16xbf16, #tpu.memory_space<vmem>>, vector<256x16xbf16>
    tpu.vector_store %arg3[%c0_5, %c0_6], %8 {strides = array<i32>} : memref<256x16xbf16, #tpu.memory_space<vmem>>, vector<256x16xbf16>,
    return
  }
  func.func @transform_0(%arg0: i32) -> (i32, i32) {
    %c0_i32 = arith.constant 0 : i32
    %c0_i32_0 = arith.constant 0 : i32
    return %arg0, %c0_i32 : i32, i32
  }
  func.func @transform_1(%arg0: i32) -> (i32, i32) {
    %c0_i32 = arith.constant 0 : i32
    %c0_i32_0 = arith.constant 0 : i32
    %c0_i32_1 = arith.constant 0 : i32
    return %c0_i32, %c0_i32_0 : i32, i32
  }
  func.func @transform_2(%arg0: i32) -> (i32, i32) {
    %c0_i32 = arith.constant 0 : i32
    %c0_i32_0 = arith.constant 0 : i32
    return %arg0, %c0_i32 : i32, i32
  }
}

module attributes {stable_mosaic.version = 11 : i64} {
  func.func @_conv_stats_kernel(%arg0: i32, %arg1: memref<128x256xbf16, #tpu.memory_space<vmem>>, %arg2: memref<256x32xbf16, #tpu.memory_space<vmem>>, %arg3: memref<128x32xbf16, #tpu.memory_space<vmem>>, %arg4: memref<1x1x32xf32, #tpu.memory_space<vmem>>, %arg5: memref<1x1x32xf32, #tpu.memory_space<vmem>>) attributes {dimension_semantics = [#tpu.dimension_semantics<parallel>], iteration_bounds = array<i64: 4>, scalar_prefetch = 0 : i64, scratch_operands = 0 : i64, tpu.core_type = #tpu.core_type<tc>, window_params = [{transform_indices = @transform_0, window_bounds = array<i64: 128, 256>}, {pipeline_mode = #tpu.pipeline_mode<synchronous>, transform_indices = @transform_1, window_bounds = array<i64: 256, 32>}, {transform_indices = @transform_2, window_bounds = array<i64: 128, 32>}, {transform_indices = @transform_3, window_bounds = array<i64: 1, 1, 32>}, {transform_indices = @transform_4, window_bounds = array<i64: 1, 1, 32>}]} {
    %c0 = arith.constant 0 : index
    %c0_0 = arith.constant 0 : index
    %0 = vector.load %arg1[%c0, %c0_0] : memref<128x256xbf16, #tpu.memory_space<vmem>>, vector<128x256xbf16>
    %c0_1 = arith.constant 0 : index
    %c0_2 = arith.constant 0 : index
    %1 = vector.load %arg2[%c0_1, %c0_2] : memref<256x32xbf16, #tpu.memory_space<vmem>>, vector<256x32xbf16>
    %cst = arith.constant dense<0.000000e+00> : vector<128x32xf32>
    %2 = tpu.matmul %0, %1, %cst {dimension_numbers = #tpu.dot_dimension_numbers<[1], [0], [0], [1], [0, 0, 1, 1], [], []>} : vector<128x256xbf16>, vector<256x32xbf16>, vector<128x32xf32> -> vector<128x32xf32>
    %cst_3 = arith.constant dense<0.000000e+00> : vector<32xf32>
    %3 = vector.multi_reduction <add>, %2, %cst_3 [0] : vector<128x32xf32> to vector<32xf32>
    %4 = vector.shape_cast %3 : vector<32xf32> to vector<1x32xf32>
    %5 = vector.shape_cast %4 : vector<1x32xf32> to vector<1x1x32xf32>
    %c0_4 = arith.constant 0 : index
    %c0_5 = arith.constant 0 : index
    %c0_6 = arith.constant 0 : index
    %6 = vector.load %arg4[%c0_4, %c0_5, %c0_6] : memref<1x1x32xf32, #tpu.memory_space<vmem>>, vector<1x1x32xf32>
    tpu.vector_store %arg4[%c0_4, %c0_5, %c0_6], %5 {strides = array<i32>} : memref<1x1x32xf32, #tpu.memory_space<vmem>>, vector<1x1x32xf32>,
    %7 = arith.mulf %2, %2 : vector<128x32xf32>
    %cst_7 = arith.constant dense<0.000000e+00> : vector<32xf32>
    %8 = vector.multi_reduction <add>, %7, %cst_7 [0] : vector<128x32xf32> to vector<32xf32>
    %9 = vector.shape_cast %8 : vector<32xf32> to vector<1x32xf32>
    %10 = vector.shape_cast %9 : vector<1x32xf32> to vector<1x1x32xf32>
    %c0_8 = arith.constant 0 : index
    %c0_9 = arith.constant 0 : index
    %c0_10 = arith.constant 0 : index
    %11 = vector.load %arg5[%c0_8, %c0_9, %c0_10] : memref<1x1x32xf32, #tpu.memory_space<vmem>>, vector<1x1x32xf32>
    tpu.vector_store %arg5[%c0_8, %c0_9, %c0_10], %10 {strides = array<i32>} : memref<1x1x32xf32, #tpu.memory_space<vmem>>, vector<1x1x32xf32>,
    %12 = arith.truncf %2 : vector<128x32xf32> to vector<128x32xbf16>
    %c0_11 = arith.constant 0 : index
    %c0_12 = arith.constant 0 : index
    %13 = vector.load %arg3[%c0_11, %c0_12] : memref<128x32xbf16, #tpu.memory_space<vmem>>, vector<128x32xbf16>
    tpu.vector_store %arg3[%c0_11, %c0_12], %12 {strides = array<i32>} : memref<128x32xbf16, #tpu.memory_space<vmem>>, vector<128x32xbf16>,
    return
  }
  func.func @transform_0(%arg0: i32) -> (i32, i32) {
    %c0_i32 = arith.constant 0 : i32
    %c0_i32_0 = arith.constant 0 : i32
    return %arg0, %c0_i32 : i32, i32
  }
  func.func @transform_1(%arg0: i32) -> (i32, i32) {
    %c0_i32 = arith.constant 0 : i32
    %c0_i32_0 = arith.constant 0 : i32
    %c0_i32_1 = arith.constant 0 : i32
    return %c0_i32, %c0_i32_0 : i32, i32
  }
  func.func @transform_2(%arg0: i32) -> (i32, i32) {
    %c0_i32 = arith.constant 0 : i32
    %c0_i32_0 = arith.constant 0 : i32
    return %arg0, %c0_i32 : i32, i32
  }
  func.func @transform_3(%arg0: i32) -> (i32, i32, i32) {
    %c0_i32 = arith.constant 0 : i32
    %c0_i32_0 = arith.constant 0 : i32
    %c0_i32_1 = arith.constant 0 : i32
    return %arg0, %c0_i32, %c0_i32_0 : i32, i32, i32
  }
  func.func @transform_4(%arg0: i32) -> (i32, i32, i32) {
    %c0_i32 = arith.constant 0 : i32
    %c0_i32_0 = arith.constant 0 : i32
    %c0_i32_1 = arith.constant 0 : i32
    return %arg0, %c0_i32, %c0_i32_0 : i32, i32, i32
  }
}

module attributes {stable_mosaic.version = 11 : i64} {
  func.func @_conv_stats_kernel(%arg0: i32, %arg1: memref<32x512xbf16, #tpu.memory_space<vmem>>, %arg2: memref<512x64xbf16, #tpu.memory_space<vmem>>, %arg3: memref<1x512xf32, #tpu.memory_space<vmem>>, %arg4: memref<1x512xf32, #tpu.memory_space<vmem>>, %arg5: memref<32x64xbf16, #tpu.memory_space<vmem>>, %arg6: memref<1x1x64xf32, #tpu.memory_space<vmem>>, %arg7: memref<1x1x64xf32, #tpu.memory_space<vmem>>) attributes {dimension_semantics = [#tpu.dimension_semantics<parallel>], iteration_bounds = array<i64: 4>, scalar_prefetch = 0 : i64, scratch_operands = 0 : i64, tpu.core_type = #tpu.core_type<tc>, window_params = [{transform_indices = @transform_0, window_bounds = array<i64: 32, 512>}, {pipeline_mode = #tpu.pipeline_mode<synchronous>, transform_indices = @transform_1, window_bounds = array<i64: 512, 64>}, {pipeline_mode = #tpu.pipeline_mode<synchronous>, transform_indices = @transform_2, window_bounds = array<i64: 1, 512>}, {pipeline_mode = #tpu.pipeline_mode<synchronous>, transform_indices = @transform_3, window_bounds = array<i64: 1, 512>}, {transform_indices = @transform_4, window_bounds = array<i64: 32, 64>}, {transform_indices = @transform_5, window_bounds = array<i64: 1, 1, 64>}, {transform_indices = @transform_6, window_bounds = array<i64: 1, 1, 64>}]} {
    %c0 = arith.constant 0 : index
    %c0_0 = arith.constant 0 : index
    %0 = vector.load %arg1[%c0, %c0_0] : memref<32x512xbf16, #tpu.memory_space<vmem>>, vector<32x512xbf16>
    %1 = arith.extf %0 : vector<32x512xbf16> to vector<32x512xf32>
    %c0_1 = arith.constant 0 : index
    %c0_2 = arith.constant 0 : index
    %2 = vector.load %arg3[%c0_1, %c0_2] : memref<1x512xf32, #tpu.memory_space<vmem>>, vector<1x512xf32>
    %3 = vector.broadcast %2 : vector<1x512xf32> to vector<32x512xf32>
    %4 = arith.mulf %1, %3 : vector<32x512xf32>
    %c0_3 = arith.constant 0 : index
    %c0_4 = arith.constant 0 : index
    %5 = vector.load %arg4[%c0_3, %c0_4] : memref<1x512xf32, #tpu.memory_space<vmem>>, vector<1x512xf32>
    %6 = vector.broadcast %5 : vector<1x512xf32> to vector<32x512xf32>
    %7 = arith.addf %4, %6 : vector<32x512xf32>
    %cst = arith.constant 0.000000e+00 : f32
    %8 = vector.broadcast %cst : f32 to vector<32x512xf32>
    %9 = arith.cmpf oge, %7, %8 : vector<32x512xf32>
    %cst_5 = arith.constant 2.000000e-01 : f32
    %10 = vector.broadcast %cst_5 : f32 to vector<32x512xf32>
    %11 = arith.mulf %10, %7 : vector<32x512xf32>
    %12 = arith.select %9, %7, %11 : vector<32x512xi1>, vector<32x512xf32>
    %13 = arith.truncf %12 : vector<32x512xf32> to vector<32x512xbf16>
    %c0_6 = arith.constant 0 : index
    %c0_7 = arith.constant 0 : index
    %14 = vector.load %arg2[%c0_6, %c0_7] : memref<512x64xbf16, #tpu.memory_space<vmem>>, vector<512x64xbf16>
    %cst_8 = arith.constant dense<0.000000e+00> : vector<32x64xf32>
    %15 = tpu.matmul %13, %14, %cst_8 {dimension_numbers = #tpu.dot_dimension_numbers<[1], [0], [0], [1], [0, 0, 1, 1], [], []>} : vector<32x512xbf16>, vector<512x64xbf16>, vector<32x64xf32> -> vector<32x64xf32>
    %cst_9 = arith.constant dense<0.000000e+00> : vector<64xf32>
    %16 = vector.multi_reduction <add>, %15, %cst_9 [0] : vector<32x64xf32> to vector<64xf32>
    %17 = vector.shape_cast %16 : vector<64xf32> to vector<1x64xf32>
    %18 = vector.shape_cast %17 : vector<1x64xf32> to vector<1x1x64xf32>
    %c0_10 = arith.constant 0 : index
    %c0_11 = arith.constant 0 : index
    %c0_12 = arith.constant 0 : index
    %19 = vector.load %arg6[%c0_10, %c0_11, %c0_12] : memref<1x1x64xf32, #tpu.memory_space<vmem>>, vector<1x1x64xf32>
    tpu.vector_store %arg6[%c0_10, %c0_11, %c0_12], %18 {strides = array<i32>} : memref<1x1x64xf32, #tpu.memory_space<vmem>>, vector<1x1x64xf32>,
    %20 = arith.mulf %15, %15 : vector<32x64xf32>
    %cst_13 = arith.constant dense<0.000000e+00> : vector<64xf32>
    %21 = vector.multi_reduction <add>, %20, %cst_13 [0] : vector<32x64xf32> to vector<64xf32>
    %22 = vector.shape_cast %21 : vector<64xf32> to vector<1x64xf32>
    %23 = vector.shape_cast %22 : vector<1x64xf32> to vector<1x1x64xf32>
    %c0_14 = arith.constant 0 : index
    %c0_15 = arith.constant 0 : index
    %c0_16 = arith.constant 0 : index
    %24 = vector.load %arg7[%c0_14, %c0_15, %c0_16] : memref<1x1x64xf32, #tpu.memory_space<vmem>>, vector<1x1x64xf32>
    tpu.vector_store %arg7[%c0_14, %c0_15, %c0_16], %23 {strides = array<i32>} : memref<1x1x64xf32, #tpu.memory_space<vmem>>, vector<1x1x64xf32>,
    %25 = arith.truncf %15 : vector<32x64xf32> to vector<32x64xbf16>
    %c0_17 = arith.constant 0 : index
    %c0_18 = arith.constant 0 : index
    %26 = vector.load %arg5[%c0_17, %c0_18] : memref<32x64xbf16, #tpu.memory_space<vmem>>, vector<32x64xbf16>
    tpu.vector_store %arg5[%c0_17, %c0_18], %25 {strides = array<i32>} : memref<32x64xbf16, #tpu.memory_space<vmem>>, vector<32x64xbf16>,
    return
  }
  func.func @transform_0(%arg0: i32) -> (i32, i32) {
    %c0_i32 = arith.constant 0 : i32
    %c0_i32_0 = arith.constant 0 : i32
    return %arg0, %c0_i32 : i32, i32
  }
  func.func @transform_1(%arg0: i32) -> (i32, i32) {
    %c0_i32 = arith.constant 0 : i32
    %c0_i32_0 = arith.constant 0 : i32
    %c0_i32_1 = arith.constant 0 : i32
    return %c0_i32, %c0_i32_0 : i32, i32
  }
  func.func @transform_2(%arg0: i32) -> (i32, i32) {
    %c0_i32 = arith.constant 0 : i32
    %c0_i32_0 = arith.constant 0 : i32
    %c0_i32_1 = arith.constant 0 : i32
    return %c0_i32, %c0_i32_0 : i32, i32
  }
  func.func @transform_3(%arg0: i32) -> (i32, i32) {
    %c0_i32 = arith.constant 0 : i32
    %c0_i32_0 = arith.constant 0 : i32
    %c0_i32_1 = arith.constant 0 : i32
    return %c0_i32, %c0_i32_0 : i32, i32
  }
  func.func @transform_4(%arg0: i32) -> (i32, i32) {
    %c0_i32 = arith.constant 0 : i32
    %c0_i32_0 = arith.constant 0 : i32
    return %arg0, %c0_i32 : i32, i32
  }
  func.func @transform_5(%arg0: i32) -> (i32, i32, i32) {
    %c0_i32 = arith.constant 0 : i32
    %c0_i32_0 = arith.constant 0 : i32
    %c0_i32_1 = arith.constant 0 : i32
    return %arg0, %c0_i32, %c0_i32_0 : i32, i32, i32
  }
  func.func @transform_6(%arg0: i32) -> (i32, i32, i32) {
    %c0_i32 = arith.constant 0 : i32
    %c0_i32_0 = arith.constant 0 : i32
    %c0_i32_1 = arith.constant 0 : i32
    return %arg0, %c0_i32, %c0_i32_0 : i32, i32, i32
  }
}

module attributes {stable_mosaic.version = 11 : i64} {
  func.func @_conv_stats_kernel(%arg0: i32, %arg1: memref<16x1024xbf16, #tpu.memory_space<vmem>>, %arg2: memref<1024x128xbf16, #tpu.memory_space<vmem>>, %arg3: memref<1x1024xf32, #tpu.memory_space<vmem>>, %arg4: memref<1x1024xf32, #tpu.memory_space<vmem>>, %arg5: memref<16x128xbf16, #tpu.memory_space<vmem>>, %arg6: memref<1x1x128xf32, #tpu.memory_space<vmem>>, %arg7: memref<1x1x128xf32, #tpu.memory_space<vmem>>) attributes {dimension_semantics = [#tpu.dimension_semantics<parallel>], iteration_bounds = array<i64: 2>, scalar_prefetch = 0 : i64, scratch_operands = 0 : i64, tpu.core_type = #tpu.core_type<tc>, window_params = [{transform_indices = @transform_0, window_bounds = array<i64: 16, 1024>}, {pipeline_mode = #tpu.pipeline_mode<synchronous>, transform_indices = @transform_1, window_bounds = array<i64: 1024, 128>}, {pipeline_mode = #tpu.pipeline_mode<synchronous>, transform_indices = @transform_2, window_bounds = array<i64: 1, 1024>}, {pipeline_mode = #tpu.pipeline_mode<synchronous>, transform_indices = @transform_3, window_bounds = array<i64: 1, 1024>}, {transform_indices = @transform_4, window_bounds = array<i64: 16, 128>}, {transform_indices = @transform_5, window_bounds = array<i64: 1, 1, 128>}, {transform_indices = @transform_6, window_bounds = array<i64: 1, 1, 128>}]} {
    %c0 = arith.constant 0 : index
    %c0_0 = arith.constant 0 : index
    %0 = vector.load %arg1[%c0, %c0_0] : memref<16x1024xbf16, #tpu.memory_space<vmem>>, vector<16x1024xbf16>
    %1 = arith.extf %0 : vector<16x1024xbf16> to vector<16x1024xf32>
    %c0_1 = arith.constant 0 : index
    %c0_2 = arith.constant 0 : index
    %2 = vector.load %arg3[%c0_1, %c0_2] : memref<1x1024xf32, #tpu.memory_space<vmem>>, vector<1x1024xf32>
    %3 = vector.broadcast %2 : vector<1x1024xf32> to vector<16x1024xf32>
    %4 = arith.mulf %1, %3 : vector<16x1024xf32>
    %c0_3 = arith.constant 0 : index
    %c0_4 = arith.constant 0 : index
    %5 = vector.load %arg4[%c0_3, %c0_4] : memref<1x1024xf32, #tpu.memory_space<vmem>>, vector<1x1024xf32>
    %6 = vector.broadcast %5 : vector<1x1024xf32> to vector<16x1024xf32>
    %7 = arith.addf %4, %6 : vector<16x1024xf32>
    %cst = arith.constant 0.000000e+00 : f32
    %8 = vector.broadcast %cst : f32 to vector<16x1024xf32>
    %9 = arith.cmpf oge, %7, %8 : vector<16x1024xf32>
    %cst_5 = arith.constant 2.000000e-01 : f32
    %10 = vector.broadcast %cst_5 : f32 to vector<16x1024xf32>
    %11 = arith.mulf %10, %7 : vector<16x1024xf32>
    %12 = arith.select %9, %7, %11 : vector<16x1024xi1>, vector<16x1024xf32>
    %13 = arith.truncf %12 : vector<16x1024xf32> to vector<16x1024xbf16>
    %c0_6 = arith.constant 0 : index
    %c0_7 = arith.constant 0 : index
    %14 = vector.load %arg2[%c0_6, %c0_7] : memref<1024x128xbf16, #tpu.memory_space<vmem>>, vector<1024x128xbf16>
    %cst_8 = arith.constant dense<0.000000e+00> : vector<16x128xf32>
    %15 = tpu.matmul %13, %14, %cst_8 {dimension_numbers = #tpu.dot_dimension_numbers<[1], [0], [0], [1], [0, 0, 1, 1], [], []>} : vector<16x1024xbf16>, vector<1024x128xbf16>, vector<16x128xf32> -> vector<16x128xf32>
    %cst_9 = arith.constant dense<0.000000e+00> : vector<128xf32>
    %16 = vector.multi_reduction <add>, %15, %cst_9 [0] : vector<16x128xf32> to vector<128xf32>
    %17 = vector.shape_cast %16 : vector<128xf32> to vector<1x128xf32>
    %18 = vector.shape_cast %17 : vector<1x128xf32> to vector<1x1x128xf32>
    %c0_10 = arith.constant 0 : index
    %c0_11 = arith.constant 0 : index
    %c0_12 = arith.constant 0 : index
    %19 = vector.load %arg6[%c0_10, %c0_11, %c0_12] : memref<1x1x128xf32, #tpu.memory_space<vmem>>, vector<1x1x128xf32>
    tpu.vector_store %arg6[%c0_10, %c0_11, %c0_12], %18 {strides = array<i32>} : memref<1x1x128xf32, #tpu.memory_space<vmem>>, vector<1x1x128xf32>,
    %20 = arith.mulf %15, %15 : vector<16x128xf32>
    %cst_13 = arith.constant dense<0.000000e+00> : vector<128xf32>
    %21 = vector.multi_reduction <add>, %20, %cst_13 [0] : vector<16x128xf32> to vector<128xf32>
    %22 = vector.shape_cast %21 : vector<128xf32> to vector<1x128xf32>
    %23 = vector.shape_cast %22 : vector<1x128xf32> to vector<1x1x128xf32>
    %c0_14 = arith.constant 0 : index
    %c0_15 = arith.constant 0 : index
    %c0_16 = arith.constant 0 : index
    %24 = vector.load %arg7[%c0_14, %c0_15, %c0_16] : memref<1x1x128xf32, #tpu.memory_space<vmem>>, vector<1x1x128xf32>
    tpu.vector_store %arg7[%c0_14, %c0_15, %c0_16], %23 {strides = array<i32>} : memref<1x1x128xf32, #tpu.memory_space<vmem>>, vector<1x1x128xf32>,
    %25 = arith.truncf %15 : vector<16x128xf32> to vector<16x128xbf16>
    %c0_17 = arith.constant 0 : index
    %c0_18 = arith.constant 0 : index
    %26 = vector.load %arg5[%c0_17, %c0_18] : memref<16x128xbf16, #tpu.memory_space<vmem>>, vector<16x128xbf16>
    tpu.vector_store %arg5[%c0_17, %c0_18], %25 {strides = array<i32>} : memref<16x128xbf16, #tpu.memory_space<vmem>>, vector<16x128xbf16>,
    return
  }
  func.func @transform_0(%arg0: i32) -> (i32, i32) {
    %c0_i32 = arith.constant 0 : i32
    %c0_i32_0 = arith.constant 0 : i32
    return %arg0, %c0_i32 : i32, i32
  }
  func.func @transform_1(%arg0: i32) -> (i32, i32) {
    %c0_i32 = arith.constant 0 : i32
    %c0_i32_0 = arith.constant 0 : i32
    %c0_i32_1 = arith.constant 0 : i32
    return %c0_i32, %c0_i32_0 : i32, i32
  }
  func.func @transform_2(%arg0: i32) -> (i32, i32) {
    %c0_i32 = arith.constant 0 : i32
    %c0_i32_0 = arith.constant 0 : i32
    %c0_i32_1 = arith.constant 0 : i32
    return %c0_i32, %c0_i32_0 : i32, i32
  }
  func.func @transform_3(%arg0: i32) -> (i32, i32) {
    %c0_i32 = arith.constant 0 : i32
    %c0_i32_0 = arith.constant 0 : i32
    %c0_i32_1 = arith.constant 0 : i32
    return %c0_i32, %c0_i32_0 : i32, i32
  }
  func.func @transform_4(%arg0: i32) -> (i32, i32) {
    %c0_i32 = arith.constant 0 : i32
    %c0_i32_0 = arith.constant 0 : i32
    return %arg0, %c0_i32 : i32, i32
  }
  func.func @transform_5(%arg0: i32) -> (i32, i32, i32) {
    %c0_i32 = arith.constant 0 : i32
    %c0_i32_0 = arith.constant 0 : i32
    %c0_i32_1 = arith.constant 0 : i32
    return %arg0, %c0_i32, %c0_i32_0 : i32, i32, i32
  }
  func.func @transform_6(%arg0: i32) -> (i32, i32, i32) {
    %c0_i32 = arith.constant 0 : i32
    %c0_i32_0 = arith.constant 0 : i32
    %c0_i32_1 = arith.constant 0 : i32
    return %arg0, %c0_i32, %c0_i32_0 : i32, i32, i32
  }
}

</mosaic_0001>

<llo_original>
// kernel: discriminator_forward.4
$region0: #{discriminator_forward.4}
  #allocation0 [shape = 'u32[]', space=smem, size = 0x4, offset = 0x4, fixed_abs, tag = 'smem constant byte address 0x4 - core index']
  #allocation1 [shape = 'u32[144,128]{1,0:T(1,128)}', space=vmem, size = 0x12000, scoped, tag = 'internal scratch']
  %s0 = inlined_call_operand.vmem [shape: bf16[2048,128], index: 0, kind: input, shape index: {}]
  %s1 = inlined_call_operand.vmem [shape: bf16[128,16], index: 1, kind: input, shape index: {}]
  %s2 = inlined_call_operand.vmem [shape: bf16[2048,16], index: 2, kind: output, shape index: {}]
  %s3 = sld [smem:[#allocation0]]
  $region41: #{discriminator_forward.4} parent=0
    _
  %s5 = ssub.s32 1, %s3
  %s6 = scalar_select 0, %s5, %s3
  loop: start=0, step=1, limit=10
  $region2: #{discriminator_forward.4} parent=0 // loop_pre_header
    _
  $region3: #{discriminator_forward.4} parent=0 // loop_header
    %s8 = sphi 0, %s12
    %p9 = scmp.ge.s32.totalorder %s8, 10
    %s18 = sphi 0, %s20
    %s21 = sphi 0, %s18
    %s22 = sphi 0, %s21
    %s38 = sphi 0, %s22
    %s42 = sphi 0, %s42
    %s44 = sphi 0, %s42
    %s45 = sphi 0, %s44
    %s59 = sphi 0, %s45
    %s65 = sphi 0, %s67
    %s68 = sphi 0, %s65
    %s69 = sphi 0, %s68
    %s85 = sphi 0, %s69
  $region4: #{discriminator_forward.4} parent=0 // loop_header_branch
    %11 = sbr.rel (%p9) target = $region8
  $region5: #{discriminator_forward.4} parent=0 // loop_body
    %s13 = ssub.s32 %s8, 1
    %s14 = ssub.s32 %s8, 2
    %s15 = sadd.s32 %s8, 1
    %s16 = ssub.s32 %s8, %s15
    %p17 = scmp.eq.s32.totalorder %s16, 0
    %s19 = sadd.s32 %s18, 1
    %s20 = scalar_select %p17, %s18, %s19
    %p23 = pneg %p17
    %p24 = scmp.eq.s32.totalorder %s8, 7
    %p25 = por %p23, %p24
    %p26 = scmp.ne.s32.totalorder %s18, %s21
    %p27 = scmp.eq.s32.totalorder %s8, 0
    %p28 = por %p26, %p27
    %p29 = scmp.ne.s32.totalorder %s18, %s21
    %p30 = scmp.eq.s32.totalorder %s13, 7
    %p31 = por %p29, %p30
    %p32 = scmp.ne.s32.totalorder %s21, %s22
    %p33 = scmp.eq.s32.totalorder %s13, 0
    %p34 = por %p32, %p33
    %p35 = scmp.ne.s32.totalorder %s21, %s22
    %p36 = scmp.eq.s32.totalorder %s14, 7
    %p37 = por %p35, %p36
    %p39 = scmp.ne.s32.totalorder %s22, %s38
    %p40 = scmp.eq.s32.totalorder %s14, 0
    %p41 = por %p39, %p40
    %s43 = sadd.s32 %s42, 1
    %p46 = scmp.eq.s32.totalorder %s8, 7
    %p47 = scmp.ne.s32.totalorder %s42, %s44
    %p48 = scmp.eq.s32.totalorder %s8, 0
    %p49 = por %p47, %p48
    %p50 = scmp.ne.s32.totalorder %s42, %s44
    %p51 = scmp.eq.s32.totalorder %s13, 7
    %p52 = por %p50, %p51
    %p53 = scmp.ne.s32.totalorder %s44, %s45
    %p54 = scmp.eq.s32.totalorder %s13, 0
    %p55 = por %p53, %p54
    %p56 = scmp.ne.s32.totalorder %s44, %s45
    %p57 = scmp.eq.s32.totalorder %s14, 7
    %p58 = por %p56, %p57
    %p60 = scmp.ne.s32.totalorder %s45, %s59
    %p61 = scmp.eq.s32.totalorder %s14, 0
    %p62 = por %p60, %p61
    %s63 = ssub.s32 %s8, %s15
    %p64 = scmp.eq.s32.totalorder %s63, 0
    %s66 = sadd.s32 %s65, 1
    %s67 = scalar_select %p64, %s65, %s66
    %p70 = pneg %p64
    %p71 = scmp.eq.s32.totalorder %s8, 7
    %p72 = por %p70, %p71
    %p73 = scmp.ne.s32.totalorder %s65, %s68
    %p74 = scmp.eq.s32.totalorder %s8, 0
    %p75 = por %p73, %p74
    %p76 = scmp.ne.s32.totalorder %s65, %s68
    %p77 = scmp.eq.s32.totalorder %s13, 7
    %p78 = por %p76, %p77
    %p79 = scmp.ne.s32.totalorder %s68, %s69
    %p80 = scmp.eq.s32.totalorder %s13, 0
    %p81 = por %p79, %p80
    %p82 = scmp.ne.s32.totalorder %s68, %s69
    %p83 = scmp.eq.s32.totalorder %s14, 7
    %p84 = por %p82, %p83
    %p86 = scmp.ne.s32.totalorder %s69, %s85
    %p87 = scmp.eq.s32.totalorder %s14, 0
    %p88 = por %p86, %p87
    %p89 = scmp.le.s32.totalorder 1, %s8
    %p90 = scmp.lt.s32.totalorder %s8, 9
    %p91 = pnand %p89, %p90
    %p92 = pneg %p91
    // Predicated region
    $region9: #{discriminator_forward.4} parent=5 // pred_check
      _
    $region10: #{discriminator_forward.4} parent=5 // pred_check_branch
      %94 = sbr.rel (%p91) target = $region12
    $region11: #{discriminator_forward.4} parent=5 // pred_region
      %s95 = ssub.s32 %s8, 1
      // Predicated region
      $region13: #{discriminator_forward.4} parent=11 // pred_check
        %p96 = pneg %p55
      $region14: #{discriminator_forward.4} parent=11 // pred_check_branch
        %98 = sbr.rel (%p96) target = $region16
      $region15: #{discriminator_forward.4} parent=11 // pred_region
        _
      $region16: #{discriminator_forward.4} parent=11 // pred_fallthru
        _
    $region12: #{discriminator_forward.4} parent=5 // pred_fallthru
      _
    %p99 = scmp.lt.s32.totalorder %s8, 8
    // Predicated region
    $region17: #{discriminator_forward.4} parent=5 // pred_check
      %p100 = pneg %p99
    $region18: #{discriminator_forward.4} parent=5 // pred_check_branch
      %102 = sbr.rel (%p100) target = $region20
    $region19: #{discriminator_forward.4} parent=5 // pred_region
      // Predicated region
      $region21: #{discriminator_forward.4} parent=19 // pred_check
        %p103 = pneg %p28
      $region22: #{discriminator_forward.4} parent=19 // pred_check_branch
        %105 = sbr.rel (%p103) target = $region24
      $region23: #{discriminator_forward.4} parent=19 // pred_region
        %s106 = smul.u32 32, %s8
        %p107 = scmp.lt.s32.totalorder %s106, 255
        %s108 = scalar_select %p107, %s106, 255
        %s109 = smul.addr %s108, 4
        %s110 = scalar_lea.vmem %s0, %s109
        %s111 = smul.u32 32, %s8
      $region24: #{discriminator_forward.4} parent=19 // pred_fallthru
        _
    $region20: #{discriminator_forward.4} parent=5 // pred_fallthru
      _
    %p112 = scmp.le.s32.totalorder 1, %s8
    %p113 = scmp.lt.s32.totalorder %s8, 9
    %p114 = pnand %p112, %p113
    %p115 = pneg %p114
    // Predicated region
    $region25: #{discriminator_forward.4} parent=5 // pred_check
      _
    $region26: #{discriminator_forward.4} parent=5 // pred_check_branch
      %117 = sbr.rel (%p114) target = $region28
    $region27: #{discriminator_forward.4} parent=5 // pred_region
      %s118 = ssub.s32 %s8, 1
      %s119 = smul.u32 32, %s13
      %p120 = scmp.lt.s32.totalorder %s119, 255
      %s121 = scalar_select %p120, %s119, 255
      %s122 = smul.addr %s121, 4
      %s123 = scalar_lea.vmem %s0, %s122
      %p124 = pneg %p34
      %p125 = pneg %p31
      %p126 = pneg %p55
      %p127 = pneg %p52
      %p128 = pneg %p81
      %p129 = pneg %p78
      %s130 = smul.u32 32, %s13
      %p131 = scmp.lt.s32.totalorder %s130, 255
      %s132 = scalar_select %p131, %s130, 255
      %s133 = smul.addr %s132, 4
      %s134 = scalar_lea.vmem %s2, %s133
      %s135 = smul.u32 32, %s13
      %p136 = scmp.lt.s32.totalorder %s135, 255
      %s137 = scalar_select %p136, %s135, 255
      %s138 = smul.addr %s137, 4
      %s139 = scalar_lea.vmem %s0, %s138
      %s140 = smul.u32 32, %s13
      %s141 = smul.u32 32, %s13
      %p142 = scmp.lt.s32.totalorder %s141, 255
      %s143 = scalar_select %p142, %s141, 255
      %s144 = smul.addr %s143, 4
      %s145 = scalar_lea.vmem %s2, %s144
      %s146 = smul.u32 32, %s13
      %v148 = vld [vmem:[%s139] sm:$0xf]
      %v149 = vld [vmem:[%s139 + $0x4] sm:$0xf]
      %v150 = vld [vmem:[%s139 + $0x8] sm:$0xf]
      %v151 = vld [vmem:[%s139 + $0xc] sm:$0xf]
      %v152 = vld [vmem:[%s139 + $0x10] sm:$0xf]
      %v153 = vld [vmem:[%s139 + $0x14] sm:$0xf]
      %v154 = vld [vmem:[%s139 + $0x18] sm:$0xf]
      %v155 = vld [vmem:[%s139 + $0x1c] sm:$0xf]
      %v156 = vld [vmem:[%s139 + $0x20] sm:$0xf]
      %v157 = vld [vmem:[%s139 + $0x24] sm:$0xf]
      %v158 = vld [vmem:[%s139 + $0x28] sm:$0xf]
      %v159 = vld [vmem:[%s139 + $0x2c] sm:$0xf]
      %v160 = vld [vmem:[%s139 + $0x30] sm:$0xf]
      %v161 = vld [vmem:[%s139 + $0x34] sm:$0xf]
      %v162 = vld [vmem:[%s139 + $0x38] sm:$0xf]
      %v163 = vld [vmem:[%s139 + $0x3c] sm:$0xf]
      %v164 = vld [vmem:[%s139 + $0x40] sm:$0xf]
      %v165 = vld [vmem:[%s139 + $0x44] sm:$0xf]
      %v166 = vld [vmem:[%s139 + $0x48] sm:$0xf]
      %v167 = vld [vmem:[%s139 + $0x4c] sm:$0xf]
      %v168 = vld [vmem:[%s139 + $0x50] sm:$0xf]
      %v169 = vld [vmem:[%s139 + $0x54] sm:$0xf]
      %v170 = vld [vmem:[%s139 + $0x58] sm:$0xf]
      %v171 = vld [vmem:[%s139 + $0x5c] sm:$0xf]
      %v172 = vld [vmem:[%s139 + $0x60] sm:$0xf]
      %v173 = vld [vmem:[%s139 + $0x64] sm:$0xf]
      %v174 = vld [vmem:[%s139 + $0x68] sm:$0xf]
      %v175 = vld [vmem:[%s139 + $0x6c] sm:$0xf]
      %v176 = vld [vmem:[%s139 + $0x70] sm:$0xf]
      %v177 = vld [vmem:[%s139 + $0x74] sm:$0xf]
      %v178 = vld [vmem:[%s139 + $0x78] sm:$0xf]
      %v179 = vld [vmem:[%s139 + $0x7c] sm:$0xf]
      %v180 = vld [vmem:[%s1] sm:$0xf]
      %v181 = vld [vmem:[%s1 + $0x4] sm:$0xf]
      %v182 = vld [vmem:[%s1 + $0x8] sm:$0xf]
      %v183 = vld [vmem:[%s1 + $0xc] sm:$0xf]
      %v184 = vld [vmem:[%s1 + $0x10] sm:$0xf]
      %v185 = vld [vmem:[%s1 + $0x14] sm:$0xf]
      %v186 = vld [vmem:[%s1 + $0x18] sm:$0xf]
      %v187 = vld [vmem:[%s1 + $0x1c] sm:$0xf]
      %v188 = vld [vmem:[%s1 + $0x20] sm:$0xf]
      %v189 = vld [vmem:[%s1 + $0x24] sm:$0xf]
      %v190 = vld [vmem:[%s1 + $0x28] sm:$0xf]
      %v191 = vld [vmem:[%s1 + $0x2c] sm:$0xf]
      %v192 = vld [vmem:[%s1 + $0x30] sm:$0xf]
      %v193 = vld [vmem:[%s1 + $0x34] sm:$0xf]
      %v194 = vld [vmem:[%s1 + $0x38] sm:$0xf]
      %v195 = vld [vmem:[%s1 + $0x3c] sm:$0xf]
      %v228 = vunpack.c.l.b16 %v148
      %v229 = vunpack.c.l.b16 %v149
      %v230 = vunpack.c.l.b16 %v150
      %v231 = vunpack.c.l.b16 %v151
      %v232 = vunpack.c.l.b16 %v152
      %v233 = vunpack.c.l.b16 %v153
      %v234 = vunpack.c.l.b16 %v154
      %v235 = vunpack.c.l.b16 %v155
      %v236 = vunpack.c.l.b16 %v156
      %v237 = vunpack.c.l.b16 %v157
      %v238 = vunpack.c.l.b16 %v158
      %v239 = vunpack.c.l.b16 %v159
      %v240 = vunpack.c.l.b16 %v160
      %v241 = vunpack.c.l.b16 %v161
      %v242 = vunpack.c.l.b16 %v162
      %v243 = vunpack.c.l.b16 %v163
      %v244 = vunpack.c.l.b16 %v164
      %v245 = vunpack.c.l.b16 %v165
      %v246 = vunpack.c.l.b16 %v166
      %v247 = vunpack.c.l.b16 %v167
      %v248 = vunpack.c.l.b16 %v168
      %v249 = vunpack.c.l.b16 %v169
      %v250 = vunpack.c.l.b16 %v170
      %v251 = vunpack.c.l.b16 %v171
      %v252 = vunpack.c.l.b16 %v172
      %v253 = vunpack.c.l.b16 %v173
      %v254 = vunpack.c.l.b16 %v174
      %v255 = vunpack.c.l.b16 %v175
      %v256 = vunpack.c.l.b16 %v176
      %v257 = vunpack.c.l.b16 %v177
      %v258 = vunpack.c.l.b16 %v178
      %v259 = vunpack.c.l.b16 %v179
      %v260 = vpack.c.b16 %v229, %v228
      %v261 = vpack.c.b16 %v231, %v230
      %v262 = vpack.c.b16 %v233, %v232
      %v263 = vpack.c.b16 %v235, %v234
      %v264 = vpack.c.b16 %v237, %v236
      %v265 = vpack.c.b16 %v239, %v238
      %v266 = vpack.c.b16 %v241, %v240
      %v267 = vpack.c.b16 %v243, %v242
      %v268 = vpack.c.b16 %v245, %v244
      %v269 = vpack.c.b16 %v247, %v246
      %v270 = vpack.c.b16 %v249, %v248
      %v271 = vpack.c.b16 %v251, %v250
      %v272 = vpack.c.b16 %v253, %v252
      %v273 = vpack.c.b16 %v255, %v254
      %v274 = vpack.c.b16 %v257, %v256
      %v275 = vpack.c.b16 %v259, %v258
      %v308 = vunpack.c.l.b16 %v180
      %v309 = vunpack.c.l.b16 %v181
      %v310 = vunpack.c.l.b16 %v182
      %v311 = vunpack.c.l.b16 %v183
      %v312 = vunpack.c.l.b16 %v184
      %v313 = vunpack.c.l.b16 %v185
      %v314 = vunpack.c.l.b16 %v186
      %v315 = vunpack.c.l.b16 %v187
      %v316 = vunpack.c.l.b16 %v188
      %v317 = vunpack.c.l.b16 %v189
      %v318 = vunpack.c.l.b16 %v190
      %v319 = vunpack.c.l.b16 %v191
      %v320 = vunpack.c.l.b16 %v192
      %v321 = vunpack.c.l.b16 %v193
      %v322 = vunpack.c.l.b16 %v194
      %v323 = vunpack.c.l.b16 %v195
      %v324 = vpack.c.b16 %v309, %v308
      %v325 = vpack.c.b16 %v311, %v310
      %v326 = vpack.c.b16 %v313, %v312
      %v327 = vpack.c.b16 %v315, %v314
      %v328 = vpack.c.b16 %v317, %v316
      %v329 = vpack.c.b16 %v319, %v318
      %v330 = vpack.c.b16 %v321, %v320
      %v331 = vpack.c.b16 %v323, %v322
      %340 = vmatprep.subr.bf16.mxu0 0
      %341 = vmatpush1.bf16.msra.mxu0 %v324
      %342 = vmatprep.subr.bf16.mxu0 0
      %343 = vmatpush1.bf16.msra.mxu0 %v325
      %344 = vmatprep.subr.bf16.mxu0 0
      %345 = vmatpush1.bf16.msra.mxu0 %v326
      %346 = vmatprep.subr.bf16.mxu0 0
      %347 = vmatpush1.bf16.msra.mxu0 %v327
      %348 = vmatprep.subr.bf16.mxu0 0
      %349 = vmatpush1.bf16.msra.mxu0 %v328
      %350 = vmatprep.subr.bf16.mxu0 0
      %351 = vmatpush1.bf16.msra.mxu0 %v329
      %352 = vmatprep.subr.bf16.mxu0 0
      %353 = vmatpush1.bf16.msra.mxu0 %v330
      %354 = vmatprep.subr.bf16.mxu0 0
      %355 = vmatpush1.bf16.msra.mxu0 %v331
      %356 = vmatprep.subr.bf16.mxu0 0
      %357 = vmatpush1.bf16.msra.mxu0 0
      %358 = vmatprep.subr.bf16.mxu0 0
      %359 = vmatpush1.bf16.msra.mxu0 0
      %360 = vmatprep.subr.bf16.mxu0 0
      %361 = vmatpush1.bf16.msra.mxu0 0
      %362 = vmatprep.subr.bf16.mxu0 0
      %363 = vmatpush1.bf16.msra.mxu0 0
      %364 = vmatprep.subr.bf16.mxu0 0
      %365 = vmatpush1.bf16.msra.mxu0 0
      %366 = vmatprep.subr.bf16.mxu0 0
      %367 = vmatpush1.bf16.msra.mxu0 0
      %368 = vmatprep.subr.bf16.mxu0 0
      %369 = vmatpush1.bf16.msra.mxu0 0
      %370 = vmatprep.subr.bf16.mxu0 0
      %371 = vmatpush1.bf16.msra.mxu0 0
      %372 = vmatprep.mubr.bf16.mxu0 0
      %373 = vmatmul.mubr.bf16.gmra.mrb[0].mxu0 %v260
      %v374 = vpop.f32.mrb[0].mxu0
      %v375 = vadd.f32 0.0, %v374
      %v376 = vpop.f32.mrb[0].mxu0
      %v377 = vpop.f32.mrb[0].mxu0
      %v378 = vadd.f32 0.0, %v377
      %v379 = vpop.f32.mrb[0].mxu0
      %380 = vmatprep.mubr.bf16.mxu0 0
      %381 = vmatmul.mubr.bf16.gmra.mrb[0].mxu0 %v261
      %v382 = vpop.f32.mrb[0].mxu0
      %v383 = vadd.f32 0.0, %v382
      %v384 = vpop.f32.mrb[0].mxu0
      %v385 = vpop.f32.mrb[0].mxu0
      %v386 = vadd.f32 0.0, %v385
      %v387 = vpop.f32.mrb[0].mxu0
      %388 = vmatprep.mubr.bf16.mxu0 0
      %389 = vmatmul.mubr.bf16.gmra.mrb[0].mxu0 %v262
      %v390 = vpop.f32.mrb[0].mxu0
      %v391 = vadd.f32 0.0, %v390
      %v392 = vpop.f32.mrb[0].mxu0
      %v393 = vpop.f32.mrb[0].mxu0
      %v394 = vadd.f32 0.0, %v393
      %v395 = vpop.f32.mrb[0].mxu0
      %396 = vmatprep.mubr.bf16.mxu0 0
      %397 = vmatmul.mubr.bf16.gmra.mrb[0].mxu0 %v263
      %v398 = vpop.f32.mrb[0].mxu0
      %v399 = vadd.f32 0.0, %v398
      %v400 = vpop.f32.mrb[0].mxu0
      %v401 = vpop.f32.mrb[0].mxu0
      %v402 = vadd.f32 0.0, %v401
      %v403 = vpop.f32.mrb[0].mxu0
      %404 = vmatprep.mubr.bf16.mxu0 0
      %405 = vmatmul.mubr.bf16.gmra.mrb[0].mxu0 %v264
      %v406 = vpop.f32.mrb[0].mxu0
      %v407 = vadd.f32 0.0, %v406
      %v408 = vpop.f32.mrb[0].mxu0
      %v409 = vpop.f32.mrb[0].mxu0
      %v410 = vadd.f32 0.0, %v409
      %v411 = vpop.f32.mrb[0].mxu0
      %412 = vmatprep.mubr.bf16.mxu0 0
      %413 = vmatmul.mubr.bf16.gmra.mrb[0].mxu0 %v265
      %v414 = vpop.f32.mrb[0].mxu0
      %v415 = vadd.f32 0.0, %v414
      %v416 = vpop.f32.mrb[0].mxu0
      %v417 = vpop.f32.mrb[0].mxu0
      %v418 = vadd.f32 0.0, %v417
      %v419 = vpop.f32.mrb[0].mxu0
      %420 = vmatprep.mubr.bf16.mxu0 0
      %421 = vmatmul.mubr.bf16.gmra.mrb[0].mxu0 %v266
      %v422 = vpop.f32.mrb[0].mxu0
      %v423 = vadd.f32 0.0, %v422
      %v424 = vpop.f32.mrb[0].mxu0
      %v425 = vpop.f32.mrb[0].mxu0
      %v426 = vadd.f32 0.0, %v425
      %v427 = vpop.f32.mrb[0].mxu0
      %428 = vmatprep.mubr.bf16.mxu0 0
      %429 = vmatmul.mubr.bf16.gmra.mrb[0].mxu0 %v267
      %v430 = vpop.f32.mrb[0].mxu0
      %v431 = vadd.f32 0.0, %v430
      %v432 = vpop.f32.mrb[0].mxu0
      %v433 = vpop.f32.mrb[0].mxu0
      %v434 = vadd.f32 0.0, %v433
      %v435 = vpop.f32.mrb[0].mxu0
      %436 = vmatprep.mubr.bf16.mxu0 0
      %437 = vmatmul.mubr.bf16.gmra.mrb[0].mxu0 %v268
      %v438 = vpop.f32.mrb[0].mxu0
      %v439 = vadd.f32 0.0, %v438
      %v440 = vpop.f32.mrb[0].mxu0
      %v441 = vpop.f32.mrb[0].mxu0
      %v442 = vadd.f32 0.0, %v441
      %v443 = vpop.f32.mrb[0].mxu0
      %444 = vmatprep.mubr.bf16.mxu0 0
      %445 = vmatmul.mubr.bf16.gmra.mrb[0].mxu0 %v269
      %v446 = vpop.f32.mrb[0].mxu0
      %v447 = vadd.f32 0.0, %v446
      %v448 = vpop.f32.mrb[0].mxu0
      %v449 = vpop.f32.mrb[0].mxu0
      %v450 = vadd.f32 0.0, %v449
      %v451 = vpop.f32.mrb[0].mxu0
      %452 = vmatprep.mubr.bf16.mxu0 0
      %453 = vmatmul.mubr.bf16.gmra.mrb[0].mxu0 %v270
      %v454 = vpop.f32.mrb[0].mxu0
      %v455 = vadd.f32 0.0, %v454
      %v456 = vpop.f32.mrb[0].mxu0
      %v457 = vpop.f32.mrb[0].mxu0
      %v458 = vadd.f32 0.0, %v457
      %v459 = vpop.f32.mrb[0].mxu0
      %460 = vmatprep.mubr.bf16.mxu0 0
      %461 = vmatmul.mubr.bf16.gmra.mrb[0].mxu0 %v271
      %v462 = vpop.f32.mrb[0].mxu0
      %v463 = vadd.f32 0.0, %v462
      %v464 = vpop.f32.mrb[0].mxu0
      %v465 = vpop.f32.mrb[0].mxu0
      %v466 = vadd.f32 0.0, %v465
      %v467 = vpop.f32.mrb[0].mxu0
      %468 = vmatprep.mubr.bf16.mxu0 0
      %469 = vmatmul.mubr.bf16.gmra.mrb[0].mxu0 %v272
      %v470 = vpop.f32.mrb[0].mxu0
      %v471 = vadd.f32 0.0, %v470
      %v472 = vpop.f32.mrb[0].mxu0
      %v473 = vpop.f32.mrb[0].mxu0
      %v474 = vadd.f32 0.0, %v473
      %v475 = vpop.f32.mrb[0].mxu0
      %476 = vmatprep.mubr.bf16.mxu0 0
      %477 = vmatmul.mubr.bf16.gmra.mrb[0].mxu0 %v273
      %v478 = vpop.f32.mrb[0].mxu0
      %v479 = vadd.f32 0.0, %v478
      %v480 = vpop.f32.mrb[0].mxu0
      %v481 = vpop.f32.mrb[0].mxu0
      %v482 = vadd.f32 0.0, %v481
      %v483 = vpop.f32.mrb[0].mxu0
      %484 = vmatprep.mubr.bf16.mxu0 0
      %485 = vmatmul.mubr.bf16.gmra.mrb[0].mxu0 %v274
      %v486 = vpop.f32.mrb[0].mxu0
      %v487 = vadd.f32 0.0, %v486
      %v488 = vpop.f32.mrb[0].mxu0
      %v489 = vpop.f32.mrb[0].mxu0
      %v490 = vadd.f32 0.0, %v489
      %v491 = vpop.f32.mrb[0].mxu0
      %492 = vmatprep.mubr.bf16.mxu0 0
      %493 = vmatmul.mubr.bf16.gmra.mrb[0].mxu0 %v275
      %v494 = vpop.f32.mrb[0].mxu0
      %v495 = vadd.f32 0.0, %v494
      %v496 = vpop.f32.mrb[0].mxu0
      %v497 = vpop.f32.mrb[0].mxu0
      %v498 = vadd.f32 0.0, %v497
      %v499 = vpop.f32.mrb[0].mxu0
      %500 = vdwg.mxu0
      %vm501 = vcmp.ge.f32.partialorder %v375, 0.0
      %vm502 = vcmp.ge.f32.partialorder %v378, 0.0
      %vm503 = vcmp.ge.f32.partialorder %v383, 0.0
      %vm504 = vcmp.ge.f32.partialorder %v386, 0.0
      %vm505 = vcmp.ge.f32.partialorder %v391, 0.0
      %vm506 = vcmp.ge.f32.partialorder %v394, 0.0
      %vm507 = vcmp.ge.f32.partialorder %v399, 0.0
      %vm508 = vcmp.ge.f32.partialorder %v402, 0.0
      %vm509 = vcmp.ge.f32.partialorder %v407, 0.0
      %vm510 = vcmp.ge.f32.partialorder %v410, 0.0
      %vm511 = vcmp.ge.f32.partialorder %v415, 0.0
      %vm512 = vcmp.ge.f32.partialorder %v418, 0.0
      %vm513 = vcmp.ge.f32.partialorder %v423, 0.0
      %vm514 = vcmp.ge.f32.partialorder %v426, 0.0
      %vm515 = vcmp.ge.f32.partialorder %v431, 0.0
      %vm516 = vcmp.ge.f32.partialorder %v434, 0.0
      %vm517 = vcmp.ge.f32.partialorder %v439, 0.0
      %vm518 = vcmp.ge.f32.partialorder %v442, 0.0
      %vm519 = vcmp.ge.f32.partialorder %v447, 0.0
      %vm520 = vcmp.ge.f32.partialorder %v450, 0.0
      %vm521 = vcmp.ge.f32.partialorder %v455, 0.0
      %vm522 = vcmp.ge.f32.partialorder %v458, 0.0
      %vm523 = vcmp.ge.f32.partialorder %v463, 0.0
      %vm524 = vcmp.ge.f32.partialorder %v466, 0.0
      %vm525 = vcmp.ge.f32.partialorder %v471, 0.0
      %vm526 = vcmp.ge.f32.partialorder %v474, 0.0
      %vm527 = vcmp.ge.f32.partialorder %v479, 0.0
      %vm528 = vcmp.ge.f32.partialorder %v482, 0.0
      %vm529 = vcmp.ge.f32.partialorder %v487, 0.0
      %vm530 = vcmp.ge.f32.partialorder %v490, 0.0
      %vm531 = vcmp.ge.f32.partialorder %v495, 0.0
      %vm532 = vcmp.ge.f32.partialorder %v498, 0.0
      %v533 = vmul.f32 %v375, 0.2
      %v534 = vmul.f32 %v378, 0.2
      %v535 = vmul.f32 %v383, 0.2
      %v536 = vmul.f32 %v386, 0.2
      %v537 = vmul.f32 %v391, 0.2
      %v538 = vmul.f32 %v394, 0.2
      %v539 = vmul.f32 %v399, 0.2
      %v540 = vmul.f32 %v402, 0.2
      %v541 = vmul.f32 %v407, 0.2
      %v542 = vmul.f32 %v410, 0.2
      %v543 = vmul.f32 %v415, 0.2
      %v544 = vmul.f32 %v418, 0.2
      %v545 = vmul.f32 %v423, 0.2
      %v546 = vmul.f32 %v426, 0.2
      %v547 = vmul.f32 %v431, 0.2
      %v548 = vmul.f32 %v434, 0.2
      %v549 = vmul.f32 %v439, 0.2
      %v550 = vmul.f32 %v442, 0.2
      %v551 = vmul.f32 %v447, 0.2
      %v552 = vmul.f32 %v450, 0.2
      %v553 = vmul.f32 %v455, 0.2
      %v554 = vmul.f32 %v458, 0.2
      %v555 = vmul.f32 %v463, 0.2
      %v556 = vmul.f32 %v466, 0.2
      %v557 = vmul.f32 %v471, 0.2
      %v558 = vmul.f32 %v474, 0.2
      %v559 = vmul.f32 %v479, 0.2
      %v560 = vmul.f32 %v482, 0.2
      %v561 = vmul.f32 %v487, 0.2
      %v562 = vmul.f32 %v490, 0.2
      %v563 = vmul.f32 %v495, 0.2
      %v564 = vmul.f32 %v498, 0.2
      %v565 = vsel %vm501, %v375, %v533
      %v566 = vsel %vm502, %v378, %v534
      %v567 = vsel %vm503, %v383, %v535
      %v568 = vsel %vm504, %v386, %v536
      %v569 = vsel %vm505, %v391, %v537
      %v570 = vsel %vm506, %v394, %v538
      %v571 = vsel %vm507, %v399, %v539
      %v572 = vsel %vm508, %v402, %v540
      %v573 = vsel %vm509, %v407, %v541
      %v574 = vsel %vm510, %v410, %v542
      %v575 = vsel %vm511, %v415, %v543
      %v576 = vsel %vm512, %v418, %v544
      %v577 = vsel %vm513, %v423, %v545
      %v578 = vsel %vm514, %v426, %v546
      %v579 = vsel %vm515, %v431, %v547
      %v580 = vsel %vm516, %v434, %v548
      %v581 = vsel %vm517, %v439, %v549
      %v582 = vsel %vm518, %v442, %v550
      %v583 = vsel %vm519, %v447, %v551
      %v584 = vsel %vm520, %v450, %v552
      %v585 = vsel %vm521, %v455, %v553
      %v586 = vsel %vm522, %v458, %v554
      %v587 = vsel %vm523, %v463, %v555
      %v588 = vsel %vm524, %v466, %v556
      %v589 = vsel %vm525, %v471, %v557
      %v590 = vsel %vm526, %v474, %v558
      %v591 = vsel %vm527, %v479, %v559
      %v592 = vsel %vm528, %v482, %v560
      %v593 = vsel %vm529, %v487, %v561
      %v594 = vsel %vm530, %v490, %v562
      %v595 = vsel %vm531, %v495, %v563
      %v596 = vsel %vm532, %v498, %v564
      %v597 = vpack.c.bf16 %v566, %v565
      %v598 = vpack.c.bf16 %v568, %v567
      %v599 = vpack.c.bf16 %v570, %v569
      %v600 = vpack.c.bf16 %v572, %v571
      %v601 = vpack.c.bf16 %v574, %v573
      %v602 = vpack.c.bf16 %v576, %v575
      %v603 = vpack.c.bf16 %v578, %v577
      %v604 = vpack.c.bf16 %v580, %v579
      %v605 = vpack.c.bf16 %v582, %v581
      %v606 = vpack.c.bf16 %v584, %v583
      %v607 = vpack.c.bf16 %v586, %v585
      %v608 = vpack.c.bf16 %v588, %v587
      %v609 = vpack.c.bf16 %v590, %v589
      %v610 = vpack.c.bf16 %v592, %v591
      %v611 = vpack.c.bf16 %v594, %v593
      %v612 = vpack.c.bf16 %v596, %v595
      %v629 = vunpack.c.l.b16 %v597
      %v630 = vunpack.c.h.b16 %v597
      %v631 = vunpack.c.l.b16 %v598
      %v632 = vunpack.c.h.b16 %v598
      %v633 = vunpack.c.l.b16 %v599
      %v634 = vunpack.c.h.b16 %v599
      %v635 = vunpack.c.l.b16 %v600
      %v636 = vunpack.c.h.b16 %v600
      %v637 = vunpack.c.l.b16 %v601
      %v638 = vunpack.c.h.b16 %v601
      %v639 = vunpack.c.l.b16 %v602
      %v640 = vunpack.c.h.b16 %v602
      %v641 = vunpack.c.l.b16 %v603
      %v642 = vunpack.c.h.b16 %v603
      %v643 = vunpack.c.l.b16 %v604
      %v644 = vunpack.c.h.b16 %v604
      %v645 = vunpack.c.l.b16 %v605
      %v646 = vunpack.c.h.b16 %v605
      %v647 = vunpack.c.l.b16 %v606
      %v648 = vunpack.c.h.b16 %v606
      %v649 = vunpack.c.l.b16 %v607
      %v650 = vunpack.c.h.b16 %v607
      %v651 = vunpack.c.l.b16 %v608
      %v652 = vunpack.c.h.b16 %v608
      %v653 = vunpack.c.l.b16 %v609
      %v654 = vunpack.c.h.b16 %v609
      %v655 = vunpack.c.l.b16 %v610
      %v656 = vunpack.c.h.b16 %v610
      %v657 = vunpack.c.l.b16 %v611
      %v658 = vunpack.c.h.b16 %v611
      %v659 = vunpack.c.l.b16 %v612
      %v660 = vunpack.c.h.b16 %v612
      %v661 = vpack.c.b16 %v629, %v629
      %v662 = vpack.c.b16 %v630, %v630
      %v663 = vpack.c.b16 %v631, %v631
      %v664 = vpack.c.b16 %v632, %v632
      %v665 = vpack.c.b16 %v633, %v633
      %v666 = vpack.c.b16 %v634, %v634
      %v667 = vpack.c.b16 %v635, %v635
      %v668 = vpack.c.b16 %v636, %v636
      %v669 = vpack.c.b16 %v637, %v637
      %v670 = vpack.c.b16 %v638, %v638
      %v671 = vpack.c.b16 %v639, %v639
      %v672 = vpack.c.b16 %v640, %v640
      %v673 = vpack.c.b16 %v641, %v641
      %v674 = vpack.c.b16 %v642, %v642
      %v675 = vpack.c.b16 %v643, %v643
      %v676 = vpack.c.b16 %v644, %v644
      %v677 = vpack.c.b16 %v645, %v645
      %v678 = vpack.c.b16 %v646, %v646
      %v679 = vpack.c.b16 %v647, %v647
      %v680 = vpack.c.b16 %v648, %v648
      %v681 = vpack.c.b16 %v649, %v649
      %v682 = vpack.c.b16 %v650, %v650
      %v683 = vpack.c.b16 %v651, %v651
      %v684 = vpack.c.b16 %v652, %v652
      %v685 = vpack.c.b16 %v653, %v653
      %v686 = vpack.c.b16 %v654, %v654
      %v687 = vpack.c.b16 %v655, %v655
      %v688 = vpack.c.b16 %v656, %v656
      %v689 = vpack.c.b16 %v657, %v657
      %v690 = vpack.c.b16 %v658, %v658
      %v691 = vpack.c.b16 %v659, %v659
      %v692 = vpack.c.b16 %v660, %v660
      %vm725 = vcmask 125952
      %726 = vst.msk [vmem:[%s145] sm:$0xf] %vm725, %v661
      %727 = vst.msk [vmem:[%s145 + $0x4] sm:$0xf] %vm725, %v662
      %728 = vst.msk [vmem:[%s145 + $0x8] sm:$0xf] %vm725, %v663
      %729 = vst.msk [vmem:[%s145 + $0xc] sm:$0xf] %vm725, %v664
      %730 = vst.msk [vmem:[%s145 + $0x10] sm:$0xf] %vm725, %v665
      %731 = vst.msk [vmem:[%s145 + $0x14] sm:$0xf] %vm725, %v666
      %732 = vst.msk [vmem:[%s145 + $0x18] sm:$0xf] %vm725, %v667
      %733 = vst.msk [vmem:[%s145 + $0x1c] sm:$0xf] %vm725, %v668
      %734 = vst.msk [vmem:[%s145 + $0x20] sm:$0xf] %vm725, %v669
      %735 = vst.msk [vmem:[%s145 + $0x24] sm:$0xf] %vm725, %v670
      %736 = vst.msk [vmem:[%s145 + $0x28] sm:$0xf] %vm725, %v671
      %737 = vst.msk [vmem:[%s145 + $0x2c] sm:$0xf] %vm725, %v672
      %738 = vst.msk [vmem:[%s145 + $0x30] sm:$0xf] %vm725, %v673
      %739 = vst.msk [vmem:[%s145 + $0x34] sm:$0xf] %vm725, %v674
      %740 = vst.msk [vmem:[%s145 + $0x38] sm:$0xf] %vm725, %v675
      %741 = vst.msk [vmem:[%s145 + $0x3c] sm:$0xf] %vm725, %v676
      %742 = vst.msk [vmem:[%s145 + $0x40] sm:$0xf] %vm725, %v677
      %743 = vst.msk [vmem:[%s145 + $0x44] sm:$0xf] %vm725, %v678
      %744 = vst.msk [vmem:[%s145 + $0x48] sm:$0xf] %vm725, %v679
      %745 = vst.msk [vmem:[%s145 + $0x4c] sm:$0xf] %vm725, %v680
      %746 = vst.msk [vmem:[%s145 + $0x50] sm:$0xf] %vm725, %v681
      %747 = vst.msk [vmem:[%s145 + $0x54] sm:$0xf] %vm725, %v682
      %748 = vst.msk [vmem:[%s145 + $0x58] sm:$0xf] %vm725, %v683
      %749 = vst.msk [vmem:[%s145 + $0x5c] sm:$0xf] %vm725, %v684
      %750 = vst.msk [vmem:[%s145 + $0x60] sm:$0xf] %vm725, %v685
      %751 = vst.msk [vmem:[%s145 + $0x64] sm:$0xf] %vm725, %v686
      %752 = vst.msk [vmem:[%s145 + $0x68] sm:$0xf] %vm725, %v687
      %753 = vst.msk [vmem:[%s145 + $0x6c] sm:$0xf] %vm725, %v688
      %754 = vst.msk [vmem:[%s145 + $0x70] sm:$0xf] %vm725, %v689
      %755 = vst.msk [vmem:[%s145 + $0x74] sm:$0xf] %vm725, %v690
      %756 = vst.msk [vmem:[%s145 + $0x78] sm:$0xf] %vm725, %v691
      %757 = vst.msk [vmem:[%s145 + $0x7c] sm:$0xf] %vm725, %v692
      %s758 = smul.u32 32, %s13
      %p759 = scmp.lt.s32.totalorder %s758, 255
      %s760 = scalar_select %p759, %s758, 255
      %s761 = smul.addr %s760, 4
      %s762 = scalar_lea.vmem %s2, %s761
      // Predicated region
      $region29: #{discriminator_forward.4} parent=27 // pred_check
        %p763 = pneg %p78
      $region30: #{discriminator_forward.4} parent=27 // pred_check_branch
        %765 = sbr.rel (%p763) target = $region32
      $region31: #{discriminator_forward.4} parent=27 // pred_region
        %s766 = smul.u32 32, %s13
      $region32: #{discriminator_forward.4} parent=27 // pred_fallthru
        _
    $region28: #{discriminator_forward.4} parent=5 // pred_fallthru
      _
    %p767 = scmp.le.s32.totalorder 2, %s8
    // Predicated region
    $region33: #{discriminator_forward.4} parent=5 // pred_check
      %p768 = pneg %p767
    $region34: #{discriminator_forward.4} parent=5 // pred_check_branch
      %770 = sbr.rel (%p768) target = $region36
    $region35: #{discriminator_forward.4} parent=5 // pred_region
      %s771 = ssub.s32 %s8, 2
      // Predicated region
      $region37: #{discriminator_forward.4} parent=35 // pred_check
        %p772 = pneg %p84
      $region38: #{discriminator_forward.4} parent=35 // pred_check_branch
        %774 = sbr.rel (%p772) target = $region40
      $region39: #{discriminator_forward.4} parent=35 // pred_region
        %s775 = smul.u32 32, %s14
        %p776 = scmp.lt.s32.totalorder %s775, 255
        %s777 = scalar_select %p776, %s775, 255
        %s778 = smul.addr %s777, 4
        %s779 = scalar_lea.vmem %s2, %s778
      $region40: #{discriminator_forward.4} parent=35 // pred_fallthru
        _
    $region36: #{discriminator_forward.4} parent=5 // pred_fallthru
      _
  $region6: #{discriminator_forward.4} parent=0 // loop_footer
    %s12 = sadd.s32 1, %s8
  $region7: #{discriminator_forward.4} parent=0 // loop_footer_branch
    %7 = sbr.rel target = $region3
  $region8: #{discriminator_forward.4} parent=0 // loop_exit
    _

// kernel: discriminator_forward.5
$region0: #{discriminator_forward.5}
  #allocation0 [shape = 'u32[]', space=smem, size = 0x4, offset = 0x4, fixed_abs, tag = 'smem constant byte address 0x4 - core index']
  #allocation1 [shape = 'u32[144,128]{1,0:T(1,128)}', space=vmem, size = 0x12000, scoped, tag = 'internal scratch']
  %s0 = inlined_call_operand.vmem [shape: bf16[512,256], index: 0, kind: input, shape index: {}]
  %s1 = inlined_call_operand.vmem [shape: bf16[256,32], index: 1, kind: input, shape index: {}]
  %s2 = inlined_call_operand.vmem [shape: bf16[512,32], index: 2, kind: output, shape index: {0}]
  %s3 = inlined_call_operand.vmem [shape: f32[4,1,32], index: 3, kind: output, shape index: {1}]
  %s4 = inlined_call_operand.vmem [shape: f32[4,1,32], index: 4, kind: output, shape index: {2}]
  %5 = xla_tuple %s2, %s3, %s4
  %s6 = sld [smem:[#allocation0]]
  $region57: #{discriminator_forward.5} parent=0
    _
  %s8 = ssub.s32 1, %s6
  %s9 = scalar_select 0, %s8, %s6
  loop: start=0, step=1, limit=6
  $region2: #{discriminator_forward.5} parent=0 // loop_pre_header
    _
  $region3: #{discriminator_forward.5} parent=0 // loop_header
    %s11 = sphi 0, %s15
    %p12 = scmp.ge.s32.totalorder %s11, 6
    %s21 = sphi 0, %s23
    %s24 = sphi 0, %s21
    %s25 = sphi 0, %s24
    %s41 = sphi 0, %s25
    %s45 = sphi 0, %s45
    %s47 = sphi 0, %s45
    %s48 = sphi 0, %s47
    %s62 = sphi 0, %s48
    %s68 = sphi 0, %s70
    %s71 = sphi 0, %s68
    %s72 = sphi 0, %s71
    %s88 = sphi 0, %s72
    %s94 = sphi 0, %s96
    %s97 = sphi 0, %s94
    %s98 = sphi 0, %s97
    %s114 = sphi 0, %s98
    %s120 = sphi 0, %s122
    %s123 = sphi 0, %s120
    %s124 = sphi 0, %s123
    %s140 = sphi 0, %s124
  $region4: #{discriminator_forward.5} parent=0 // loop_header_branch
    %14 = sbr.rel (%p12) target = $region8
  $region5: #{discriminator_forward.5} parent=0 // loop_body
    %s16 = ssub.s32 %s11, 1
    %s17 = ssub.s32 %s11, 2
    %s18 = sadd.s32 %s11, 1
    %s19 = ssub.s32 %s11, %s18
    %p20 = scmp.eq.s32.totalorder %s19, 0
    %s22 = sadd.s32 %s21, 1
    %s23 = scalar_select %p20, %s21, %s22
    %p26 = pneg %p20
    %p27 = scmp.eq.s32.totalorder %s11, 3
    %p28 = por %p26, %p27
    %p29 = scmp.ne.s32.totalorder %s21, %s24
    %p30 = scmp.eq.s32.totalorder %s11, 0
    %p31 = por %p29, %p30
    %p32 = scmp.ne.s32.totalorder %s21, %s24
    %p33 = scmp.eq.s32.totalorder %s16, 3
    %p34 = por %p32, %p33
    %p35 = scmp.ne.s32.totalorder %s24, %s25
    %p36 = scmp.eq.s32.totalorder %s16, 0
    %p37 = por %p35, %p36
    %p38 = scmp.ne.s32.totalorder %s24, %s25
    %p39 = scmp.eq.s32.totalorder %s17, 3
    %p40 = por %p38, %p39
    %p42 = scmp.ne.s32.totalorder %s25, %s41
    %p43 = scmp.eq.s32.totalorder %s17, 0
    %p44 = por %p42, %p43
    %s46 = sadd.s32 %s45, 1
    %p49 = scmp.eq.s32.totalorder %s11, 3
    %p50 = scmp.ne.s32.totalorder %s45, %s47
    %p51 = scmp.eq.s32.totalorder %s11, 0
    %p52 = por %p50, %p51
    %p53 = scmp.ne.s32.totalorder %s45, %s47
    %p54 = scmp.eq.s32.totalorder %s16, 3
    %p55 = por %p53, %p54
    %p56 = scmp.ne.s32.totalorder %s47, %s48
    %p57 = scmp.eq.s32.totalorder %s16, 0
    %p58 = por %p56, %p57
    %p59 = scmp.ne.s32.totalorder %s47, %s48
    %p60 = scmp.eq.s32.totalorder %s17, 3
    %p61 = por %p59, %p60
    %p63 = scmp.ne.s32.totalorder %s48, %s62
    %p64 = scmp.eq.s32.totalorder %s17, 0
    %p65 = por %p63, %p64
    %s66 = ssub.s32 %s11, %s18
    %p67 = scmp.eq.s32.totalorder %s66, 0
    %s69 = sadd.s32 %s68, 1
    %s70 = scalar_select %p67, %s68, %s69
    %p73 = pneg %p67
    %p74 = scmp.eq.s32.totalorder %s11, 3
    %p75 = por %p73, %p74
    %p76 = scmp.ne.s32.totalorder %s68, %s71
    %p77 = scmp.eq.s32.totalorder %s11, 0
    %p78 = por %p76, %p77
    %p79 = scmp.ne.s32.totalorder %s68, %s71
    %p80 = scmp.eq.s32.totalorder %s16, 3
    %p81 = por %p79, %p80
    %p82 = scmp.ne.s32.totalorder %s71, %s72
    %p83 = scmp.eq.s32.totalorder %s16, 0
    %p84 = por %p82, %p83
    %p85 = scmp.ne.s32.totalorder %s71, %s72
    %p86 = scmp.eq.s32.totalorder %s17, 3
    %p87 = por %p85, %p86
    %p89 = scmp.ne.s32.totalorder %s72, %s88
    %p90 = scmp.eq.s32.totalorder %s17, 0
    %p91 = por %p89, %p90
    %s92 = ssub.s32 %s11, %s18
    %p93 = scmp.eq.s32.totalorder %s92, 0
    %s95 = sadd.s32 %s94, 1
    %s96 = scalar_select %p93, %s94, %s95
    %p99 = pneg %p93
    %p100 = scmp.eq.s32.totalorder %s11, 3
    %p101 = por %p99, %p100
    %p102 = scmp.ne.s32.totalorder %s94, %s97
    %p103 = scmp.eq.s32.totalorder %s11, 0
    %p104 = por %p102, %p103
    %p105 = scmp.ne.s32.totalorder %s94, %s97
    %p106 = scmp.eq.s32.totalorder %s16, 3
    %p107 = por %p105, %p106
    %p108 = scmp.ne.s32.totalorder %s97, %s98
    %p109 = scmp.eq.s32.totalorder %s16, 0
    %p110 = por %p108, %p109
    %p111 = scmp.ne.s32.totalorder %s97, %s98
    %p112 = scmp.eq.s32.totalorder %s17, 3
    %p113 = por %p111, %p112
    %p115 = scmp.ne.s32.totalorder %s98, %s114
    %p116 = scmp.eq.s32.totalorder %s17, 0
    %p117 = por %p115, %p116
    %s118 = ssub.s32 %s11, %s18
    %p119 = scmp.eq.s32.totalorder %s118, 0
    %s121 = sadd.s32 %s120, 1
    %s122 = scalar_select %p119, %s120, %s121
    %p125 = pneg %p119
    %p126 = scmp.eq.s32.totalorder %s11, 3
    %p127 = por %p125, %p126
    %p128 = scmp.ne.s32.totalorder %s120, %s123
    %p129 = scmp.eq.s32.totalorder %s11, 0
    %p130 = por %p128, %p129
    %p131 = scmp.ne.s32.totalorder %s120, %s123
    %p132 = scmp.eq.s32.totalorder %s16, 3
    %p133 = por %p131, %p132
    %p134 = scmp.ne.s32.totalorder %s123, %s124
    %p135 = scmp.eq.s32.totalorder %s16, 0
    %p136 = por %p134, %p135
    %p137 = scmp.ne.s32.totalorder %s123, %s124
    %p138 = scmp.eq.s32.totalorder %s17, 3
    %p139 = por %p137, %p138
    %p141 = scmp.ne.s32.totalorder %s124, %s140
    %p142 = scmp.eq.s32.totalorder %s17, 0
    %p143 = por %p141, %p142
    %p144 = scmp.le.s32.totalorder 1, %s11
    %p145 = scmp.lt.s32.totalorder %s11, 5
    %p146 = pnand %p144, %p145
    %p147 = pneg %p146
    // Predicated region
    $region9: #{discriminator_forward.5} parent=5 // pred_check
      _
    $region10: #{discriminator_forward.5} parent=5 // pred_check_branch
      %149 = sbr.rel (%p146) target = $region12
    $region11: #{discriminator_forward.5} parent=5 // pred_region
      %s150 = ssub.s32 %s11, 1
      // Predicated region
      $region13: #{discriminator_forward.5} parent=11 // pred_check
        %p151 = pneg %p58
      $region14: #{discriminator_forward.5} parent=11 // pred_check_branch
        %153 = sbr.rel (%p151) target = $region16
      $region15: #{discriminator_forward.5} parent=11 // pred_region
        _
      $region16: #{discriminator_forward.5} parent=11 // pred_fallthru
        _
    $region12: #{discriminator_forward.5} parent=5 // pred_fallthru
      _
    %p154 = scmp.lt.s32.totalorder %s11, 4
    // Predicated region
    $region17: #{discriminator_forward.5} parent=5 // pred_check
      %p155 = pneg %p154
    $region18: #{discriminator_forward.5} parent=5 // pred_check_branch
      %157 = sbr.rel (%p155) target = $region20
    $region19: #{discriminator_forward.5} parent=5 // pred_region
      // Predicated region
      $region21: #{discriminator_forward.5} parent=19 // pred_check
        %p158 = pneg %p31
      $region22: #{discriminator_forward.5} parent=19 // pred_check_branch
        %160 = sbr.rel (%p158) target = $region24
      $region23: #{discriminator_forward.5} parent=19 // pred_region
        %s161 = smul.u32 16, %s11
        %p162 = scmp.lt.s32.totalorder %s161, 63
        %s163 = scalar_select %p162, %s161, 63
        %s164 = smul.addr %s163, 2
        %s165 = smul.addr %s164, 4
        %s166 = scalar_lea.vmem %s0, %s165
        %s167 = smul.u32 16, %s11
      $region24: #{discriminator_forward.5} parent=19 // pred_fallthru
        _
    $region20: #{discriminator_forward.5} parent=5 // pred_fallthru
      _
    %p168 = scmp.le.s32.totalorder 1, %s11
    %p169 = scmp.lt.s32.totalorder %s11, 5
    %p170 = pnand %p168, %p169
    %p171 = pneg %p170
    // Predicated region
    $region25: #{discriminator_forward.5} parent=5 // pred_check
      _
    $region26: #{discriminator_forward.5} parent=5 // pred_check_branch
      %173 = sbr.rel (%p170) target = $region28
    $region27: #{discriminator_forward.5} parent=5 // pred_region
      %s174 = ssub.s32 %s11, 1
      %s175 = smul.u32 16, %s16
      %p176 = scmp.lt.s32.totalorder %s175, 63
      %s177 = scalar_select %p176, %s175, 63
      %s178 = smul.addr %s177, 2
      %s179 = smul.addr %s178, 4
      %s180 = scalar_lea.vmem %s0, %s179
      %p181 = pneg %p37
      %p182 = pneg %p34
      %p183 = pneg %p58
      %p184 = pneg %p55
      %p185 = pneg %p84
      %p186 = pneg %p81
      %s187 = smul.u32 16, %s16
      %p188 = scmp.lt.s32.totalorder %s187, 63
      %s189 = scalar_select %p188, %s187, 63
      %s190 = smul.addr %s189, 4
      %s191 = scalar_lea.vmem %s2, %s190
      %p192 = pneg %p110
      %p193 = pneg %p107
      %p194 = scmp.lt.s32.totalorder %s16, 3
      %s195 = scalar_select %p194, %s16, 3
      %s196 = scalar_lea.vmem %s3, %s195
      %p197 = pneg %p136
      %p198 = pneg %p133
      %p199 = scmp.lt.s32.totalorder %s16, 3
      %s200 = scalar_select %p199, %s16, 3
      %s201 = scalar_lea.vmem %s4, %s200
      %s202 = smul.u32 16, %s16
      %p203 = scmp.lt.s32.totalorder %s202, 63
      %s204 = scalar_select %p203, %s202, 63
      %s205 = smul.addr %s204, 2
      %s206 = smul.addr %s205, 4
      %s207 = scalar_lea.vmem %s0, %s206
      %s208 = smul.u32 16, %s16
      %s209 = smul.u32 16, %s16
      %p210 = scmp.lt.s32.totalorder %s209, 63
      %s211 = scalar_select %p210, %s209, 63
      %s212 = smul.addr %s211, 4
      %s213 = scalar_lea.vmem %s2, %s212
      %s214 = smul.u32 16, %s16
      %p215 = scmp.lt.s32.totalorder %s16, 3
      %s216 = scalar_select %p215, %s16, 3
      %s217 = scalar_lea.vmem %s3, %s216
      %p218 = scmp.lt.s32.totalorder %s16, 3
      %s219 = scalar_select %p218, %s16, 3
      %s220 = scalar_lea.vmem %s4, %s219
      %v222 = vld [vmem:[%s207] sm:$0xff]
      %v223 = vld [vmem:[%s207 + $0x8] sm:$0xff]
      %v224 = vld [vmem:[%s207 + $0x10] sm:$0xff]
      %v225 = vld [vmem:[%s207 + $0x18] sm:$0xff]
      %v226 = vld [vmem:[%s207 + $0x20] sm:$0xff]
      %v227 = vld [vmem:[%s207 + $0x28] sm:$0xff]
      %v228 = vld [vmem:[%s207 + $0x30] sm:$0xff]
      %v229 = vld [vmem:[%s207 + $0x38] sm:$0xff]
      %v230 = vld [vmem:[%s207 + $0x40] sm:$0xff]
      %v231 = vld [vmem:[%s207 + $0x48] sm:$0xff]
      %v232 = vld [vmem:[%s207 + $0x50] sm:$0xff]
      %v233 = vld [vmem:[%s207 + $0x58] sm:$0xff]
      %v234 = vld [vmem:[%s207 + $0x60] sm:$0xff]
      %v235 = vld [vmem:[%s207 + $0x68] sm:$0xff]
      %v236 = vld [vmem:[%s207 + $0x70] sm:$0xff]
      %v237 = vld [vmem:[%s207 + $0x78] sm:$0xff]
      %v238 = vld [vmem:[%s1] sm:$0xf]
      %v239 = vld [vmem:[%s1 + $0x4] sm:$0xf]
      %v240 = vld [vmem:[%s1 + $0x8] sm:$0xf]
      %v241 = vld [vmem:[%s1 + $0xc] sm:$0xf]
      %v242 = vld [vmem:[%s1 + $0x10] sm:$0xf]
      %v243 = vld [vmem:[%s1 + $0x14] sm:$0xf]
      %v244 = vld [vmem:[%s1 + $0x18] sm:$0xf]
      %v245 = vld [vmem:[%s1 + $0x1c] sm:$0xf]
      %v246 = vld [vmem:[%s1 + $0x20] sm:$0xf]
      %v247 = vld [vmem:[%s1 + $0x24] sm:$0xf]
      %v248 = vld [vmem:[%s1 + $0x28] sm:$0xf]
      %v249 = vld [vmem:[%s1 + $0x2c] sm:$0xf]
      %v250 = vld [vmem:[%s1 + $0x30] sm:$0xf]
      %v251 = vld [vmem:[%s1 + $0x34] sm:$0xf]
      %v252 = vld [vmem:[%s1 + $0x38] sm:$0xf]
      %v253 = vld [vmem:[%s1 + $0x3c] sm:$0xf]
      %v254 = vld [vmem:[%s1 + $0x40] sm:$0xf]
      %v255 = vld [vmem:[%s1 + $0x44] sm:$0xf]
      %v256 = vld [vmem:[%s1 + $0x48] sm:$0xf]
      %v257 = vld [vmem:[%s1 + $0x4c] sm:$0xf]
      %v258 = vld [vmem:[%s1 + $0x50] sm:$0xf]
      %v259 = vld [vmem:[%s1 + $0x54] sm:$0xf]
      %v260 = vld [vmem:[%s1 + $0x58] sm:$0xf]
      %v261 = vld [vmem:[%s1 + $0x5c] sm:$0xf]
      %v262 = vld [vmem:[%s1 + $0x60] sm:$0xf]
      %v263 = vld [vmem:[%s1 + $0x64] sm:$0xf]
      %v264 = vld [vmem:[%s1 + $0x68] sm:$0xf]
      %v265 = vld [vmem:[%s1 + $0x6c] sm:$0xf]
      %v266 = vld [vmem:[%s1 + $0x70] sm:$0xf]
      %v267 = vld [vmem:[%s1 + $0x74] sm:$0xf]
      %v268 = vld [vmem:[%s1 + $0x78] sm:$0xf]
      %v269 = vld [vmem:[%s1 + $0x7c] sm:$0xf]
      %v286 = vunpack.c.l.b16 %v222
      %v287 = vunpack.c.h.b16 %v222
      %v288 = vunpack.c.l.b16 %v223
      %v289 = vunpack.c.h.b16 %v223
      %v290 = vunpack.c.l.b16 %v224
      %v291 = vunpack.c.h.b16 %v224
      %v292 = vunpack.c.l.b16 %v225
      %v293 = vunpack.c.h.b16 %v225
      %v294 = vunpack.c.l.b16 %v226
      %v295 = vunpack.c.h.b16 %v226
      %v296 = vunpack.c.l.b16 %v227
      %v297 = vunpack.c.h.b16 %v227
      %v298 = vunpack.c.l.b16 %v228
      %v299 = vunpack.c.h.b16 %v228
      %v300 = vunpack.c.l.b16 %v229
      %v301 = vunpack.c.h.b16 %v229
      %v302 = vunpack.c.l.b16 %v230
      %v303 = vunpack.c.h.b16 %v230
      %v304 = vunpack.c.l.b16 %v231
      %v305 = vunpack.c.h.b16 %v231
      %v306 = vunpack.c.l.b16 %v232
      %v307 = vunpack.c.h.b16 %v232
      %v308 = vunpack.c.l.b16 %v233
      %v309 = vunpack.c.h.b16 %v233
      %v310 = vunpack.c.l.b16 %v234
      %v311 = vunpack.c.h.b16 %v234
      %v312 = vunpack.c.l.b16 %v235
      %v313 = vunpack.c.h.b16 %v235
      %v314 = vunpack.c.l.b16 %v236
      %v315 = vunpack.c.h.b16 %v236
      %v316 = vunpack.c.l.b16 %v237
      %v317 = vunpack.c.h.b16 %v237
      %v318 = vpack.c.b16 %v288, %v286
      %v319 = vpack.c.b16 %v289, %v287
      %v320 = vpack.c.b16 %v292, %v290
      %v321 = vpack.c.b16 %v293, %v291
      %v322 = vpack.c.b16 %v296, %v294
      %v323 = vpack.c.b16 %v297, %v295
      %v324 = vpack.c.b16 %v300, %v298
      %v325 = vpack.c.b16 %v301, %v299
      %v326 = vpack.c.b16 %v304, %v302
      %v327 = vpack.c.b16 %v305, %v303
      %v328 = vpack.c.b16 %v308, %v306
      %v329 = vpack.c.b16 %v309, %v307
      %v330 = vpack.c.b16 %v312, %v310
      %v331 = vpack.c.b16 %v313, %v311
      %v332 = vpack.c.b16 %v316, %v314
      %v333 = vpack.c.b16 %v317, %v315
      %v382 = vunpack.c.l.b16 %v238
      %v383 = vunpack.c.l.b16 %v239
      %v384 = vunpack.c.l.b16 %v240
      %v385 = vunpack.c.l.b16 %v241
      %v386 = vunpack.c.l.b16 %v242
      %v387 = vunpack.c.l.b16 %v243
      %v388 = vunpack.c.l.b16 %v244
      %v389 = vunpack.c.l.b16 %v245
      %v390 = vunpack.c.l.b16 %v246
      %v391 = vunpack.c.l.b16 %v247
      %v392 = vunpack.c.l.b16 %v248
      %v393 = vunpack.c.l.b16 %v249
      %v394 = vunpack.c.l.b16 %v250
      %v395 = vunpack.c.l.b16 %v251
      %v396 = vunpack.c.l.b16 %v252
      %v397 = vunpack.c.l.b16 %v253
      %v398 = vunpack.c.l.b16 %v254
      %v399 = vunpack.c.l.b16 %v255
      %v400 = vunpack.c.l.b16 %v256
      %v401 = vunpack.c.l.b16 %v257
      %v402 = vunpack.c.l.b16 %v258
      %v403 = vunpack.c.l.b16 %v259
      %v404 = vunpack.c.l.b16 %v260
      %v405 = vunpack.c.l.b16 %v261
      %v406 = vunpack.c.l.b16 %v262
      %v407 = vunpack.c.l.b16 %v263
      %v408 = vunpack.c.l.b16 %v264
      %v409 = vunpack.c.l.b16 %v265
      %v410 = vunpack.c.l.b16 %v266
      %v411 = vunpack.c.l.b16 %v267
      %v412 = vunpack.c.l.b16 %v268
      %v413 = vunpack.c.l.b16 %v269
      %v414 = vpack.c.b16 %v383, %v382
      %v415 = vpack.c.b16 %v385, %v384
      %v416 = vpack.c.b16 %v387, %v386
      %v417 = vpack.c.b16 %v389, %v388
      %v418 = vpack.c.b16 %v391, %v390
      %v419 = vpack.c.b16 %v393, %v392
      %v420 = vpack.c.b16 %v395, %v394
      %v421 = vpack.c.b16 %v397, %v396
      %v422 = vpack.c.b16 %v399, %v398
      %v423 = vpack.c.b16 %v401, %v400
      %v424 = vpack.c.b16 %v403, %v402
      %v425 = vpack.c.b16 %v405, %v404
      %v426 = vpack.c.b16 %v407, %v406
      %v427 = vpack.c.b16 %v409, %v408
      %v428 = vpack.c.b16 %v411, %v410
      %v429 = vpack.c.b16 %v413, %v412
      %446 = vmatprep.subr.bf16.mxu0 0
      %447 = vmatpush1.bf16.msra.mxu0 %v414
      %448 = vmatprep.subr.bf16.mxu0 0
      %449 = vmatpush1.bf16.msra.mxu0 %v415
      %450 = vmatprep.subr.bf16.mxu0 0
      %451 = vmatpush1.bf16.msra.mxu0 %v416
      %452 = vmatprep.subr.bf16.mxu0 0
      %453 = vmatpush1.bf16.msra.mxu0 %v417
      %454 = vmatprep.subr.bf16.mxu0 0
      %455 = vmatpush1.bf16.msra.mxu0 %v418
      %456 = vmatprep.subr.bf16.mxu0 0
      %457 = vmatpush1.bf16.msra.mxu0 %v419
      %458 = vmatprep.subr.bf16.mxu0 0
      %459 = vmatpush1.bf16.msra.mxu0 %v420
      %460 = vmatprep.subr.bf16.mxu0 0
      %461 = vmatpush1.bf16.msra.mxu0 %v421
      %462 = vmatprep.subr.bf16.mxu0 0
      %463 = vmatpush1.bf16.msra.mxu0 %v422
      %464 = vmatprep.subr.bf16.mxu0 0
      %465 = vmatpush1.bf16.msra.mxu0 %v423
      %466 = vmatprep.subr.bf16.mxu0 0
      %467 = vmatpush1.bf16.msra.mxu0 %v424
      %468 = vmatprep.subr.bf16.mxu0 0
      %469 = vmatpush1.bf16.msra.mxu0 %v425
      %470 = vmatprep.subr.bf16.mxu0 0
      %471 = vmatpush1.bf16.msra.mxu0 %v426
      %472 = vmatprep.subr.bf16.mxu0 0
      %473 = vmatpush1.bf16.msra.mxu0 %v427
      %474 = vmatprep.subr.bf16.mxu0 0
      %475 = vmatpush1.bf16.msra.mxu0 %v428
      %476 = vmatprep.subr.bf16.mxu0 0
      %477 = vmatpush1.bf16.msra.mxu0 %v429
      %478 = vmatprep.mubr.bf16.mxu0 %v319
      %479 = vmatmul.mubr.bf16.gmra.mrb[0].mxu0 %v318
      %v480 = vpop.f32.mrb[0].mxu0
      %v481 = vadd.f32 0.0, %v480
      %v482 = vpop.f32.mrb[0].mxu0
      %v483 = vpop.f32.mrb[0].mxu0
      %v484 = vadd.f32 0.0, %v483
      %v485 = vpop.f32.mrb[0].mxu0
      %486 = vmatprep.mubr.bf16.mxu0 %v321
      %487 = vmatmul.mubr.bf16.gmra.mrb[0].mxu0 %v320
      %v488 = vpop.f32.mrb[0].mxu0
      %v489 = vadd.f32 0.0, %v488
      %v490 = vpop.f32.mrb[0].mxu0
      %v491 = vpop.f32.mrb[0].mxu0
      %v492 = vadd.f32 0.0, %v491
      %v493 = vpop.f32.mrb[0].mxu0
      %494 = vmatprep.mubr.bf16.mxu0 %v323
      %495 = vmatmul.mubr.bf16.gmra.mrb[0].mxu0 %v322
      %v496 = vpop.f32.mrb[0].mxu0
      %v497 = vadd.f32 0.0, %v496
      %v498 = vpop.f32.mrb[0].mxu0
      %v499 = vpop.f32.mrb[0].mxu0
      %v500 = vadd.f32 0.0, %v499
      %v501 = vpop.f32.mrb[0].mxu0
      %502 = vmatprep.mubr.bf16.mxu0 %v325
      %503 = vmatmul.mubr.bf16.gmra.mrb[0].mxu0 %v324
      %v504 = vpop.f32.mrb[0].mxu0
      %v505 = vadd.f32 0.0, %v504
      %v506 = vpop.f32.mrb[0].mxu0
      %v507 = vpop.f32.mrb[0].mxu0
      %v508 = vadd.f32 0.0, %v507
      %v509 = vpop.f32.mrb[0].mxu0
      %510 = vmatprep.mubr.bf16.mxu0 %v327
      %511 = vmatmul.mubr.bf16.gmra.mrb[0].mxu0 %v326
      %v512 = vpop.f32.mrb[0].mxu0
      %v513 = vadd.f32 0.0, %v512
      %v514 = vpop.f32.mrb[0].mxu0
      %v515 = vpop.f32.mrb[0].mxu0
      %v516 = vadd.f32 0.0, %v515
      %v517 = vpop.f32.mrb[0].mxu0
      %518 = vmatprep.mubr.bf16.mxu0 %v329
      %519 = vmatmul.mubr.bf16.gmra.mrb[0].mxu0 %v328
      %v520 = vpop.f32.mrb[0].mxu0
      %v521 = vadd.f32 0.0, %v520
      %v522 = vpop.f32.mrb[0].mxu0
      %v523 = vpop.f32.mrb[0].mxu0
      %v524 = vadd.f32 0.0, %v523
      %v525 = vpop.f32.mrb[0].mxu0
      %526 = vmatprep.mubr.bf16.mxu0 %v331
      %527 = vmatmul.mubr.bf16.gmra.mrb[0].mxu0 %v330
      %v528 = vpop.f32.mrb[0].mxu0
      %v529 = vadd.f32 0.0, %v528
      %v530 = vpop.f32.mrb[0].mxu0
      %v531 = vpop.f32.mrb[0].mxu0
      %v532 = vadd.f32 0.0, %v531
      %v533 = vpop.f32.mrb[0].mxu0
      %534 = vmatprep.mubr.bf16.mxu0 %v333
      %535 = vmatmul.mubr.bf16.gmra.mrb[0].mxu0 %v332
      %v536 = vpop.f32.mrb[0].mxu0
      %v537 = vadd.f32 0.0, %v536
      %v538 = vpop.f32.mrb[0].mxu0
      %v539 = vpop.f32.mrb[0].mxu0
      %v540 = vadd.f32 0.0, %v539
      %v541 = vpop.f32.mrb[0].mxu0
      %542 = vdwg.mxu0
      %vm543 = vcmask 261120
      %v544 = vsel %vm543, %v481, 0.0
      %v545 = vsel %vm543, %v484, 0.0
      %v546 = vadd.f32 %v544, %v545
      %v547 = vsel %vm543, %v489, 0.0
      %v548 = vadd.f32 %v546, %v547
      %v549 = vsel %vm543, %v492, 0.0
      %v550 = vadd.f32 %v548, %v549
      %v551 = vsel %vm543, %v497, 0.0
      %v552 = vadd.f32 %v550, %v551
      %v553 = vsel %vm543, %v500, 0.0
      %v554 = vadd.f32 %v552, %v553
      %v555 = vsel %vm543, %v505, 0.0
      %v556 = vadd.f32 %v554, %v555
      %v557 = vsel %vm543, %v508, 0.0
      %v558 = vadd.f32 %v556, %v557
      %v559 = vsel %vm543, %v513, 0.0
      %v560 = vadd.f32 %v558, %v559
      %v561 = vsel %vm543, %v516, 0.0
      %v562 = vadd.f32 %v560, %v561
      %v563 = vsel %vm543, %v521, 0.0
      %v564 = vadd.f32 %v562, %v563
      %v565 = vsel %vm543, %v524, 0.0
      %v566 = vadd.f32 %v564, %v565
      %v567 = vsel %vm543, %v529, 0.0
      %v568 = vadd.f32 %v566, %v567
      %v569 = vsel %vm543, %v532, 0.0
      %v570 = vadd.f32 %v568, %v569
      %v571 = vsel %vm543, %v537, 0.0
      %v572 = vadd.f32 %v570, %v571
      %v573 = vsel %vm543, %v540, 0.0
      %v574 = vadd.f32 %v572, %v573
      %v575 = vrot.slane %v574, 4
      %v576 = vadd.f32 %v574, %v575
      %v577 = vrot.slane %v576, 2
      %v578 = vadd.f32 %v576, %v577
      %v579 = vrot.slane %v578, 1
      %v580 = vadd.f32 %v578, %v579
      %vm581 = vcmask 253952
      %582 = vst.msk [vmem:[%s217] sm:$0x1] %vm581, %v580
      %v583 = vmul.f32 %v481, %v481
      %v584 = vmul.f32 %v484, %v484
      %v585 = vmul.f32 %v489, %v489
      %v586 = vmul.f32 %v492, %v492
      %v587 = vmul.f32 %v497, %v497
      %v588 = vmul.f32 %v500, %v500
      %v589 = vmul.f32 %v505, %v505
      %v590 = vmul.f32 %v508, %v508
      %v591 = vmul.f32 %v513, %v513
      %v592 = vmul.f32 %v516, %v516
      %v593 = vmul.f32 %v521, %v521
      %v594 = vmul.f32 %v524, %v524
      %v595 = vmul.f32 %v529, %v529
      %v596 = vmul.f32 %v532, %v532
      %v597 = vmul.f32 %v537, %v537
      %v598 = vmul.f32 %v540, %v540
      %v599 = vsel %vm543, %v583, 0.0
      %v600 = vsel %vm543, %v584, 0.0
      %v601 = vadd.f32 %v599, %v600
      %v602 = vsel %vm543, %v585, 0.0
      %v603 = vadd.f32 %v601, %v602
      %v604 = vsel %vm543, %v586, 0.0
      %v605 = vadd.f32 %v603, %v604
      %v606 = vsel %vm543, %v587, 0.0
      %v607 = vadd.f32 %v605, %v606
      %v608 = vsel %vm543, %v588, 0.0
      %v609 = vadd.f32 %v607, %v608
      %v610 = vsel %vm543, %v589, 0.0
      %v611 = vadd.f32 %v609, %v610
      %v612 = vsel %vm543, %v590, 0.0
      %v613 = vadd.f32 %v611, %v612
      %v614 = vsel %vm543, %v591, 0.0
      %v615 = vadd.f32 %v613, %v614
      %v616 = vsel %vm543, %v592, 0.0
      %v617 = vadd.f32 %v615, %v616
      %v618 = vsel %vm543, %v593, 0.0
      %v619 = vadd.f32 %v617, %v618
      %v620 = vsel %vm543, %v594, 0.0
      %v621 = vadd.f32 %v619, %v620
      %v622 = vsel %vm543, %v595, 0.0
      %v623 = vadd.f32 %v621, %v622
      %v624 = vsel %vm543, %v596, 0.0
      %v625 = vadd.f32 %v623, %v624
      %v626 = vsel %vm543, %v597, 0.0
      %v627 = vadd.f32 %v625, %v626
      %v628 = vsel %vm543, %v598, 0.0
      %v629 = vadd.f32 %v627, %v628
      %v630 = vrot.slane %v629, 4
      %v631 = vadd.f32 %v629, %v630
      %v632 = vrot.slane %v631, 2
      %v633 = vadd.f32 %v631, %v632
      %v634 = vrot.slane %v633, 1
      %v635 = vadd.f32 %v633, %v634
      %636 = vst.msk [vmem:[%s220] sm:$0x1] %vm581, %v635
      %v637 = vpack.c.bf16 %v484, %v481
      %v638 = vpack.c.bf16 %v492, %v489
      %v639 = vpack.c.bf16 %v500, %v497
      %v640 = vpack.c.bf16 %v508, %v505
      %v641 = vpack.c.bf16 %v516, %v513
      %v642 = vpack.c.bf16 %v524, %v521
      %v643 = vpack.c.bf16 %v532, %v529
      %v644 = vpack.c.bf16 %v540, %v537
      %v653 = vunpack.c.l.b16 %v637
      %v654 = vunpack.c.h.b16 %v637
      %v655 = vunpack.c.l.b16 %v638
      %v656 = vunpack.c.h.b16 %v638
      %v657 = vunpack.c.l.b16 %v639
      %v658 = vunpack.c.h.b16 %v639
      %v659 = vunpack.c.l.b16 %v640
      %v660 = vunpack.c.h.b16 %v640
      %v661 = vunpack.c.l.b16 %v641
      %v662 = vunpack.c.h.b16 %v641
      %v663 = vunpack.c.l.b16 %v642
      %v664 = vunpack.c.h.b16 %v642
      %v665 = vunpack.c.l.b16 %v643
      %v666 = vunpack.c.h.b16 %v643
      %v667 = vunpack.c.l.b16 %v644
      %v668 = vunpack.c.h.b16 %v644
      %v669 = vpack.c.b16 %v653, %v653
      %v670 = vpack.c.b16 %v654, %v654
      %v671 = vpack.c.b16 %v655, %v655
      %v672 = vpack.c.b16 %v656, %v656
      %v673 = vpack.c.b16 %v657, %v657
      %v674 = vpack.c.b16 %v658, %v658
      %v675 = vpack.c.b16 %v659, %v659
      %v676 = vpack.c.b16 %v660, %v660
      %v677 = vpack.c.b16 %v661, %v661
      %v678 = vpack.c.b16 %v662, %v662
      %v679 = vpack.c.b16 %v663, %v663
      %v680 = vpack.c.b16 %v664, %v664
      %v681 = vpack.c.b16 %v665, %v665
      %v682 = vpack.c.b16 %v666, %v666
      %v683 = vpack.c.b16 %v667, %v667
      %v684 = vpack.c.b16 %v668, %v668
      %vm701 = vcmask 257024
      %702 = vst.msk [vmem:[%s213] sm:$0xf] %vm701, %v669
      %703 = vst.msk [vmem:[%s213 + $0x4] sm:$0xf] %vm701, %v670
      %704 = vst.msk [vmem:[%s213 + $0x8] sm:$0xf] %vm701, %v671
      %705 = vst.msk [vmem:[%s213 + $0xc] sm:$0xf] %vm701, %v672
      %706 = vst.msk [vmem:[%s213 + $0x10] sm:$0xf] %vm701, %v673
      %707 = vst.msk [vmem:[%s213 + $0x14] sm:$0xf] %vm701, %v674
      %708 = vst.msk [vmem:[%s213 + $0x18] sm:$0xf] %vm701, %v675
      %709 = vst.msk [vmem:[%s213 + $0x1c] sm:$0xf] %vm701, %v676
      %710 = vst.msk [vmem:[%s213 + $0x20] sm:$0xf] %vm701, %v677
      %711 = vst.msk [vmem:[%s213 + $0x24] sm:$0xf] %vm701, %v678
      %712 = vst.msk [vmem:[%s213 + $0x28] sm:$0xf] %vm701, %v679
      %713 = vst.msk [vmem:[%s213 + $0x2c] sm:$0xf] %vm701, %v680
      %714 = vst.msk [vmem:[%s213 + $0x30] sm:$0xf] %vm701, %v681
      %715 = vst.msk [vmem:[%s213 + $0x34] sm:$0xf] %vm701, %v682
      %716 = vst.msk [vmem:[%s213 + $0x38] sm:$0xf] %vm701, %v683
      %717 = vst.msk [vmem:[%s213 + $0x3c] sm:$0xf] %vm701, %v684
      %s718 = smul.u32 16, %s16
      %p719 = scmp.lt.s32.totalorder %s718, 63
      %s720 = scalar_select %p719, %s718, 63
      %s721 = smul.addr %s720, 4
      %s722 = scalar_lea.vmem %s2, %s721
      %p723 = scmp.lt.s32.totalorder %s16, 3
      %s724 = scalar_select %p723, %s16, 3
      %s725 = scalar_lea.vmem %s3, %s724
      %p726 = scmp.lt.s32.totalorder %s16, 3
      %s727 = scalar_select %p726, %s16, 3
      %s728 = scalar_lea.vmem %s4, %s727
      // Predicated region
      $region29: #{discriminator_forward.5} parent=27 // pred_check
        %p729 = pneg %p81
      $region30: #{discriminator_forward.5} parent=27 // pred_check_branch
        %731 = sbr.rel (%p729) target = $region32
      $region31: #{discriminator_forward.5} parent=27 // pred_region
        %s732 = smul.u32 16, %s16
      $region32: #{discriminator_forward.5} parent=27 // pred_fallthru
        _
      // Predicated region
      $region33: #{discriminator_forward.5} parent=27 // pred_check
        %p733 = pneg %p107
      $region34: #{discriminator_forward.5} parent=27 // pred_check_branch
        %735 = sbr.rel (%p733) target = $region36
      $region35: #{discriminator_forward.5} parent=27 // pred_region
        _
      $region36: #{discriminator_forward.5} parent=27 // pred_fallthru
        _
      // Predicated region
      $region37: #{discriminator_forward.5} parent=27 // pred_check
        %p736 = pneg %p133
      $region38: #{discriminator_forward.5} parent=27 // pred_check_branch
        %738 = sbr.rel (%p736) target = $region40
      $region39: #{discriminator_forward.5} parent=27 // pred_region
        _
      $region40: #{discriminator_forward.5} parent=27 // pred_fallthru
        _
    $region28: #{discriminator_forward.5} parent=5 // pred_fallthru
      _
    %p739 = scmp.le.s32.totalorder 2, %s11
    // Predicated region
    $region41: #{discriminator_forward.5} parent=5 // pred_check
      %p740 = pneg %p739
    $region42: #{discriminator_forward.5} parent=5 // pred_check_branch
      %742 = sbr.rel (%p740) target = $region44
    $region43: #{discriminator_forward.5} parent=5 // pred_region
      %s743 = ssub.s32 %s11, 2
      // Predicated region
      $region45: #{discriminator_forward.5} parent=43 // pred_check
        %p744 = pneg %p87
      $region46: #{discriminator_forward.5} parent=43 // pred_check_branch
        %746 = sbr.rel (%p744) target = $region48
      $region47: #{discriminator_forward.5} parent=43 // pred_region
        %s747 = smul.u32 16, %s17
        %p748 = scmp.lt.s32.totalorder %s747, 63
        %s749 = scalar_select %p748, %s747, 63
        %s750 = smul.addr %s749, 4
        %s751 = scalar_lea.vmem %s2, %s750
      $region48: #{discriminator_forward.5} parent=43 // pred_fallthru
        _
      // Predicated region
      $region49: #{discriminator_forward.5} parent=43 // pred_check
        %p752 = pneg %p113
      $region50: #{discriminator_forward.5} parent=43 // pred_check_branch
        %754 = sbr.rel (%p752) target = $region52
      $region51: #{discriminator_forward.5} parent=43 // pred_region
        %p755 = scmp.lt.s32.totalorder %s17, 3
        %s756 = scalar_select %p755, %s17, 3
        %s757 = scalar_lea.vmem %s3, %s756
      $region52: #{discriminator_forward.5} parent=43 // pred_fallthru
        _
      // Predicated region
      $region53: #{discriminator_forward.5} parent=43 // pred_check
        %p758 = pneg %p139
      $region54: #{discriminator_forward.5} parent=43 // pred_check_branch
        %760 = sbr.rel (%p758) target = $region56
      $region55: #{discriminator_forward.5} parent=43 // pred_region
        %p761 = scmp.lt.s32.totalorder %s17, 3
        %s762 = scalar_select %p761, %s17, 3
        %s763 = scalar_lea.vmem %s4, %s762
      $region56: #{discriminator_forward.5} parent=43 // pred_fallthru
        _
    $region44: #{discriminator_forward.5} parent=5 // pred_fallthru
      _
  $region6: #{discriminator_forward.5} parent=0 // loop_footer
    %s15 = sadd.s32 1, %s11
  $region7: #{discriminator_forward.5} parent=0 // loop_footer_branch
    %10 = sbr.rel target = $region3
  $region8: #{discriminator_forward.5} parent=0 // loop_exit
    _

// kernel: tile.23
$region0: #{tile.23}
  #allocation0 [shape = 's32[1]{0}', space=sflag, size = 0x4, scoped, tag = 'scoped memory for tile.23']
  %s0 = inlined_call_operand.vmem [shape: f32[32], index: 0, kind: input, shape index: {}]
  %s1 = inlined_call_operand.vmem [shape: f32[16,32], index: 1, kind: output, shape index: {}]
  // Predicated region
  $region2: #{tile.23} parent=0 // pred_check
    _
  $region3: #{tile.23} parent=0 // pred_check_branch
    %3 = sbr.rel (0) target = $region5
  $region4: #{tile.23} parent=0 // pred_region
    _
  $region5: #{tile.23} parent=0 // pred_fallthru
    _
  %v4 = vld [vmem:[%s0] ss:$0 sm:$0xff]
  %5 = vst [vmem:[%s1] sm:$0xff] %v4
  %s6 = scalar_lea.vmem %s1, 8
  %7 = vst [vmem:[%s6] sm:$0xff] %v4

// kernel: tile.24
$region0: #{tile.24}
  %s0 = inlined_call_operand.vmem [shape: f32[16,32], index: 0, kind: input, shape index: {}]
  %s1 = inlined_call_operand.vmem [shape: f32[1,512], index: 1, kind: output, shape index: {}]
  $region1: #{tile.24} parent=0
    #allocation0 [shape = 'u8[16384]{0}', space=vmem, size = 0x4000, scoped, tag = 'scoped mem for output reshape']
    %v2 = vld [vmem:[%s0] ss:$4 sm:$0xf]
    %vm3 = vcmask 261120
    %4 = vst.msk [vmem:[#allocation0] ss:$8 sm:$0xf] %vm3, %v2
    %s5 = scalar_lea.vmem %s0, 3
    %v6 = vld [vmem:[%s5] ss:$4 sm:$0xf]
    %7 = vrot.lane.b32.xlu0 %v6, 96
    %v8 = vpop.permute.xlu0 %7
    %vm9 = vcmask 1048320
    %10 = vst.msk [vmem:[#allocation0] ss:$8 sm:$0xf] %vm9, %v8
    %s11 = scalar_lea.vmem %s0, 2
    %v12 = vld [vmem:[%s11] ss:$4 sm:$0xf]
    %13 = vrot.lane.b32.xlu0 %v12, 64
    %v14 = vpop.permute.xlu0 %13
    %vm15 = vcmask 785920
    %16 = vst.msk [vmem:[#allocation0] ss:$8 sm:$0xf] %vm15, %v14
    %s17 = scalar_lea.vmem %s0, 1
    %v18 = vld [vmem:[%s17] ss:$4 sm:$0xf]
    %19 = vrot.lane.b32.xlu0 %v18, 32
    %v20 = vpop.permute.xlu0 %19
    %vm21 = vcmask 523520
    %22 = vst.msk [vmem:[#allocation0] ss:$8 sm:$0xf] %vm21, %v20
    %s24 = sshllo.u32 0, 1
    %v26 = vld [vmem:[#allocation0] sm:%s24]
    %s27 = sshllo.u32 0, 1
    %28 = vst [vmem:[%s1] sm:%s27] %v26
    %s29 = scalar_lea.vmem [#allocation0], 8
    %v30 = vld [vmem:[%s29] sm:%s24]
    %s31 = sshllo.u32 0, 1
    %s32 = scalar_lea.vmem %s1, 1
    %33 = vst [vmem:[%s32] sm:%s31] %v30
    %s34 = scalar_lea.vmem [#allocation0], 16
    %v35 = vld [vmem:[%s34] sm:%s24]
    %s36 = sshllo.u32 0, 1
    %s37 = smul.addr 1, 2
    %s38 = scalar_lea.vmem %s1, %s37
    %39 = vst [vmem:[%s38] sm:%s36] %v35
    %s40 = scalar_lea.vmem [#allocation0], 24
    %v41 = vld [vmem:[%s40] sm:%s24]
    %s42 = sshllo.u32 0, 1
    %s43 = smul.addr 1, 3
    %s44 = scalar_lea.vmem %s1, %s43
    %45 = vst [vmem:[%s44] sm:%s42] %v41

// kernel: discriminator_forward.6
$region0: #{discriminator_forward.6}
  #allocation0 [shape = 'u32[]', space=smem, size = 0x4, offset = 0x4, fixed_abs, tag = 'smem constant byte address 0x4 - core index']
  #allocation1 [shape = 'u32[144,128]{1,0:T(1,128)}', space=vmem, size = 0x12000, scoped, tag = 'internal scratch']
  %s0 = inlined_call_operand.vmem [shape: bf16[128,512], index: 0, kind: input, shape index: {}]
  %s1 = inlined_call_operand.vmem [shape: bf16[512,64], index: 1, kind: input, shape index: {}]
  %s2 = inlined_call_operand.vmem [shape: f32[1,512], index: 2, kind: input, shape index: {}]
  %s3 = inlined_call_operand.vmem [shape: f32[1,512], index: 3, kind: input, shape index: {}]
  %s4 = inlined_call_operand.vmem [shape: bf16[128,64], index: 4, kind: output, shape index: {0}]
  %s5 = inlined_call_operand.vmem [shape: f32[4,1,64], index: 5, kind: output, shape index: {1}]
  %s6 = inlined_call_operand.vmem [shape: f32[4,1,64], index: 6, kind: output, shape index: {2}]
  %7 = xla_tuple %s4, %s5, %s6
  %s8 = sld [smem:[#allocation0]]
  $region65: #{discriminator_forward.6} parent=0
    _
  %s10 = ssub.s32 1, %s8
  %s11 = scalar_select 0, %s10, %s8
  loop: start=0, step=1, limit=6
  $region2: #{discriminator_forward.6} parent=0 // loop_pre_header
    _
  $region3: #{discriminator_forward.6} parent=0 // loop_header
    %s13 = sphi 0, %s17
    %p14 = scmp.ge.s32.totalorder %s13, 6
    %s23 = sphi 0, %s25
    %s26 = sphi 0, %s23
    %s27 = sphi 0, %s26
    %s43 = sphi 0, %s27
    %s47 = sphi 0, %s47
    %s49 = sphi 0, %s47
    %s50 = sphi 0, %s49
    %s64 = sphi 0, %s50
    %s68 = sphi 0, %s68
    %s70 = sphi 0, %s68
    %s71 = sphi 0, %s70
    %s85 = sphi 0, %s71
    %s89 = sphi 0, %s89
    %s91 = sphi 0, %s89
    %s92 = sphi 0, %s91
    %s106 = sphi 0, %s92
    %s112 = sphi 0, %s114
    %s115 = sphi 0, %s112
    %s116 = sphi 0, %s115
    %s132 = sphi 0, %s116
    %s138 = sphi 0, %s140
    %s141 = sphi 0, %s138
    %s142 = sphi 0, %s141
    %s158 = sphi 0, %s142
    %s164 = sphi 0, %s166
    %s167 = sphi 0, %s164
    %s168 = sphi 0, %s167
    %s184 = sphi 0, %s168
  $region4: #{discriminator_forward.6} parent=0 // loop_header_branch
    %16 = sbr.rel (%p14) target = $region8
  $region5: #{discriminator_forward.6} parent=0 // loop_body
    %s18 = ssub.s32 %s13, 1
    %s19 = ssub.s32 %s13, 2
    %s20 = sadd.s32 %s13, 1
    %s21 = ssub.s32 %s13, %s20
    %p22 = scmp.eq.s32.totalorder %s21, 0
    %s24 = sadd.s32 %s23, 1
    %s25 = scalar_select %p22, %s23, %s24
    %p28 = pneg %p22
    %p29 = scmp.eq.s32.totalorder %s13, 3
    %p30 = por %p28, %p29
    %p31 = scmp.ne.s32.totalorder %s23, %s26
    %p32 = scmp.eq.s32.totalorder %s13, 0
    %p33 = por %p31, %p32
    %p34 = scmp.ne.s32.totalorder %s23, %s26
    %p35 = scmp.eq.s32.totalorder %s18, 3
    %p36 = por %p34, %p35
    %p37 = scmp.ne.s32.totalorder %s26, %s27
    %p38 = scmp.eq.s32.totalorder %s18, 0
    %p39 = por %p37, %p38
    %p40 = scmp.ne.s32.totalorder %s26, %s27
    %p41 = scmp.eq.s32.totalorder %s19, 3
    %p42 = por %p40, %p41
    %p44 = scmp.ne.s32.totalorder %s27, %s43
    %p45 = scmp.eq.s32.totalorder %s19, 0
    %p46 = por %p44, %p45
    %s48 = sadd.s32 %s47, 1
    %p51 = scmp.eq.s32.totalorder %s13, 3
    %p52 = scmp.ne.s32.totalorder %s47, %s49
    %p53 = scmp.eq.s32.totalorder %s13, 0
    %p54 = por %p52, %p53
    %p55 = scmp.ne.s32.totalorder %s47, %s49
    %p56 = scmp.eq.s32.totalorder %s18, 3
    %p57 = por %p55, %p56
    %p58 = scmp.ne.s32.totalorder %s49, %s50
    %p59 = scmp.eq.s32.totalorder %s18, 0
    %p60 = por %p58, %p59
    %p61 = scmp.ne.s32.totalorder %s49, %s50
    %p62 = scmp.eq.s32.totalorder %s19, 3
    %p63 = por %p61, %p62
    %p65 = scmp.ne.s32.totalorder %s50, %s64
    %p66 = scmp.eq.s32.totalorder %s19, 0
    %p67 = por %p65, %p66
    %s69 = sadd.s32 %s68, 1
    %p72 = scmp.eq.s32.totalorder %s13, 3
    %p73 = scmp.ne.s32.totalorder %s68, %s70
    %p74 = scmp.eq.s32.totalorder %s13, 0
    %p75 = por %p73, %p74
    %p76 = scmp.ne.s32.totalorder %s68, %s70
    %p77 = scmp.eq.s32.totalorder %s18, 3
    %p78 = por %p76, %p77
    %p79 = scmp.ne.s32.totalorder %s70, %s71
    %p80 = scmp.eq.s32.totalorder %s18, 0
    %p81 = por %p79, %p80
    %p82 = scmp.ne.s32.totalorder %s70, %s71
    %p83 = scmp.eq.s32.totalorder %s19, 3
    %p84 = por %p82, %p83
    %p86 = scmp.ne.s32.totalorder %s71, %s85
    %p87 = scmp.eq.s32.totalorder %s19, 0
    %p88 = por %p86, %p87
    %s90 = sadd.s32 %s89, 1
    %p93 = scmp.eq.s32.totalorder %s13, 3
    %p94 = scmp.ne.s32.totalorder %s89, %s91
    %p95 = scmp.eq.s32.totalorder %s13, 0
    %p96 = por %p94, %p95
    %p97 = scmp.ne.s32.totalorder %s89, %s91
    %p98 = scmp.eq.s32.totalorder %s18, 3
    %p99 = por %p97, %p98
    %p100 = scmp.ne.s32.totalorder %s91, %s92
    %p101 = scmp.eq.s32.totalorder %s18, 0
    %p102 = por %p100, %p101
    %p103 = scmp.ne.s32.totalorder %s91, %s92
    %p104 = scmp.eq.s32.totalorder %s19, 3
    %p105 = por %p103, %p104
    %p107 = scmp.ne.s32.totalorder %s92, %s106
    %p108 = scmp.eq.s32.totalorder %s19, 0
    %p109 = por %p107, %p108
    %s110 = ssub.s32 %s13, %s20
    %p111 = scmp.eq.s32.totalorder %s110, 0
    %s113 = sadd.s32 %s112, 1
    %s114 = scalar_select %p111, %s112, %s113
    %p117 = pneg %p111
    %p118 = scmp.eq.s32.totalorder %s13, 3
    %p119 = por %p117, %p118
    %p120 = scmp.ne.s32.totalorder %s112, %s115
    %p121 = scmp.eq.s32.totalorder %s13, 0
    %p122 = por %p120, %p121
    %p123 = scmp.ne.s32.totalorder %s112, %s115
    %p124 = scmp.eq.s32.totalorder %s18, 3
    %p125 = por %p123, %p124
    %p126 = scmp.ne.s32.totalorder %s115, %s116
    %p127 = scmp.eq.s32.totalorder %s18, 0
    %p128 = por %p126, %p127
    %p129 = scmp.ne.s32.totalorder %s115, %s116
    %p130 = scmp.eq.s32.totalorder %s19, 3
    %p131 = por %p129, %p130
    %p133 = scmp.ne.s32.totalorder %s116, %s132
    %p134 = scmp.eq.s32.totalorder %s19, 0
    %p135 = por %p133, %p134
    %s136 = ssub.s32 %s13, %s20
    %p137 = scmp.eq.s32.totalorder %s136, 0
    %s139 = sadd.s32 %s138, 1
    %s140 = scalar_select %p137, %s138, %s139
    %p143 = pneg %p137
    %p144 = scmp.eq.s32.totalorder %s13, 3
    %p145 = por %p143, %p144
    %p146 = scmp.ne.s32.totalorder %s138, %s141
    %p147 = scmp.eq.s32.totalorder %s13, 0
    %p148 = por %p146, %p147
    %p149 = scmp.ne.s32.totalorder %s138, %s141
    %p150 = scmp.eq.s32.totalorder %s18, 3
    %p151 = por %p149, %p150
    %p152 = scmp.ne.s32.totalorder %s141, %s142
    %p153 = scmp.eq.s32.totalorder %s18, 0
    %p154 = por %p152, %p153
    %p155 = scmp.ne.s32.totalorder %s141, %s142
    %p156 = scmp.eq.s32.totalorder %s19, 3
    %p157 = por %p155, %p156
    %p159 = scmp.ne.s32.totalorder %s142, %s158
    %p160 = scmp.eq.s32.totalorder %s19, 0
    %p161 = por %p159, %p160
    %s162 = ssub.s32 %s13, %s20
    %p163 = scmp.eq.s32.totalorder %s162, 0
    %s165 = sadd.s32 %s164, 1
    %s166 = scalar_select %p163, %s164, %s165
    %p169 = pneg %p163
    %p170 = scmp.eq.s32.totalorder %s13, 3
    %p171 = por %p169, %p170
    %p172 = scmp.ne.s32.totalorder %s164, %s167
    %p173 = scmp.eq.s32.totalorder %s13, 0
    %p174 = por %p172, %p173
    %p175 = scmp.ne.s32.totalorder %s164, %s167
    %p176 = scmp.eq.s32.totalorder %s18, 3
    %p177 = por %p175, %p176
    %p178 = scmp.ne.s32.totalorder %s167, %s168
    %p179 = scmp.eq.s32.totalorder %s18, 0
    %p180 = por %p178, %p179
    %p181 = scmp.ne.s32.totalorder %s167, %s168
    %p182 = scmp.eq.s32.totalorder %s19, 3
    %p183 = por %p181, %p182
    %p185 = scmp.ne.s32.totalorder %s168, %s184
    %p186 = scmp.eq.s32.totalorder %s19, 0
    %p187 = por %p185, %p186
    %p188 = scmp.le.s32.totalorder 1, %s13
    %p189 = scmp.lt.s32.totalorder %s13, 5
    %p190 = pnand %p188, %p189
    %p191 = pneg %p190
    // Predicated region
    $region9: #{discriminator_forward.6} parent=5 // pred_check
      _
    $region10: #{discriminator_forward.6} parent=5 // pred_check_branch
      %193 = sbr.rel (%p190) target = $region12
    $region11: #{discriminator_forward.6} parent=5 // pred_region
      %s194 = ssub.s32 %s13, 1
      // Predicated region
      $region13: #{discriminator_forward.6} parent=11 // pred_check
        %p195 = pneg %p60
      $region14: #{discriminator_forward.6} parent=11 // pred_check_branch
        %197 = sbr.rel (%p195) target = $region16
      $region15: #{discriminator_forward.6} parent=11 // pred_region
        _
      $region16: #{discriminator_forward.6} parent=11 // pred_fallthru
        _
      // Predicated region
      $region17: #{discriminator_forward.6} parent=11 // pred_check
        %p198 = pneg %p81
      $region18: #{discriminator_forward.6} parent=11 // pred_check_branch
        %200 = sbr.rel (%p198) target = $region20
      $region19: #{discriminator_forward.6} parent=11 // pred_region
        _
      $region20: #{discriminator_forward.6} parent=11 // pred_fallthru
        _
      // Predicated region
      $region21: #{discriminator_forward.6} parent=11 // pred_check
        %p201 = pneg %p102
      $region22: #{discriminator_forward.6} parent=11 // pred_check_branch
        %203 = sbr.rel (%p201) target = $region24
      $region23: #{discriminator_forward.6} parent=11 // pred_region
        _
      $region24: #{discriminator_forward.6} parent=11 // pred_fallthru
        _
    $region12: #{discriminator_forward.6} parent=5 // pred_fallthru
      _
    %p204 = scmp.lt.s32.totalorder %s13, 4
    // Predicated region
    $region25: #{discriminator_forward.6} parent=5 // pred_check
      %p205 = pneg %p204
    $region26: #{discriminator_forward.6} parent=5 // pred_check_branch
      %207 = sbr.rel (%p205) target = $region28
    $region27: #{discriminator_forward.6} parent=5 // pred_region
      // Predicated region
      $region29: #{discriminator_forward.6} parent=27 // pred_check
        %p208 = pneg %p33
      $region30: #{discriminator_forward.6} parent=27 // pred_check_branch
        %210 = sbr.rel (%p208) target = $region32
      $region31: #{discriminator_forward.6} parent=27 // pred_region
        %s211 = smul.u32 4, %s13
        %p212 = scmp.lt.s32.totalorder %s211, 15
        %s213 = scalar_select %p212, %s211, 15
        %s214 = smul.addr %s213, 4
        %s215 = smul.addr %s214, 4
        %s216 = scalar_lea.vmem %s0, %s215
        %s217 = smul.u32 4, %s13
      $region32: #{discriminator_forward.6} parent=27 // pred_fallthru
        _
    $region28: #{discriminator_forward.6} parent=5 // pred_fallthru
      _
    %p218 = scmp.le.s32.totalorder 1, %s13
    %p219 = scmp.lt.s32.totalorder %s13, 5
    %p220 = pnand %p218, %p219
    %p221 = pneg %p220
    // Predicated region
    $region33: #{discriminator_forward.6} parent=5 // pred_check
      _
    $region34: #{discriminator_forward.6} parent=5 // pred_check_branch
      %223 = sbr.rel (%p220) target = $region36
    $region35: #{discriminator_forward.6} parent=5 // pred_region
      %s224 = ssub.s32 %s13, 1
      %s225 = smul.u32 4, %s18
      %p226 = scmp.lt.s32.totalorder %s225, 15
      %s227 = scalar_select %p226, %s225, 15
      %s228 = smul.addr %s227, 4
      %s229 = smul.addr %s228, 4
      %s230 = scalar_lea.vmem %s0, %s229
      %p231 = pneg %p39
      %p232 = pneg %p36
      %p233 = pneg %p60
      %p234 = pneg %p57
      %p235 = pneg %p81
      %p236 = pneg %p78
      %p237 = pneg %p102
      %p238 = pneg %p99
      %p239 = pneg %p128
      %p240 = pneg %p125
      %s241 = smul.u32 4, %s18
      %p242 = scmp.lt.s32.totalorder %s241, 15
      %s243 = scalar_select %p242, %s241, 15
      %s244 = smul.addr %s243, 4
      %s245 = scalar_lea.vmem %s4, %s244
      %p246 = pneg %p154
      %p247 = pneg %p151
      %p248 = scmp.lt.s32.totalorder %s18, 3
      %s249 = scalar_select %p248, %s18, 3
      %s250 = scalar_lea.vmem %s5, %s249
      %p251 = pneg %p180
      %p252 = pneg %p177
      %p253 = scmp.lt.s32.totalorder %s18, 3
      %s254 = scalar_select %p253, %s18, 3
      %s255 = scalar_lea.vmem %s6, %s254
      %s256 = smul.u32 4, %s18
      %p257 = scmp.lt.s32.totalorder %s256, 15
      %s258 = scalar_select %p257, %s256, 15
      %s259 = smul.addr %s258, 4
      %s260 = smul.addr %s259, 4
      %s261 = scalar_lea.vmem %s0, %s260
      %s262 = smul.u32 4, %s18
      %s263 = smul.u32 4, %s18
      %p264 = scmp.lt.s32.totalorder %s263, 15
      %s265 = scalar_select %p264, %s263, 15
      %s266 = smul.addr %s265, 4
      %s267 = scalar_lea.vmem %s4, %s266
      %s268 = smul.u32 4, %s18
      %p269 = scmp.lt.s32.totalorder %s18, 3
      %s270 = scalar_select %p269, %s18, 3
      %s271 = scalar_lea.vmem %s5, %s270
      %p272 = scmp.lt.s32.totalorder %s18, 3
      %s273 = scalar_select %p272, %s18, 3
      %s274 = scalar_lea.vmem %s6, %s273
      %v276 = vld [vmem:[%s261] sm:$0xff]
      %v277 = vld [vmem:[%s261 + $0x8] sm:$0xff]
      %v278 = vld [vmem:[%s261 + $0x10] sm:$0xff]
      %v279 = vld [vmem:[%s261 + $0x18] sm:$0xff]
      %v280 = vld [vmem:[%s261 + $0x20] sm:$0xff]
      %v281 = vld [vmem:[%s261 + $0x28] sm:$0xff]
      %v282 = vld [vmem:[%s261 + $0x30] sm:$0xff]
      %v283 = vld [vmem:[%s261 + $0x38] sm:$0xff]
      %v284 = vunpack.c.l.bf16 %v276
      %v285 = vunpack.c.h.bf16 %v276
      %v286 = vunpack.c.l.bf16 %v277
      %v287 = vunpack.c.h.bf16 %v277
      %v288 = vunpack.c.l.bf16 %v278
      %v289 = vunpack.c.h.bf16 %v278
      %v290 = vunpack.c.l.bf16 %v279
      %v291 = vunpack.c.h.bf16 %v279
      %v292 = vunpack.c.l.bf16 %v280
      %v293 = vunpack.c.h.bf16 %v280
      %v294 = vunpack.c.l.bf16 %v281
      %v295 = vunpack.c.h.bf16 %v281
      %v296 = vunpack.c.l.bf16 %v282
      %v297 = vunpack.c.h.bf16 %v282
      %v298 = vunpack.c.l.bf16 %v283
      %v299 = vunpack.c.h.bf16 %v283
      %v300 = vld [vmem:[%s2] sm:$0xf]
      %v302 = vlaneseq
      %v303 = vshrl.u32 %v302, 7
      %v304 = vsub.s32 0, %v303
      %v305 = vrot.slane %v300, %v304
      %v306 = vlaneseq
      %v307 = vshrl.u32 %v306, 7
      %v308 = vsub.s32 1, %v307
      %v309 = vrot.slane %v300, %v308
      %v310 = vlaneseq
      %v311 = vshrl.u32 %v310, 7
      %v312 = vsub.s32 2, %v311
      %v313 = vrot.slane %v300, %v312
      %v314 = vlaneseq
      %v315 = vshrl.u32 %v314, 7
      %v316 = vsub.s32 3, %v315
      %v317 = vrot.slane %v300, %v316
      %v322 = vmul.f32 %v284, %v305
      %v323 = vmul.f32 %v285, %v309
      %v324 = vmul.f32 %v286, %v313
      %v325 = vmul.f32 %v287, %v317
      %v326 = vmul.f32 %v288, %v305
      %v327 = vmul.f32 %v289, %v309
      %v328 = vmul.f32 %v290, %v313
      %v329 = vmul.f32 %v291, %v317
      %v330 = vmul.f32 %v292, %v305
      %v331 = vmul.f32 %v293, %v309
      %v332 = vmul.f32 %v294, %v313
      %v333 = vmul.f32 %v295, %v317
      %v334 = vmul.f32 %v296, %v305
      %v335 = vmul.f32 %v297, %v309
      %v336 = vmul.f32 %v298, %v313
      %v337 = vmul.f32 %v299, %v317
      %v338 = vld [vmem:[%s3] sm:$0xf]
      %v340 = vlaneseq
      %v341 = vshrl.u32 %v340, 7
      %v342 = vsub.s32 0, %v341
      %v343 = vrot.slane %v338, %v342
      %v344 = vlaneseq
      %v345 = vshrl.u32 %v344, 7
      %v346 = vsub.s32 1, %v345
      %v347 = vrot.slane %v338, %v346
      %v348 = vlaneseq
      %v349 = vshrl.u32 %v348, 7
      %v350 = vsub.s32 2, %v349
      %v351 = vrot.slane %v338, %v350
      %v352 = vlaneseq
      %v353 = vshrl.u32 %v352, 7
      %v354 = vsub.s32 3, %v353
      %v355 = vrot.slane %v338, %v354
      %v360 = vadd.f32 %v322, %v343
      %v361 = vadd.f32 %v323, %v347
      %v362 = vadd.f32 %v324, %v351
      %v363 = vadd.f32 %v325, %v355
      %v364 = vadd.f32 %v326, %v343
      %v365 = vadd.f32 %v327, %v347
      %v366 = vadd.f32 %v328, %v351
      %v367 = vadd.f32 %v329, %v355
      %v368 = vadd.f32 %v330, %v343
      %v369 = vadd.f32 %v331, %v347
      %v370 = vadd.f32 %v332, %v351
      %v371 = vadd.f32 %v333, %v355
      %v372 = vadd.f32 %v334, %v343
      %v373 = vadd.f32 %v335, %v347
      %v374 = vadd.f32 %v336, %v351
      %v375 = vadd.f32 %v337, %v355
      %vm376 = vcmp.ge.f32.partialorder %v360, 0.0
      %vm377 = vcmp.ge.f32.partialorder %v361, 0.0
      %vm378 = vcmp.ge.f32.partialorder %v362, 0.0
      %vm379 = vcmp.ge.f32.partialorder %v363, 0.0
      %vm380 = vcmp.ge.f32.partialorder %v364, 0.0
      %vm381 = vcmp.ge.f32.partialorder %v365, 0.0
      %vm382 = vcmp.ge.f32.partialorder %v366, 0.0
      %vm383 = vcmp.ge.f32.partialorder %v367, 0.0
      %vm384 = vcmp.ge.f32.partialorder %v368, 0.0
      %vm385 = vcmp.ge.f32.partialorder %v369, 0.0
      %vm386 = vcmp.ge.f32.partialorder %v370, 0.0
      %vm387 = vcmp.ge.f32.partialorder %v371, 0.0
      %vm388 = vcmp.ge.f32.partialorder %v372, 0.0
      %vm389 = vcmp.ge.f32.partialorder %v373, 0.0
      %vm390 = vcmp.ge.f32.partialorder %v374, 0.0
      %vm391 = vcmp.ge.f32.partialorder %v375, 0.0
      %v392 = vmul.f32 %v360, 0.2
      %v393 = vmul.f32 %v361, 0.2
      %v394 = vmul.f32 %v362, 0.2
      %v395 = vmul.f32 %v363, 0.2
      %v396 = vmul.f32 %v364, 0.2
      %v397 = vmul.f32 %v365, 0.2
      %v398 = vmul.f32 %v366, 0.2
      %v399 = vmul.f32 %v367, 0.2
      %v400 = vmul.f32 %v368, 0.2
      %v401 = vmul.f32 %v369, 0.2
      %v402 = vmul.f32 %v370, 0.2
      %v403 = vmul.f32 %v371, 0.2
      %v404 = vmul.f32 %v372, 0.2
      %v405 = vmul.f32 %v373, 0.2
      %v406 = vmul.f32 %v374, 0.2
      %v407 = vmul.f32 %v375, 0.2
      %v408 = vsel %vm376, %v360, %v392
      %v409 = vsel %vm377, %v361, %v393
      %v410 = vsel %vm378, %v362, %v394
      %v411 = vsel %vm379, %v363, %v395
      %v412 = vsel %vm380, %v364, %v396
      %v413 = vsel %vm381, %v365, %v397
      %v414 = vsel %vm382, %v366, %v398
      %v415 = vsel %vm383, %v367, %v399
      %v416 = vsel %vm384, %v368, %v400
      %v417 = vsel %vm385, %v369, %v401
      %v418 = vsel %vm386, %v370, %v402
      %v419 = vsel %vm387, %v371, %v403
      %v420 = vsel %vm388, %v372, %v404
      %v421 = vsel %vm389, %v373, %v405
      %v422 = vsel %vm390, %v374, %v406
      %v423 = vsel %vm391, %v375, %v407
      %v424 = vpack.c.bf16 %v412, %v408
      %v425 = vpack.c.bf16 %v413, %v409
      %v426 = vpack.c.bf16 %v414, %v410
      %v427 = vpack.c.bf16 %v415, %v411
      %v428 = vpack.c.bf16 %v420, %v416
      %v429 = vpack.c.bf16 %v421, %v417
      %v430 = vpack.c.bf16 %v422, %v418
      %v431 = vpack.c.bf16 %v423, %v419
      %v432 = vld [vmem:[%s1] sm:$0xf]
      %v433 = vld [vmem:[%s1 + $0x4] sm:$0xf]
      %v434 = vld [vmem:[%s1 + $0x8] sm:$0xf]
      %v435 = vld [vmem:[%s1 + $0xc] sm:$0xf]
      %v436 = vld [vmem:[%s1 + $0x10] sm:$0xf]
      %v437 = vld [vmem:[%s1 + $0x14] sm:$0xf]
      %v438 = vld [vmem:[%s1 + $0x18] sm:$0xf]
      %v439 = vld [vmem:[%s1 + $0x1c] sm:$0xf]
      %v440 = vld [vmem:[%s1 + $0x20] sm:$0xf]
      %v441 = vld [vmem:[%s1 + $0x24] sm:$0xf]
      %v442 = vld [vmem:[%s1 + $0x28] sm:$0xf]
      %v443 = vld [vmem:[%s1 + $0x2c] sm:$0xf]
      %v444 = vld [vmem:[%s1 + $0x30] sm:$0xf]
      %v445 = vld [vmem:[%s1 + $0x34] sm:$0xf]
      %v446 = vld [vmem:[%s1 + $0x38] sm:$0xf]
      %v447 = vld [vmem:[%s1 + $0x3c] sm:$0xf]
      %v448 = vld [vmem:[%s1 + $0x40] sm:$0xf]
      %v449 = vld [vmem:[%s1 + $0x44] sm:$0xf]
      %v450 = vld [vmem:[%s1 + $0x48] sm:$0xf]
      %v451 = vld [vmem:[%s1 + $0x4c] sm:$0xf]
      %v452 = vld [vmem:[%s1 + $0x50] sm:$0xf]
      %v453 = vld [vmem:[%s1 + $0x54] sm:$0xf]
      %v454 = vld [vmem:[%s1 + $0x58] sm:$0xf]
      %v455 = vld [vmem:[%s1 + $0x5c] sm:$0xf]
      %v456 = vld [vmem:[%s1 + $0x60] sm:$0xf]
      %v457 = vld [vmem:[%s1 + $0x64] sm:$0xf]
      %v458 = vld [vmem:[%s1 + $0x68] sm:$0xf]
      %v459 = vld [vmem:[%s1 + $0x6c] sm:$0xf]
      %v460 = vld [vmem:[%s1 + $0x70] sm:$0xf]
      %v461 = vld [vmem:[%s1 + $0x74] sm:$0xf]
      %v462 = vld [vmem:[%s1 + $0x78] sm:$0xf]
      %v463 = vld [vmem:[%s1 + $0x7c] sm:$0xf]
      %v464 = vld [vmem:[%s1 + $0x80] sm:$0xf]
      %v465 = vld [vmem:[%s1 + $0x84] sm:$0xf]
      %v466 = vld [vmem:[%s1 + $0x88] sm:$0xf]
      %v467 = vld [vmem:[%s1 + $0x8c] sm:$0xf]
      %v468 = vld [vmem:[%s1 + $0x90] sm:$0xf]
      %v469 = vld [vmem:[%s1 + $0x94] sm:$0xf]
      %v470 = vld [vmem:[%s1 + $0x98] sm:$0xf]
      %v471 = vld [vmem:[%s1 + $0x9c] sm:$0xf]
      %v472 = vld [vmem:[%s1 + $0xa0] sm:$0xf]
      %v473 = vld [vmem:[%s1 + $0xa4] sm:$0xf]
      %v474 = vld [vmem:[%s1 + $0xa8] sm:$0xf]
      %v475 = vld [vmem:[%s1 + $0xac] sm:$0xf]
      %v476 = vld [vmem:[%s1 + $0xb0] sm:$0xf]
      %v477 = vld [vmem:[%s1 + $0xb4] sm:$0xf]
      %v478 = vld [vmem:[%s1 + $0xb8] sm:$0xf]
      %v479 = vld [vmem:[%s1 + $0xbc] sm:$0xf]
      %v480 = vld [vmem:[%s1 + $0xc0] sm:$0xf]
      %v481 = vld [vmem:[%s1 + $0xc4] sm:$0xf]
      %v482 = vld [vmem:[%s1 + $0xc8] sm:$0xf]
      %v483 = vld [vmem:[%s1 + $0xcc] sm:$0xf]
      %v484 = vld [vmem:[%s1 + $0xd0] sm:$0xf]
      %v485 = vld [vmem:[%s1 + $0xd4] sm:$0xf]
      %v486 = vld [vmem:[%s1 + $0xd8] sm:$0xf]
      %v487 = vld [vmem:[%s1 + $0xdc] sm:$0xf]
      %v488 = vld [vmem:[%s1 + $0xe0] sm:$0xf]
      %v489 = vld [vmem:[%s1 + $0xe4] sm:$0xf]
      %v490 = vld [vmem:[%s1 + $0xe8] sm:$0xf]
      %v491 = vld [vmem:[%s1 + $0xec] sm:$0xf]
      %v492 = vld [vmem:[%s1 + $0xf0] sm:$0xf]
      %v493 = vld [vmem:[%s1 + $0xf4] sm:$0xf]
      %v494 = vld [vmem:[%s1 + $0xf8] sm:$0xf]
      %v495 = vld [vmem:[%s1 + $0xfc] sm:$0xf]
      %v560 = vunpack.c.l.b16 %v432
      %v561 = vunpack.c.l.b16 %v433
      %v562 = vunpack.c.l.b16 %v434
      %v563 = vunpack.c.l.b16 %v435
      %v564 = vunpack.c.l.b16 %v436
      %v565 = vunpack.c.l.b16 %v437
      %v566 = vunpack.c.l.b16 %v438
      %v567 = vunpack.c.l.b16 %v439
      %v568 = vunpack.c.l.b16 %v440
      %v569 = vunpack.c.l.b16 %v441
      %v570 = vunpack.c.l.b16 %v442
      %v571 = vunpack.c.l.b16 %v443
      %v572 = vunpack.c.l.b16 %v444
      %v573 = vunpack.c.l.b16 %v445
      %v574 = vunpack.c.l.b16 %v446
      %v575 = vunpack.c.l.b16 %v447
      %v576 = vunpack.c.l.b16 %v448
      %v577 = vunpack.c.l.b16 %v449
      %v578 = vunpack.c.l.b16 %v450
      %v579 = vunpack.c.l.b16 %v451
      %v580 = vunpack.c.l.b16 %v452
      %v581 = vunpack.c.l.b16 %v453
      %v582 = vunpack.c.l.b16 %v454
      %v583 = vunpack.c.l.b16 %v455
      %v584 = vunpack.c.l.b16 %v456
      %v585 = vunpack.c.l.b16 %v457
      %v586 = vunpack.c.l.b16 %v458
      %v587 = vunpack.c.l.b16 %v459
      %v588 = vunpack.c.l.b16 %v460
      %v589 = vunpack.c.l.b16 %v461
      %v590 = vunpack.c.l.b16 %v462
      %v591 = vunpack.c.l.b16 %v463
      %v592 = vunpack.c.l.b16 %v464
      %v593 = vunpack.c.l.b16 %v465
      %v594 = vunpack.c.l.b16 %v466
      %v595 = vunpack.c.l.b16 %v467
      %v596 = vunpack.c.l.b16 %v468
      %v597 = vunpack.c.l.b16 %v469
      %v598 = vunpack.c.l.b16 %v470
      %v599 = vunpack.c.l.b16 %v471
      %v600 = vunpack.c.l.b16 %v472
      %v601 = vunpack.c.l.b16 %v473
      %v602 = vunpack.c.l.b16 %v474
      %v603 = vunpack.c.l.b16 %v475
      %v604 = vunpack.c.l.b16 %v476
      %v605 = vunpack.c.l.b16 %v477
      %v606 = vunpack.c.l.b16 %v478
      %v607 = vunpack.c.l.b16 %v479
      %v608 = vunpack.c.l.b16 %v480
      %v609 = vunpack.c.l.b16 %v481
      %v610 = vunpack.c.l.b16 %v482
      %v611 = vunpack.c.l.b16 %v483
      %v612 = vunpack.c.l.b16 %v484
      %v613 = vunpack.c.l.b16 %v485
      %v614 = vunpack.c.l.b16 %v486
      %v615 = vunpack.c.l.b16 %v487
      %v616 = vunpack.c.l.b16 %v488
      %v617 = vunpack.c.l.b16 %v489
      %v618 = vunpack.c.l.b16 %v490
      %v619 = vunpack.c.l.b16 %v491
      %v620 = vunpack.c.l.b16 %v492
      %v621 = vunpack.c.l.b16 %v493
      %v622 = vunpack.c.l.b16 %v494
      %v623 = vunpack.c.l.b16 %v495
      %v624 = vpack.c.b16 %v561, %v560
      %v625 = vpack.c.b16 %v563, %v562
      %v626 = vpack.c.b16 %v565, %v564
      %v627 = vpack.c.b16 %v567, %v566
      %v628 = vpack.c.b16 %v569, %v568
      %v629 = vpack.c.b16 %v571, %v570
      %v630 = vpack.c.b16 %v573, %v572
      %v631 = vpack.c.b16 %v575, %v574
      %v632 = vpack.c.b16 %v577, %v576
      %v633 = vpack.c.b16 %v579, %v578
      %v634 = vpack.c.b16 %v581, %v580
      %v635 = vpack.c.b16 %v583, %v582
      %v636 = vpack.c.b16 %v585, %v584
      %v637 = vpack.c.b16 %v587, %v586
      %v638 = vpack.c.b16 %v589, %v588
      %v639 = vpack.c.b16 %v591, %v590
      %v640 = vpack.c.b16 %v593, %v592
      %v641 = vpack.c.b16 %v595, %v594
      %v642 = vpack.c.b16 %v597, %v596
      %v643 = vpack.c.b16 %v599, %v598
      %v644 = vpack.c.b16 %v601, %v600
      %v645 = vpack.c.b16 %v603, %v602
      %v646 = vpack.c.b16 %v605, %v604
      %v647 = vpack.c.b16 %v607, %v606
      %v648 = vpack.c.b16 %v609, %v608
      %v649 = vpack.c.b16 %v611, %v610
      %v650 = vpack.c.b16 %v613, %v612
      %v651 = vpack.c.b16 %v615, %v614
      %v652 = vpack.c.b16 %v617, %v616
      %v653 = vpack.c.b16 %v619, %v618
      %v654 = vpack.c.b16 %v621, %v620
      %v655 = vpack.c.b16 %v623, %v622
      %688 = vmatprep.subr.bf16.mxu0 0
      %689 = vmatpush1.bf16.msra.mxu0 %v624
      %690 = vmatprep.subr.bf16.mxu0 0
      %691 = vmatpush1.bf16.msra.mxu0 %v625
      %692 = vmatprep.subr.bf16.mxu0 0
      %693 = vmatpush1.bf16.msra.mxu0 %v626
      %694 = vmatprep.subr.bf16.mxu0 0
      %695 = vmatpush1.bf16.msra.mxu0 %v627
      %696 = vmatprep.subr.bf16.mxu0 0
      %697 = vmatpush1.bf16.msra.mxu0 %v628
      %698 = vmatprep.subr.bf16.mxu0 0
      %699 = vmatpush1.bf16.msra.mxu0 %v629
      %700 = vmatprep.subr.bf16.mxu0 0
      %701 = vmatpush1.bf16.msra.mxu0 %v630
      %702 = vmatprep.subr.bf16.mxu0 0
      %703 = vmatpush1.bf16.msra.mxu0 %v631
      %704 = vmatprep.subr.bf16.mxu0 0
      %705 = vmatpush1.bf16.msra.mxu0 %v632
      %706 = vmatprep.subr.bf16.mxu0 0
      %707 = vmatpush1.bf16.msra.mxu0 %v633
      %708 = vmatprep.subr.bf16.mxu0 0
      %709 = vmatpush1.bf16.msra.mxu0 %v634
      %710 = vmatprep.subr.bf16.mxu0 0
      %711 = vmatpush1.bf16.msra.mxu0 %v635
      %712 = vmatprep.subr.bf16.mxu0 0
      %713 = vmatpush1.bf16.msra.mxu0 %v636
      %714 = vmatprep.subr.bf16.mxu0 0
      %715 = vmatpush1.bf16.msra.mxu0 %v637
      %716 = vmatprep.subr.bf16.mxu0 0
      %717 = vmatpush1.bf16.msra.mxu0 %v638
      %718 = vmatprep.subr.bf16.mxu0 0
      %719 = vmatpush1.bf16.msra.mxu0 %v639
      %720 = vmatprep.mubr.bf16.mxu0 %v425
      %721 = vmatmul.mubr.bf16.gmra.mrb[0].mxu0 %v424
      %v722 = vpop.f32.mrb[0].mxu0
      %v723 = vadd.f32 0.0, %v722
      %v724 = vpop.f32.mrb[0].mxu0
      %v725 = vpop.f32.mrb[0].mxu0
      %v726 = vadd.f32 0.0, %v725
      %v727 = vpop.f32.mrb[0].mxu0
      %728 = vmatprep.mubr.bf16.mxu0 %v429
      %729 = vmatmul.mubr.bf16.gmra.mrb[0].mxu0 %v428
      %v730 = vpop.f32.mrb[0].mxu0
      %v731 = vadd.f32 0.0, %v730
      %v732 = vpop.f32.mrb[0].mxu0
      %v733 = vpop.f32.mrb[0].mxu0
      %v734 = vadd.f32 0.0, %v733
      %v735 = vpop.f32.mrb[0].mxu0
      %736 = vdwg.mxu0
      %737 = vmatprep.subr.bf16.mxu0 0
      %738 = vmatpush1.bf16.msra.mxu0 %v640
      %739 = vmatprep.subr.bf16.mxu0 0
      %740 = vmatpush1.bf16.msra.mxu0 %v641
      %741 = vmatprep.subr.bf16.mxu0 0
      %742 = vmatpush1.bf16.msra.mxu0 %v642
      %743 = vmatprep.subr.bf16.mxu0 0
      %744 = vmatpush1.bf16.msra.mxu0 %v643
      %745 = vmatprep.subr.bf16.mxu0 0
      %746 = vmatpush1.bf16.msra.mxu0 %v644
      %747 = vmatprep.subr.bf16.mxu0 0
      %748 = vmatpush1.bf16.msra.mxu0 %v645
      %749 = vmatprep.subr.bf16.mxu0 0
      %750 = vmatpush1.bf16.msra.mxu0 %v646
      %751 = vmatprep.subr.bf16.mxu0 0
      %752 = vmatpush1.bf16.msra.mxu0 %v647
      %753 = vmatprep.subr.bf16.mxu0 0
      %754 = vmatpush1.bf16.msra.mxu0 %v648
      %755 = vmatprep.subr.bf16.mxu0 0
      %756 = vmatpush1.bf16.msra.mxu0 %v649
      %757 = vmatprep.subr.bf16.mxu0 0
      %758 = vmatpush1.bf16.msra.mxu0 %v650
      %759 = vmatprep.subr.bf16.mxu0 0
      %760 = vmatpush1.bf16.msra.mxu0 %v651
      %761 = vmatprep.subr.bf16.mxu0 0
      %762 = vmatpush1.bf16.msra.mxu0 %v652
      %763 = vmatprep.subr.bf16.mxu0 0
      %764 = vmatpush1.bf16.msra.mxu0 %v653
      %765 = vmatprep.subr.bf16.mxu0 0
      %766 = vmatpush1.bf16.msra.mxu0 %v654
      %767 = vmatprep.subr.bf16.mxu0 0
      %768 = vmatpush1.bf16.msra.mxu0 %v655
      %769 = vmatprep.mubr.bf16.mxu0 %v427
      %770 = vmatmul.mubr.bf16.gmra.mrb[0].mxu0 %v426
      %v771 = vpop.f32.mrb[0].mxu0
      %v772 = vadd.f32 %v723, %v771
      %v773 = vpop.f32.mrb[0].mxu0
      %v774 = vpop.f32.mrb[0].mxu0
      %v775 = vadd.f32 %v726, %v774
      %v776 = vpop.f32.mrb[0].mxu0
      %777 = vmatprep.mubr.bf16.mxu0 %v431
      %778 = vmatmul.mubr.bf16.gmra.mrb[0].mxu0 %v430
      %v779 = vpop.f32.mrb[0].mxu0
      %v780 = vadd.f32 %v731, %v779
      %v781 = vpop.f32.mrb[0].mxu0
      %v782 = vpop.f32.mrb[0].mxu0
      %v783 = vadd.f32 %v734, %v782
      %v784 = vpop.f32.mrb[0].mxu0
      %785 = vdwg.mxu0
      %vm786 = vcmask 523264
      %v787 = vsel %vm786, %v772, 0.0
      %v788 = vsel %vm786, %v775, 0.0
      %v789 = vadd.f32 %v787, %v788
      %v790 = vsel %vm786, %v780, 0.0
      %v791 = vadd.f32 %v789, %v790
      %v792 = vsel %vm786, %v783, 0.0
      %v793 = vadd.f32 %v791, %v792
      %v794 = vrot.slane %v793, 4
      %v795 = vadd.f32 %v793, %v794
      %v796 = vrot.slane %v795, 2
      %v797 = vadd.f32 %v795, %v796
      %v798 = vrot.slane %v797, 1
      %v799 = vadd.f32 %v797, %v798
      %vm800 = vcmask 516096
      %801 = vst.msk [vmem:[%s271] sm:$0x1] %vm800, %v799
      %v802 = vmul.f32 %v772, %v772
      %v803 = vmul.f32 %v775, %v775
      %v804 = vmul.f32 %v780, %v780
      %v805 = vmul.f32 %v783, %v783
      %v806 = vsel %vm786, %v802, 0.0
      %v807 = vsel %vm786, %v803, 0.0
      %v808 = vadd.f32 %v806, %v807
      %v809 = vsel %vm786, %v804, 0.0
      %v810 = vadd.f32 %v808, %v809
      %v811 = vsel %vm786, %v805, 0.0
      %v812 = vadd.f32 %v810, %v811
      %v813 = vrot.slane %v812, 4
      %v814 = vadd.f32 %v812, %v813
      %v815 = vrot.slane %v814, 2
      %v816 = vadd.f32 %v814, %v815
      %v817 = vrot.slane %v816, 1
      %v818 = vadd.f32 %v816, %v817
      %819 = vst.msk [vmem:[%s274] sm:$0x1] %vm800, %v818
      %v820 = vpack.c.bf16 %v775, %v772
      %v821 = vpack.c.bf16 %v783, %v780
      %v824 = vunpack.c.l.b16 %v820
      %v825 = vunpack.c.h.b16 %v820
      %v826 = vunpack.c.l.b16 %v821
      %v827 = vunpack.c.h.b16 %v821
      %v828 = vpack.c.b16 %v824, %v824
      %v829 = vpack.c.b16 %v825, %v825
      %v830 = vpack.c.b16 %v826, %v826
      %v831 = vpack.c.b16 %v827, %v827
      %vm836 = vcmask 519168
      %837 = vst.msk [vmem:[%s267] sm:$0xf] %vm836, %v828
      %838 = vst.msk [vmem:[%s267 + $0x4] sm:$0xf] %vm836, %v829
      %839 = vst.msk [vmem:[%s267 + $0x8] sm:$0xf] %vm836, %v830
      %840 = vst.msk [vmem:[%s267 + $0xc] sm:$0xf] %vm836, %v831
      %s841 = smul.u32 4, %s18
      %p842 = scmp.lt.s32.totalorder %s841, 15
      %s843 = scalar_select %p842, %s841, 15
      %s844 = smul.addr %s843, 4
      %s845 = scalar_lea.vmem %s4, %s844
      %p846 = scmp.lt.s32.totalorder %s18, 3
      %s847 = scalar_select %p846, %s18, 3
      %s848 = scalar_lea.vmem %s5, %s847
      %p849 = scmp.lt.s32.totalorder %s18, 3
      %s850 = scalar_select %p849, %s18, 3
      %s851 = scalar_lea.vmem %s6, %s850
      // Predicated region
      $region37: #{discriminator_forward.6} parent=35 // pred_check
        %p852 = pneg %p125
      $region38: #{discriminator_forward.6} parent=35 // pred_check_branch
        %854 = sbr.rel (%p852) target = $region40
      $region39: #{discriminator_forward.6} parent=35 // pred_region
        %s855 = smul.u32 4, %s18
      $region40: #{discriminator_forward.6} parent=35 // pred_fallthru
        _
      // Predicated region
      $region41: #{discriminator_forward.6} parent=35 // pred_check
        %p856 = pneg %p151
      $region42: #{discriminator_forward.6} parent=35 // pred_check_branch
        %858 = sbr.rel (%p856) target = $region44
      $region43: #{discriminator_forward.6} parent=35 // pred_region
        _
      $region44: #{discriminator_forward.6} parent=35 // pred_fallthru
        _
      // Predicated region
      $region45: #{discriminator_forward.6} parent=35 // pred_check
        %p859 = pneg %p177
      $region46: #{discriminator_forward.6} parent=35 // pred_check_branch
        %861 = sbr.rel (%p859) target = $region48
      $region47: #{discriminator_forward.6} parent=35 // pred_region
        _
      $region48: #{discriminator_forward.6} parent=35 // pred_fallthru
        _
    $region36: #{discriminator_forward.6} parent=5 // pred_fallthru
      _
    %p862 = scmp.le.s32.totalorder 2, %s13
    // Predicated region
    $region49: #{discriminator_forward.6} parent=5 // pred_check
      %p863 = pneg %p862
    $region50: #{discriminator_forward.6} parent=5 // pred_check_branch
      %865 = sbr.rel (%p863) target = $region52
    $region51: #{discriminator_forward.6} parent=5 // pred_region
      %s866 = ssub.s32 %s13, 2
      // Predicated region
      $region53: #{discriminator_forward.6} parent=51 // pred_check
        %p867 = pneg %p131
      $region54: #{discriminator_forward.6} parent=51 // pred_check_branch
        %869 = sbr.rel (%p867) target = $region56
      $region55: #{discriminator_forward.6} parent=51 // pred_region
        %s870 = smul.u32 4, %s19
        %p871 = scmp.lt.s32.totalorder %s870, 15
        %s872 = scalar_select %p871, %s870, 15
        %s873 = smul.addr %s872, 4
        %s874 = scalar_lea.vmem %s4, %s873
      $region56: #{discriminator_forward.6} parent=51 // pred_fallthru
        _
      // Predicated region
      $region57: #{discriminator_forward.6} parent=51 // pred_check
        %p875 = pneg %p157
      $region58: #{discriminator_forward.6} parent=51 // pred_check_branch
        %877 = sbr.rel (%p875) target = $region60
      $region59: #{discriminator_forward.6} parent=51 // pred_region
        %p878 = scmp.lt.s32.totalorder %s19, 3
        %s879 = scalar_select %p878, %s19, 3
        %s880 = scalar_lea.vmem %s5, %s879
      $region60: #{discriminator_forward.6} parent=51 // pred_fallthru
        _
      // Predicated region
      $region61: #{discriminator_forward.6} parent=51 // pred_check
        %p881 = pneg %p183
      $region62: #{discriminator_forward.6} parent=51 // pred_check_branch
        %883 = sbr.rel (%p881) target = $region64
      $region63: #{discriminator_forward.6} parent=51 // pred_region
        %p884 = scmp.lt.s32.totalorder %s19, 3
        %s885 = scalar_select %p884, %s19, 3
        %s886 = scalar_lea.vmem %s6, %s885
      $region64: #{discriminator_forward.6} parent=51 // pred_fallthru
        _
    $region52: #{discriminator_forward.6} parent=5 // pred_fallthru
      _
  $region6: #{discriminator_forward.6} parent=0 // loop_footer
    %s17 = sadd.s32 1, %s13
  $region7: #{discriminator_forward.6} parent=0 // loop_footer_branch
    %12 = sbr.rel target = $region3
  $region8: #{discriminator_forward.6} parent=0 // loop_exit
    _

// kernel: tile.33
$region0: #{tile.33}
  #allocation0 [shape = 's32[1]{0}', space=sflag, size = 0x4, scoped, tag = 'scoped memory for tile.33']
  %s0 = inlined_call_operand.vmem [shape: f32[64], index: 0, kind: input, shape index: {}]
  %s1 = inlined_call_operand.vmem [shape: f32[16,64], index: 1, kind: output, shape index: {}]
  // Predicated region
  $region2: #{tile.33} parent=0 // pred_check
    _
  $region3: #{tile.33} parent=0 // pred_check_branch
    %3 = sbr.rel (0) target = $region5
  $region4: #{tile.33} parent=0 // pred_region
    _
  $region5: #{tile.33} parent=0 // pred_fallthru
    _
  %v4 = vld [vmem:[%s0] ss:$0 sm:$0xff]
  %5 = vst [vmem:[%s1] sm:$0xff] %v4
  %s6 = scalar_lea.vmem %s1, 8
  %7 = vst [vmem:[%s6] sm:$0xff] %v4

// kernel: tile.34
$region0: #{tile.34}
  %s0 = inlined_call_operand.vmem [shape: f32[16,64], index: 0, kind: input, shape index: {}]
  %s1 = inlined_call_operand.vmem [shape: f32[1,1024], index: 1, kind: output, shape index: {}]
  $region1: #{tile.34} parent=0
    #allocation0 [shape = 'u8[32768]{0}', space=vmem, size = 0x8000, scoped, tag = 'scoped mem for output reshape']
    %v2 = vld [vmem:[%s0] ss:$2 sm:$0xff]
    %vm3 = vcmask 523264
    %4 = vst.msk [vmem:[#allocation0] ss:$8 sm:$0xf] %vm3, %v2
    %5 = vst.msk [vmem:[#allocation0] ss:$8 sm:$0xf0] %vm3, %v2
    %s6 = scalar_lea.vmem %s0, 1
    %v7 = vld [vmem:[%s6] ss:$2 sm:$0xff]
    %8 = vrot.lane.b32.xlu0 %v7, 64
    %v9 = vpop.permute.xlu0 %8
    %vm10 = vcmask 1048064
    %11 = vst.msk [vmem:[#allocation0] ss:$8 sm:$0xf] %vm10, %v9
    %12 = vst.msk [vmem:[#allocation0] ss:$8 sm:$0xf0] %vm10, %v9
    %s14 = sshllo.u32 0, 1
    %v16 = vld [vmem:[#allocation0] sm:%s14]
    %s17 = sshllo.u32 0, 1
    %18 = vst [vmem:[%s1] sm:%s17] %v16
    %s19 = scalar_lea.vmem [#allocation0], 8
    %v20 = vld [vmem:[%s19] sm:%s14]
    %s21 = sshllo.u32 0, 1
    %s22 = scalar_lea.vmem %s1, 1
    %23 = vst [vmem:[%s22] sm:%s21] %v20
    %s24 = scalar_lea.vmem [#allocation0], 16
    %v25 = vld [vmem:[%s24] sm:%s14]
    %s26 = sshllo.u32 0, 1
    %s27 = smul.addr 1, 2
    %s28 = scalar_lea.vmem %s1, %s27
    %29 = vst [vmem:[%s28] sm:%s26] %v25
    %s30 = scalar_lea.vmem [#allocation0], 24
    %v31 = vld [vmem:[%s30] sm:%s14]
    %s32 = sshllo.u32 0, 1
    %s33 = smul.addr 1, 3
    %s34 = scalar_lea.vmem %s1, %s33
    %35 = vst [vmem:[%s34] sm:%s32] %v31
    %s36 = scalar_lea.vmem [#allocation0], 32
    %v37 = vld [vmem:[%s36] sm:%s14]
    %s38 = sshllo.u32 0, 1
    %s39 = smul.addr 1, 4
    %s40 = scalar_lea.vmem %s1, %s39
    %41 = vst [vmem:[%s40] sm:%s38] %v37
    %s42 = scalar_lea.vmem [#allocation0], 40
    %v43 = vld [vmem:[%s42] sm:%s14]
    %s44 = sshllo.u32 0, 1
    %s45 = smul.addr 1, 5
    %s46 = scalar_lea.vmem %s1, %s45
    %47 = vst [vmem:[%s46] sm:%s44] %v43
    %s48 = scalar_lea.vmem [#allocation0], 48
    %v49 = vld [vmem:[%s48] sm:%s14]
    %s50 = sshllo.u32 0, 1
    %s51 = smul.addr 1, 6
    %s52 = scalar_lea.vmem %s1, %s51
    %53 = vst [vmem:[%s52] sm:%s50] %v49
    %s54 = scalar_lea.vmem [#allocation0], 56
    %v55 = vld [vmem:[%s54] sm:%s14]
    %s56 = sshllo.u32 0, 1
    %s57 = smul.addr 1, 7
    %s58 = scalar_lea.vmem %s1, %s57
    %59 = vst [vmem:[%s58] sm:%s56] %v55

// kernel: discriminator_forward.7
$region0: #{discriminator_forward.7}
  #allocation0 [shape = 'u32[]', space=smem, size = 0x4, offset = 0x4, fixed_abs, tag = 'smem constant byte address 0x4 - core index']
  #allocation1 [shape = 'u32[144,128]{1,0:T(1,128)}', space=vmem, size = 0x12000, scoped, tag = 'internal scratch']
  %s0 = inlined_call_operand.vmem [shape: bf16[32,1024], index: 0, kind: input, shape index: {}]
  %s1 = inlined_call_operand.vmem [shape: bf16[1024,128], index: 1, kind: input, shape index: {}]
  %s2 = inlined_call_operand.vmem [shape: f32[1,1024], index: 2, kind: input, shape index: {}]
  %s3 = inlined_call_operand.vmem [shape: f32[1,1024], index: 3, kind: input, shape index: {}]
  %s4 = inlined_call_operand.vmem [shape: bf16[32,128], index: 4, kind: output, shape index: {0}]
  %s5 = inlined_call_operand.vmem [shape: f32[2,1,128], index: 5, kind: output, shape index: {1}]
  %s6 = inlined_call_operand.vmem [shape: f32[2,1,128], index: 6, kind: output, shape index: {2}]
  %7 = xla_tuple %s4, %s5, %s6
  %s8 = sld [smem:[#allocation0]]
  $region65: #{discriminator_forward.7} parent=0
    _
  %s10 = ssub.s32 1, %s8
  %s11 = scalar_select 0, %s10, %s8
  loop: start=0, step=1, limit=4
  $region2: #{discriminator_forward.7} parent=0 // loop_pre_header
    _
  $region3: #{discriminator_forward.7} parent=0 // loop_header
    %s13 = sphi 0, %s17
    %p14 = scmp.ge.s32.totalorder %s13, 4
    %s23 = sphi 0, %s25
    %s26 = sphi 0, %s23
    %s27 = sphi 0, %s26
    %s43 = sphi 0, %s27
    %s47 = sphi 0, %s47
    %s49 = sphi 0, %s47
    %s50 = sphi 0, %s49
    %s64 = sphi 0, %s50
    %s68 = sphi 0, %s68
    %s70 = sphi 0, %s68
    %s71 = sphi 0, %s70
    %s85 = sphi 0, %s71
    %s89 = sphi 0, %s89
    %s91 = sphi 0, %s89
    %s92 = sphi 0, %s91
    %s106 = sphi 0, %s92
    %s112 = sphi 0, %s114
    %s115 = sphi 0, %s112
    %s116 = sphi 0, %s115
    %s132 = sphi 0, %s116
    %s138 = sphi 0, %s140
    %s141 = sphi 0, %s138
    %s142 = sphi 0, %s141
    %s158 = sphi 0, %s142
    %s164 = sphi 0, %s166
    %s167 = sphi 0, %s164
    %s168 = sphi 0, %s167
    %s184 = sphi 0, %s168
  $region4: #{discriminator_forward.7} parent=0 // loop_header_branch
    %16 = sbr.rel (%p14) target = $region8
  $region5: #{discriminator_forward.7} parent=0 // loop_body
    %s18 = ssub.s32 %s13, 1
    %s19 = ssub.s32 %s13, 2
    %s20 = sadd.s32 %s13, 1
    %s21 = ssub.s32 %s13, %s20
    %p22 = scmp.eq.s32.totalorder %s21, 0
    %s24 = sadd.s32 %s23, 1
    %s25 = scalar_select %p22, %s23, %s24
    %p28 = pneg %p22
    %p29 = scmp.eq.s32.totalorder %s13, 1
    %p30 = por %p28, %p29
    %p31 = scmp.ne.s32.totalorder %s23, %s26
    %p32 = scmp.eq.s32.totalorder %s13, 0
    %p33 = por %p31, %p32
    %p34 = scmp.ne.s32.totalorder %s23, %s26
    %p35 = scmp.eq.s32.totalorder %s18, 1
    %p36 = por %p34, %p35
    %p37 = scmp.ne.s32.totalorder %s26, %s27
    %p38 = scmp.eq.s32.totalorder %s18, 0
    %p39 = por %p37, %p38
    %p40 = scmp.ne.s32.totalorder %s26, %s27
    %p41 = scmp.eq.s32.totalorder %s19, 1
    %p42 = por %p40, %p41
    %p44 = scmp.ne.s32.totalorder %s27, %s43
    %p45 = scmp.eq.s32.totalorder %s19, 0
    %p46 = por %p44, %p45
    %s48 = sadd.s32 %s47, 1
    %p51 = scmp.eq.s32.totalorder %s13, 1
    %p52 = scmp.ne.s32.totalorder %s47, %s49
    %p53 = scmp.eq.s32.totalorder %s13, 0
    %p54 = por %p52, %p53
    %p55 = scmp.ne.s32.totalorder %s47, %s49
    %p56 = scmp.eq.s32.totalorder %s18, 1
    %p57 = por %p55, %p56
    %p58 = scmp.ne.s32.totalorder %s49, %s50
    %p59 = scmp.eq.s32.totalorder %s18, 0
    %p60 = por %p58, %p59
    %p61 = scmp.ne.s32.totalorder %s49, %s50
    %p62 = scmp.eq.s32.totalorder %s19, 1
    %p63 = por %p61, %p62
    %p65 = scmp.ne.s32.totalorder %s50, %s64
    %p66 = scmp.eq.s32.totalorder %s19, 0
    %p67 = por %p65, %p66
    %s69 = sadd.s32 %s68, 1
    %p72 = scmp.eq.s32.totalorder %s13, 1
    %p73 = scmp.ne.s32.totalorder %s68, %s70
    %p74 = scmp.eq.s32.totalorder %s13, 0
    %p75 = por %p73, %p74
    %p76 = scmp.ne.s32.totalorder %s68, %s70
    %p77 = scmp.eq.s32.totalorder %s18, 1
    %p78 = por %p76, %p77
    %p79 = scmp.ne.s32.totalorder %s70, %s71
    %p80 = scmp.eq.s32.totalorder %s18, 0
    %p81 = por %p79, %p80
    %p82 = scmp.ne.s32.totalorder %s70, %s71
    %p83 = scmp.eq.s32.totalorder %s19, 1
    %p84 = por %p82, %p83
    %p86 = scmp.ne.s32.totalorder %s71, %s85
    %p87 = scmp.eq.s32.totalorder %s19, 0
    %p88 = por %p86, %p87
    %s90 = sadd.s32 %s89, 1
    %p93 = scmp.eq.s32.totalorder %s13, 1
    %p94 = scmp.ne.s32.totalorder %s89, %s91
    %p95 = scmp.eq.s32.totalorder %s13, 0
    %p96 = por %p94, %p95
    %p97 = scmp.ne.s32.totalorder %s89, %s91
    %p98 = scmp.eq.s32.totalorder %s18, 1
    %p99 = por %p97, %p98
    %p100 = scmp.ne.s32.totalorder %s91, %s92
    %p101 = scmp.eq.s32.totalorder %s18, 0
    %p102 = por %p100, %p101
    %p103 = scmp.ne.s32.totalorder %s91, %s92
    %p104 = scmp.eq.s32.totalorder %s19, 1
    %p105 = por %p103, %p104
    %p107 = scmp.ne.s32.totalorder %s92, %s106
    %p108 = scmp.eq.s32.totalorder %s19, 0
    %p109 = por %p107, %p108
    %s110 = ssub.s32 %s13, %s20
    %p111 = scmp.eq.s32.totalorder %s110, 0
    %s113 = sadd.s32 %s112, 1
    %s114 = scalar_select %p111, %s112, %s113
    %p117 = pneg %p111
    %p118 = scmp.eq.s32.totalorder %s13, 1
    %p119 = por %p117, %p118
    %p120 = scmp.ne.s32.totalorder %s112, %s115
    %p121 = scmp.eq.s32.totalorder %s13, 0
    %p122 = por %p120, %p121
    %p123 = scmp.ne.s32.totalorder %s112, %s115
    %p124 = scmp.eq.s32.totalorder %s18, 1
    %p125 = por %p123, %p124
    %p126 = scmp.ne.s32.totalorder %s115, %s116
    %p127 = scmp.eq.s32.totalorder %s18, 0
    %p128 = por %p126, %p127
    %p129 = scmp.ne.s32.totalorder %s115, %s116
    %p130 = scmp.eq.s32.totalorder %s19, 1
    %p131 = por %p129, %p130
    %p133 = scmp.ne.s32.totalorder %s116, %s132
    %p134 = scmp.eq.s32.totalorder %s19, 0
    %p135 = por %p133, %p134
    %s136 = ssub.s32 %s13, %s20
    %p137 = scmp.eq.s32.totalorder %s136, 0
    %s139 = sadd.s32 %s138, 1
    %s140 = scalar_select %p137, %s138, %s139
    %p143 = pneg %p137
    %p144 = scmp.eq.s32.totalorder %s13, 1
    %p145 = por %p143, %p144
    %p146 = scmp.ne.s32.totalorder %s138, %s141
    %p147 = scmp.eq.s32.totalorder %s13, 0
    %p148 = por %p146, %p147
    %p149 = scmp.ne.s32.totalorder %s138, %s141
    %p150 = scmp.eq.s32.totalorder %s18, 1
    %p151 = por %p149, %p150
    %p152 = scmp.ne.s32.totalorder %s141, %s142
    %p153 = scmp.eq.s32.totalorder %s18, 0
    %p154 = por %p152, %p153
    %p155 = scmp.ne.s32.totalorder %s141, %s142
    %p156 = scmp.eq.s32.totalorder %s19, 1
    %p157 = por %p155, %p156
    %p159 = scmp.ne.s32.totalorder %s142, %s158
    %p160 = scmp.eq.s32.totalorder %s19, 0
    %p161 = por %p159, %p160
    %s162 = ssub.s32 %s13, %s20
    %p163 = scmp.eq.s32.totalorder %s162, 0
    %s165 = sadd.s32 %s164, 1
    %s166 = scalar_select %p163, %s164, %s165
    %p169 = pneg %p163
    %p170 = scmp.eq.s32.totalorder %s13, 1
    %p171 = por %p169, %p170
    %p172 = scmp.ne.s32.totalorder %s164, %s167
    %p173 = scmp.eq.s32.totalorder %s13, 0
    %p174 = por %p172, %p173
    %p175 = scmp.ne.s32.totalorder %s164, %s167
    %p176 = scmp.eq.s32.totalorder %s18, 1
    %p177 = por %p175, %p176
    %p178 = scmp.ne.s32.totalorder %s167, %s168
    %p179 = scmp.eq.s32.totalorder %s18, 0
    %p180 = por %p178, %p179
    %p181 = scmp.ne.s32.totalorder %s167, %s168
    %p182 = scmp.eq.s32.totalorder %s19, 1
    %p183 = por %p181, %p182
    %p185 = scmp.ne.s32.totalorder %s168, %s184
    %p186 = scmp.eq.s32.totalorder %s19, 0
    %p187 = por %p185, %p186
    %p188 = scmp.le.s32.totalorder 1, %s13
    %p189 = scmp.lt.s32.totalorder %s13, 3
    %p190 = pnand %p188, %p189
    %p191 = pneg %p190
    // Predicated region
    $region9: #{discriminator_forward.7} parent=5 // pred_check
      _
    $region10: #{discriminator_forward.7} parent=5 // pred_check_branch
      %193 = sbr.rel (%p190) target = $region12
    $region11: #{discriminator_forward.7} parent=5 // pred_region
      %s194 = ssub.s32 %s13, 1
      // Predicated region
      $region13: #{discriminator_forward.7} parent=11 // pred_check
        %p195 = pneg %p60
      $region14: #{discriminator_forward.7} parent=11 // pred_check_branch
        %197 = sbr.rel (%p195) target = $region16
      $region15: #{discriminator_forward.7} parent=11 // pred_region
        _
      $region16: #{discriminator_forward.7} parent=11 // pred_fallthru
        _
      // Predicated region
      $region17: #{discriminator_forward.7} parent=11 // pred_check
        %p198 = pneg %p81
      $region18: #{discriminator_forward.7} parent=11 // pred_check_branch
        %200 = sbr.rel (%p198) target = $region20
      $region19: #{discriminator_forward.7} parent=11 // pred_region
        _
      $region20: #{discriminator_forward.7} parent=11 // pred_fallthru
        _
      // Predicated region
      $region21: #{discriminator_forward.7} parent=11 // pred_check
        %p201 = pneg %p102
      $region22: #{discriminator_forward.7} parent=11 // pred_check_branch
        %203 = sbr.rel (%p201) target = $region24
      $region23: #{discriminator_forward.7} parent=11 // pred_region
        _
      $region24: #{discriminator_forward.7} parent=11 // pred_fallthru
        _
    $region12: #{discriminator_forward.7} parent=5 // pred_fallthru
      _
    %p204 = scmp.lt.s32.totalorder %s13, 2
    // Predicated region
    $region25: #{discriminator_forward.7} parent=5 // pred_check
      %p205 = pneg %p204
    $region26: #{discriminator_forward.7} parent=5 // pred_check_branch
      %207 = sbr.rel (%p205) target = $region28
    $region27: #{discriminator_forward.7} parent=5 // pred_region
      // Predicated region
      $region29: #{discriminator_forward.7} parent=27 // pred_check
        %p208 = pneg %p33
      $region30: #{discriminator_forward.7} parent=27 // pred_check_branch
        %210 = sbr.rel (%p208) target = $region32
      $region31: #{discriminator_forward.7} parent=27 // pred_region
        %s211 = smul.u32 2, %s13
        %p212 = scmp.lt.s32.totalorder %s211, 3
        %s213 = scalar_select %p212, %s211, 3
        %s214 = smul.addr %s213, 8
        %s215 = smul.addr %s214, 4
        %s216 = scalar_lea.vmem %s0, %s215
        %s217 = smul.u32 2, %s13
      $region32: #{discriminator_forward.7} parent=27 // pred_fallthru
        _
    $region28: #{discriminator_forward.7} parent=5 // pred_fallthru
      _
    %p218 = scmp.le.s32.totalorder 1, %s13
    %p219 = scmp.lt.s32.totalorder %s13, 3
    %p220 = pnand %p218, %p219
    %p221 = pneg %p220
    // Predicated region
    $region33: #{discriminator_forward.7} parent=5 // pred_check
      _
    $region34: #{discriminator_forward.7} parent=5 // pred_check_branch
      %223 = sbr.rel (%p220) target = $region36
    $region35: #{discriminator_forward.7} parent=5 // pred_region
      %s224 = ssub.s32 %s13, 1
      %s225 = smul.u32 2, %s18
      %p226 = scmp.lt.s32.totalorder %s225, 3
      %s227 = scalar_select %p226, %s225, 3
      %s228 = smul.addr %s227, 8
      %s229 = smul.addr %s228, 4
      %s230 = scalar_lea.vmem %s0, %s229
      %p231 = pneg %p39
      %p232 = pneg %p36
      %p233 = pneg %p60
      %p234 = pneg %p57
      %p235 = pneg %p81
      %p236 = pneg %p78
      %p237 = pneg %p102
      %p238 = pneg %p99
      %p239 = pneg %p128
      %p240 = pneg %p125
      %s241 = smul.u32 2, %s18
      %p242 = scmp.lt.s32.totalorder %s241, 3
      %s243 = scalar_select %p242, %s241, 3
      %s244 = smul.addr %s243, 4
      %s245 = scalar_lea.vmem %s4, %s244
      %p246 = pneg %p154
      %p247 = pneg %p151
      %p248 = scmp.lt.s32.totalorder %s18, 1
      %s249 = scalar_select %p248, %s18, 1
      %s250 = scalar_lea.vmem %s5, %s249
      %p251 = pneg %p180
      %p252 = pneg %p177
      %p253 = scmp.lt.s32.totalorder %s18, 1
      %s254 = scalar_select %p253, %s18, 1
      %s255 = scalar_lea.vmem %s6, %s254
      %s256 = smul.u32 2, %s18
      %p257 = scmp.lt.s32.totalorder %s256, 3
      %s258 = scalar_select %p257, %s256, 3
      %s259 = smul.addr %s258, 8
      %s260 = smul.addr %s259, 4
      %s261 = scalar_lea.vmem %s0, %s260
      %s262 = smul.u32 2, %s18
      %s263 = smul.u32 2, %s18
      %p264 = scmp.lt.s32.totalorder %s263, 3
      %s265 = scalar_select %p264, %s263, 3
      %s266 = smul.addr %s265, 4
      %s267 = scalar_lea.vmem %s4, %s266
      %s268 = smul.u32 2, %s18
      %p269 = scmp.lt.s32.totalorder %s18, 1
      %s270 = scalar_select %p269, %s18, 1
      %s271 = scalar_lea.vmem %s5, %s270
      %p272 = scmp.lt.s32.totalorder %s18, 1
      %s273 = scalar_select %p272, %s18, 1
      %s274 = scalar_lea.vmem %s6, %s273
      %v276 = vld [vmem:[%s261] sm:$0xff]
      %v277 = vld [vmem:[%s261 + $0x8] sm:$0xff]
      %v278 = vld [vmem:[%s261 + $0x10] sm:$0xff]
      %v279 = vld [vmem:[%s261 + $0x18] sm:$0xff]
      %v280 = vld [vmem:[%s261 + $0x20] sm:$0xff]
      %v281 = vld [vmem:[%s261 + $0x28] sm:$0xff]
      %v282 = vld [vmem:[%s261 + $0x30] sm:$0xff]
      %v283 = vld [vmem:[%s261 + $0x38] sm:$0xff]
      %v284 = vunpack.c.l.bf16 %v276
      %v285 = vunpack.c.h.bf16 %v276
      %v286 = vunpack.c.l.bf16 %v277
      %v287 = vunpack.c.h.bf16 %v277
      %v288 = vunpack.c.l.bf16 %v278
      %v289 = vunpack.c.h.bf16 %v278
      %v290 = vunpack.c.l.bf16 %v279
      %v291 = vunpack.c.h.bf16 %v279
      %v292 = vunpack.c.l.bf16 %v280
      %v293 = vunpack.c.h.bf16 %v280
      %v294 = vunpack.c.l.bf16 %v281
      %v295 = vunpack.c.h.bf16 %v281
      %v296 = vunpack.c.l.bf16 %v282
      %v297 = vunpack.c.h.bf16 %v282
      %v298 = vunpack.c.l.bf16 %v283
      %v299 = vunpack.c.h.bf16 %v283
      %v300 = vld [vmem:[%s2] sm:$0xff]
      %v302 = vlaneseq
      %v303 = vshrl.u32 %v302, 7
      %v304 = vsub.s32 0, %v303
      %v305 = vrot.slane %v300, %v304
      %v306 = vlaneseq
      %v307 = vshrl.u32 %v306, 7
      %v308 = vsub.s32 1, %v307
      %v309 = vrot.slane %v300, %v308
      %v310 = vlaneseq
      %v311 = vshrl.u32 %v310, 7
      %v312 = vsub.s32 2, %v311
      %v313 = vrot.slane %v300, %v312
      %v314 = vlaneseq
      %v315 = vshrl.u32 %v314, 7
      %v316 = vsub.s32 3, %v315
      %v317 = vrot.slane %v300, %v316
      %v318 = vlaneseq
      %v319 = vshrl.u32 %v318, 7
      %v320 = vsub.s32 4, %v319
      %v321 = vrot.slane %v300, %v320
      %v322 = vlaneseq
      %v323 = vshrl.u32 %v322, 7
      %v324 = vsub.s32 5, %v323
      %v325 = vrot.slane %v300, %v324
      %v326 = vlaneseq
      %v327 = vshrl.u32 %v326, 7
      %v328 = vsub.s32 6, %v327
      %v329 = vrot.slane %v300, %v328
      %v330 = vlaneseq
      %v331 = vshrl.u32 %v330, 7
      %v332 = vsub.s32 7, %v331
      %v333 = vrot.slane %v300, %v332
      %v342 = vmul.f32 %v284, %v305
      %v343 = vmul.f32 %v285, %v309
      %v344 = vmul.f32 %v286, %v313
      %v345 = vmul.f32 %v287, %v317
      %v346 = vmul.f32 %v288, %v321
      %v347 = vmul.f32 %v289, %v325
      %v348 = vmul.f32 %v290, %v329
      %v349 = vmul.f32 %v291, %v333
      %v350 = vmul.f32 %v292, %v305
      %v351 = vmul.f32 %v293, %v309
      %v352 = vmul.f32 %v294, %v313
      %v353 = vmul.f32 %v295, %v317
      %v354 = vmul.f32 %v296, %v321
      %v355 = vmul.f32 %v297, %v325
      %v356 = vmul.f32 %v298, %v329
      %v357 = vmul.f32 %v299, %v333
      %v358 = vld [vmem:[%s3] sm:$0xff]
      %v360 = vlaneseq
      %v361 = vshrl.u32 %v360, 7
      %v362 = vsub.s32 0, %v361
      %v363 = vrot.slane %v358, %v362
      %v364 = vlaneseq
      %v365 = vshrl.u32 %v364, 7
      %v366 = vsub.s32 1, %v365
      %v367 = vrot.slane %v358, %v366
      %v368 = vlaneseq
      %v369 = vshrl.u32 %v368, 7
      %v370 = vsub.s32 2, %v369
      %v371 = vrot.slane %v358, %v370
      %v372 = vlaneseq
      %v373 = vshrl.u32 %v372, 7
      %v374 = vsub.s32 3, %v373
      %v375 = vrot.slane %v358, %v374
      %v376 = vlaneseq
      %v377 = vshrl.u32 %v376, 7
      %v378 = vsub.s32 4, %v377
      %v379 = vrot.slane %v358, %v378
      %v380 = vlaneseq
      %v381 = vshrl.u32 %v380, 7
      %v382 = vsub.s32 5, %v381
      %v383 = vrot.slane %v358, %v382
      %v384 = vlaneseq
      %v385 = vshrl.u32 %v384, 7
      %v386 = vsub.s32 6, %v385
      %v387 = vrot.slane %v358, %v386
      %v388 = vlaneseq
      %v389 = vshrl.u32 %v388, 7
      %v390 = vsub.s32 7, %v389
      %v391 = vrot.slane %v358, %v390
      %v400 = vadd.f32 %v342, %v363
      %v401 = vadd.f32 %v343, %v367
      %v402 = vadd.f32 %v344, %v371
      %v403 = vadd.f32 %v345, %v375
      %v404 = vadd.f32 %v346, %v379
      %v405 = vadd.f32 %v347, %v383
      %v406 = vadd.f32 %v348, %v387
      %v407 = vadd.f32 %v349, %v391
      %v408 = vadd.f32 %v350, %v363
      %v409 = vadd.f32 %v351, %v367
      %v410 = vadd.f32 %v352, %v371
      %v411 = vadd.f32 %v353, %v375
      %v412 = vadd.f32 %v354, %v379
      %v413 = vadd.f32 %v355, %v383
      %v414 = vadd.f32 %v356, %v387
      %v415 = vadd.f32 %v357, %v391
      %vm416 = vcmp.ge.f32.partialorder %v400, 0.0
      %vm417 = vcmp.ge.f32.partialorder %v401, 0.0
      %vm418 = vcmp.ge.f32.partialorder %v402, 0.0
      %vm419 = vcmp.ge.f32.partialorder %v403, 0.0
      %vm420 = vcmp.ge.f32.partialorder %v404, 0.0
      %vm421 = vcmp.ge.f32.partialorder %v405, 0.0
      %vm422 = vcmp.ge.f32.partialorder %v406, 0.0
      %vm423 = vcmp.ge.f32.partialorder %v407, 0.0
      %vm424 = vcmp.ge.f32.partialorder %v408, 0.0
      %vm425 = vcmp.ge.f32.partialorder %v409, 0.0
      %vm426 = vcmp.ge.f32.partialorder %v410, 0.0
      %vm427 = vcmp.ge.f32.partialorder %v411, 0.0
      %vm428 = vcmp.ge.f32.partialorder %v412, 0.0
      %vm429 = vcmp.ge.f32.partialorder %v413, 0.0
      %vm430 = vcmp.ge.f32.partialorder %v414, 0.0
      %vm431 = vcmp.ge.f32.partialorder %v415, 0.0
      %v432 = vmul.f32 %v400, 0.2
      %v433 = vmul.f32 %v401, 0.2
      %v434 = vmul.f32 %v402, 0.2
      %v435 = vmul.f32 %v403, 0.2
      %v436 = vmul.f32 %v404, 0.2
      %v437 = vmul.f32 %v405, 0.2
      %v438 = vmul.f32 %v406, 0.2
      %v439 = vmul.f32 %v407, 0.2
      %v440 = vmul.f32 %v408, 0.2
      %v441 = vmul.f32 %v409, 0.2
      %v442 = vmul.f32 %v410, 0.2
      %v443 = vmul.f32 %v411, 0.2
      %v444 = vmul.f32 %v412, 0.2
      %v445 = vmul.f32 %v413, 0.2
      %v446 = vmul.f32 %v414, 0.2
      %v447 = vmul.f32 %v415, 0.2
      %v448 = vsel %vm416, %v400, %v432
      %v449 = vsel %vm417, %v401, %v433
      %v450 = vsel %vm418, %v402, %v434
      %v451 = vsel %vm419, %v403, %v435
      %v452 = vsel %vm420, %v404, %v436
      %v453 = vsel %vm421, %v405, %v437
      %v454 = vsel %vm422, %v406, %v438
      %v455 = vsel %vm423, %v407, %v439
      %v456 = vsel %vm424, %v408, %v440
      %v457 = vsel %vm425, %v409, %v441
      %v458 = vsel %vm426, %v410, %v442
      %v459 = vsel %vm427, %v411, %v443
      %v460 = vsel %vm428, %v412, %v444
      %v461 = vsel %vm429, %v413, %v445
      %v462 = vsel %vm430, %v414, %v446
      %v463 = vsel %vm431, %v415, %v447
      %v464 = vpack.c.bf16 %v456, %v448
      %v465 = vpack.c.bf16 %v457, %v449
      %v466 = vpack.c.bf16 %v458, %v450
      %v467 = vpack.c.bf16 %v459, %v451
      %v468 = vpack.c.bf16 %v460, %v452
      %v469 = vpack.c.bf16 %v461, %v453
      %v470 = vpack.c.bf16 %v462, %v454
      %v471 = vpack.c.bf16 %v463, %v455
      %v472 = vld [vmem:[%s1] sm:$0xf]
      %v473 = vld [vmem:[%s1 + $0x4] sm:$0xf]
      %v474 = vld [vmem:[%s1 + $0x8] sm:$0xf]
      %v475 = vld [vmem:[%s1 + $0xc] sm:$0xf]
      %v476 = vld [vmem:[%s1 + $0x10] sm:$0xf]
      %v477 = vld [vmem:[%s1 + $0x14] sm:$0xf]
      %v478 = vld [vmem:[%s1 + $0x18] sm:$0xf]
      %v479 = vld [vmem:[%s1 + $0x1c] sm:$0xf]
      %v480 = vld [vmem:[%s1 + $0x20] sm:$0xf]
      %v481 = vld [vmem:[%s1 + $0x24] sm:$0xf]
      %v482 = vld [vmem:[%s1 + $0x28] sm:$0xf]
      %v483 = vld [vmem:[%s1 + $0x2c] sm:$0xf]
      %v484 = vld [vmem:[%s1 + $0x30] sm:$0xf]
      %v485 = vld [vmem:[%s1 + $0x34] sm:$0xf]
      %v486 = vld [vmem:[%s1 + $0x38] sm:$0xf]
      %v487 = vld [vmem:[%s1 + $0x3c] sm:$0xf]
      %v488 = vld [vmem:[%s1 + $0x40] sm:$0xf]
      %v489 = vld [vmem:[%s1 + $0x44] sm:$0xf]
      %v490 = vld [vmem:[%s1 + $0x48] sm:$0xf]
      %v491 = vld [vmem:[%s1 + $0x4c] sm:$0xf]
      %v492 = vld [vmem:[%s1 + $0x50] sm:$0xf]
      %v493 = vld [vmem:[%s1 + $0x54] sm:$0xf]
      %v494 = vld [vmem:[%s1 + $0x58] sm:$0xf]
      %v495 = vld [vmem:[%s1 + $0x5c] sm:$0xf]
      %v496 = vld [vmem:[%s1 + $0x60] sm:$0xf]
      %v497 = vld [vmem:[%s1 + $0x64] sm:$0xf]
      %v498 = vld [vmem:[%s1 + $0x68] sm:$0xf]
      %v499 = vld [vmem:[%s1 + $0x6c] sm:$0xf]
      %v500 = vld [vmem:[%s1 + $0x70] sm:$0xf]
      %v501 = vld [vmem:[%s1 + $0x74] sm:$0xf]
      %v502 = vld [vmem:[%s1 + $0x78] sm:$0xf]
      %v503 = vld [vmem:[%s1 + $0x7c] sm:$0xf]
      %v504 = vld [vmem:[%s1 + $0x80] sm:$0xf]
      %v505 = vld [vmem:[%s1 + $0x84] sm:$0xf]
      %v506 = vld [vmem:[%s1 + $0x88] sm:$0xf]
      %v507 = vld [vmem:[%s1 + $0x8c] sm:$0xf]
      %v508 = vld [vmem:[%s1 + $0x90] sm:$0xf]
      %v509 = vld [vmem:[%s1 + $0x94] sm:$0xf]
      %v510 = vld [vmem:[%s1 + $0x98] sm:$0xf]
      %v511 = vld [vmem:[%s1 + $0x9c] sm:$0xf]
      %v512 = vld [vmem:[%s1 + $0xa0] sm:$0xf]
      %v513 = vld [vmem:[%s1 + $0xa4] sm:$0xf]
      %v514 = vld [vmem:[%s1 + $0xa8] sm:$0xf]
      %v515 = vld [vmem:[%s1 + $0xac] sm:$0xf]
      %v516 = vld [vmem:[%s1 + $0xb0] sm:$0xf]
      %v517 = vld [vmem:[%s1 + $0xb4] sm:$0xf]
      %v518 = vld [vmem:[%s1 + $0xb8] sm:$0xf]
      %v519 = vld [vmem:[%s1 + $0xbc] sm:$0xf]
      %v520 = vld [vmem:[%s1 + $0xc0] sm:$0xf]
      %v521 = vld [vmem:[%s1 + $0xc4] sm:$0xf]
      %v522 = vld [vmem:[%s1 + $0xc8] sm:$0xf]
      %v523 = vld [vmem:[%s1 + $0xcc] sm:$0xf]
      %v524 = vld [vmem:[%s1 + $0xd0] sm:$0xf]
      %v525 = vld [vmem:[%s1 + $0xd4] sm:$0xf]
      %v526 = vld [vmem:[%s1 + $0xd8] sm:$0xf]
      %v527 = vld [vmem:[%s1 + $0xdc] sm:$0xf]
      %v528 = vld [vmem:[%s1 + $0xe0] sm:$0xf]
      %v529 = vld [vmem:[%s1 + $0xe4] sm:$0xf]
      %v530 = vld [vmem:[%s1 + $0xe8] sm:$0xf]
      %v531 = vld [vmem:[%s1 + $0xec] sm:$0xf]
      %v532 = vld [vmem:[%s1 + $0xf0] sm:$0xf]
      %v533 = vld [vmem:[%s1 + $0xf4] sm:$0xf]
      %v534 = vld [vmem:[%s1 + $0xf8] sm:$0xf]
      %v535 = vld [vmem:[%s1 + $0xfc] sm:$0xf]
      %v536 = vld [vmem:[%s1 + $0x100] sm:$0xf]
      %v537 = vld [vmem:[%s1 + $0x104] sm:$0xf]
      %v538 = vld [vmem:[%s1 + $0x108] sm:$0xf]
      %v539 = vld [vmem:[%s1 + $0x10c] sm:$0xf]
      %v540 = vld [vmem:[%s1 + $0x110] sm:$0xf]
      %v541 = vld [vmem:[%s1 + $0x114] sm:$0xf]
      %v542 = vld [vmem:[%s1 + $0x118] sm:$0xf]
      %v543 = vld [vmem:[%s1 + $0x11c] sm:$0xf]
      %v544 = vld [vmem:[%s1 + $0x120] sm:$0xf]
      %v545 = vld [vmem:[%s1 + $0x124] sm:$0xf]
      %v546 = vld [vmem:[%s1 + $0x128] sm:$0xf]
      %v547 = vld [vmem:[%s1 + $0x12c] sm:$0xf]
      %v548 = vld [vmem:[%s1 + $0x130] sm:$0xf]
      %v549 = vld [vmem:[%s1 + $0x134] sm:$0xf]
      %v550 = vld [vmem:[%s1 + $0x138] sm:$0xf]
      %v551 = vld [vmem:[%s1 + $0x13c] sm:$0xf]
      %v552 = vld [vmem:[%s1 + $0x140] sm:$0xf]
      %v553 = vld [vmem:[%s1 + $0x144] sm:$0xf]
      %v554 = vld [vmem:[%s1 + $0x148] sm:$0xf]
      %v555 = vld [vmem:[%s1 + $0x14c] sm:$0xf]
      %v556 = vld [vmem:[%s1 + $0x150] sm:$0xf]
      %v557 = vld [vmem:[%s1 + $0x154] sm:$0xf]
      %v558 = vld [vmem:[%s1 + $0x158] sm:$0xf]
      %v559 = vld [vmem:[%s1 + $0x15c] sm:$0xf]
      %v560 = vld [vmem:[%s1 + $0x160] sm:$0xf]
      %v561 = vld [vmem:[%s1 + $0x164] sm:$0xf]
      %v562 = vld [vmem:[%s1 + $0x168] sm:$0xf]
      %v563 = vld [vmem:[%s1 + $0x16c] sm:$0xf]
      %v564 = vld [vmem:[%s1 + $0x170] sm:$0xf]
      %v565 = vld [vmem:[%s1 + $0x174] sm:$0xf]
      %v566 = vld [vmem:[%s1 + $0x178] sm:$0xf]
      %v567 = vld [vmem:[%s1 + $0x17c] sm:$0xf]
      %v568 = vld [vmem:[%s1 + $0x180] sm:$0xf]
      %v569 = vld [vmem:[%s1 + $0x184] sm:$0xf]
      %v570 = vld [vmem:[%s1 + $0x188] sm:$0xf]
      %v571 = vld [vmem:[%s1 + $0x18c] sm:$0xf]
      %v572 = vld [vmem:[%s1 + $0x190] sm:$0xf]
      %v573 = vld [vmem:[%s1 + $0x194] sm:$0xf]
      %v574 = vld [vmem:[%s1 + $0x198] sm:$0xf]
      %v575 = vld [vmem:[%s1 + $0x19c] sm:$0xf]
      %v576 = vld [vmem:[%s1 + $0x1a0] sm:$0xf]
      %v577 = vld [vmem:[%s1 + $0x1a4] sm:$0xf]
      %v578 = vld [vmem:[%s1 + $0x1a8] sm:$0xf]
      %v579 = vld [vmem:[%s1 + $0x1ac] sm:$0xf]
      %v580 = vld [vmem:[%s1 + $0x1b0] sm:$0xf]
      %v581 = vld [vmem:[%s1 + $0x1b4] sm:$0xf]
      %v582 = vld [vmem:[%s1 + $0x1b8] sm:$0xf]
      %v583 = vld [vmem:[%s1 + $0x1bc] sm:$0xf]
      %v584 = vld [vmem:[%s1 + $0x1c0] sm:$0xf]
      %v585 = vld [vmem:[%s1 + $0x1c4] sm:$0xf]
      %v586 = vld [vmem:[%s1 + $0x1c8] sm:$0xf]
      %v587 = vld [vmem:[%s1 + $0x1cc] sm:$0xf]
      %v588 = vld [vmem:[%s1 + $0x1d0] sm:$0xf]
      %v589 = vld [vmem:[%s1 + $0x1d4] sm:$0xf]
      %v590 = vld [vmem:[%s1 + $0x1d8] sm:$0xf]
      %v591 = vld [vmem:[%s1 + $0x1dc] sm:$0xf]
      %v592 = vld [vmem:[%s1 + $0x1e0] sm:$0xf]
      %v593 = vld [vmem:[%s1 + $0x1e4] sm:$0xf]
      %v594 = vld [vmem:[%s1 + $0x1e8] sm:$0xf]
      %v595 = vld [vmem:[%s1 + $0x1ec] sm:$0xf]
      %v596 = vld [vmem:[%s1 + $0x1f0] sm:$0xf]
      %v597 = vld [vmem:[%s1 + $0x1f4] sm:$0xf]
      %v598 = vld [vmem:[%s1 + $0x1f8] sm:$0xf]
      %v599 = vld [vmem:[%s1 + $0x1fc] sm:$0xf]
      %v728 = vunpack.c.l.b16 %v472
      %v729 = vunpack.c.l.b16 %v473
      %v730 = vunpack.c.l.b16 %v474
      %v731 = vunpack.c.l.b16 %v475
      %v732 = vunpack.c.l.b16 %v476
      %v733 = vunpack.c.l.b16 %v477
      %v734 = vunpack.c.l.b16 %v478
      %v735 = vunpack.c.l.b16 %v479
      %v736 = vunpack.c.l.b16 %v480
      %v737 = vunpack.c.l.b16 %v481
      %v738 = vunpack.c.l.b16 %v482
      %v739 = vunpack.c.l.b16 %v483
      %v740 = vunpack.c.l.b16 %v484
      %v741 = vunpack.c.l.b16 %v485
      %v742 = vunpack.c.l.b16 %v486
      %v743 = vunpack.c.l.b16 %v487
      %v744 = vunpack.c.l.b16 %v488
      %v745 = vunpack.c.l.b16 %v489
      %v746 = vunpack.c.l.b16 %v490
      %v747 = vunpack.c.l.b16 %v491
      %v748 = vunpack.c.l.b16 %v492
      %v749 = vunpack.c.l.b16 %v493
      %v750 = vunpack.c.l.b16 %v494
      %v751 = vunpack.c.l.b16 %v495
      %v752 = vunpack.c.l.b16 %v496
      %v753 = vunpack.c.l.b16 %v497
      %v754 = vunpack.c.l.b16 %v498
      %v755 = vunpack.c.l.b16 %v499
      %v756 = vunpack.c.l.b16 %v500
      %v757 = vunpack.c.l.b16 %v501
      %v758 = vunpack.c.l.b16 %v502
      %v759 = vunpack.c.l.b16 %v503
      %v760 = vunpack.c.l.b16 %v504
      %v761 = vunpack.c.l.b16 %v505
      %v762 = vunpack.c.l.b16 %v506
      %v763 = vunpack.c.l.b16 %v507
      %v764 = vunpack.c.l.b16 %v508
      %v765 = vunpack.c.l.b16 %v509
      %v766 = vunpack.c.l.b16 %v510
      %v767 = vunpack.c.l.b16 %v511
      %v768 = vunpack.c.l.b16 %v512
      %v769 = vunpack.c.l.b16 %v513
      %v770 = vunpack.c.l.b16 %v514
      %v771 = vunpack.c.l.b16 %v515
      %v772 = vunpack.c.l.b16 %v516
      %v773 = vunpack.c.l.b16 %v517
      %v774 = vunpack.c.l.b16 %v518
      %v775 = vunpack.c.l.b16 %v519
      %v776 = vunpack.c.l.b16 %v520
      %v777 = vunpack.c.l.b16 %v521
      %v778 = vunpack.c.l.b16 %v522
      %v779 = vunpack.c.l.b16 %v523
      %v780 = vunpack.c.l.b16 %v524
      %v781 = vunpack.c.l.b16 %v525
      %v782 = vunpack.c.l.b16 %v526
      %v783 = vunpack.c.l.b16 %v527
      %v784 = vunpack.c.l.b16 %v528
      %v785 = vunpack.c.l.b16 %v529
      %v786 = vunpack.c.l.b16 %v530
      %v787 = vunpack.c.l.b16 %v531
      %v788 = vunpack.c.l.b16 %v532
      %v789 = vunpack.c.l.b16 %v533
      %v790 = vunpack.c.l.b16 %v534
      %v791 = vunpack.c.l.b16 %v535
      %v792 = vunpack.c.l.b16 %v536
      %v793 = vunpack.c.l.b16 %v537
      %v794 = vunpack.c.l.b16 %v538
      %v795 = vunpack.c.l.b16 %v539
      %v796 = vunpack.c.l.b16 %v540
      %v797 = vunpack.c.l.b16 %v541
      %v798 = vunpack.c.l.b16 %v542
      %v799 = vunpack.c.l.b16 %v543
      %v800 = vunpack.c.l.b16 %v544
      %v801 = vunpack.c.l.b16 %v545
      %v802 = vunpack.c.l.b16 %v546
      %v803 = vunpack.c.l.b16 %v547
      %v804 = vunpack.c.l.b16 %v548
      %v805 = vunpack.c.l.b16 %v549
      %v806 = vunpack.c.l.b16 %v550
      %v807 = vunpack.c.l.b16 %v551
      %v808 = vunpack.c.l.b16 %v552
      %v809 = vunpack.c.l.b16 %v553
      %v810 = vunpack.c.l.b16 %v554
      %v811 = vunpack.c.l.b16 %v555
      %v812 = vunpack.c.l.b16 %v556
      %v813 = vunpack.c.l.b16 %v557
      %v814 = vunpack.c.l.b16 %v558
      %v815 = vunpack.c.l.b16 %v559
      %v816 = vunpack.c.l.b16 %v560
      %v817 = vunpack.c.l.b16 %v561
      %v818 = vunpack.c.l.b16 %v562
      %v819 = vunpack.c.l.b16 %v563
      %v820 = vunpack.c.l.b16 %v564
      %v821 = vunpack.c.l.b16 %v565
      %v822 = vunpack.c.l.b16 %v566
      %v823 = vunpack.c.l.b16 %v567
      %v824 = vunpack.c.l.b16 %v568
      %v825 = vunpack.c.l.b16 %v569
      %v826 = vunpack.c.l.b16 %v570
      %v827 = vunpack.c.l.b16 %v571
      %v828 = vunpack.c.l.b16 %v572
      %v829 = vunpack.c.l.b16 %v573
      %v830 = vunpack.c.l.b16 %v574
      %v831 = vunpack.c.l.b16 %v575
      %v832 = vunpack.c.l.b16 %v576
      %v833 = vunpack.c.l.b16 %v577
      %v834 = vunpack.c.l.b16 %v578
      %v835 = vunpack.c.l.b16 %v579
      %v836 = vunpack.c.l.b16 %v580
      %v837 = vunpack.c.l.b16 %v581
      %v838 = vunpack.c.l.b16 %v582
      %v839 = vunpack.c.l.b16 %v583
      %v840 = vunpack.c.l.b16 %v584
      %v841 = vunpack.c.l.b16 %v585
      %v842 = vunpack.c.l.b16 %v586
      %v843 = vunpack.c.l.b16 %v587
      %v844 = vunpack.c.l.b16 %v588
      %v845 = vunpack.c.l.b16 %v589
      %v846 = vunpack.c.l.b16 %v590
      %v847 = vunpack.c.l.b16 %v591
      %v848 = vunpack.c.l.b16 %v592
      %v849 = vunpack.c.l.b16 %v593
      %v850 = vunpack.c.l.b16 %v594
      %v851 = vunpack.c.l.b16 %v595
      %v852 = vunpack.c.l.b16 %v596
      %v853 = vunpack.c.l.b16 %v597
      %v854 = vunpack.c.l.b16 %v598
      %v855 = vunpack.c.l.b16 %v599
      %v856 = vpack.c.b16 %v729, %v728
      %v857 = vpack.c.b16 %v731, %v730
      %v858 = vpack.c.b16 %v733, %v732
      %v859 = vpack.c.b16 %v735, %v734
      %v860 = vpack.c.b16 %v737, %v736
      %v861 = vpack.c.b16 %v739, %v738
      %v862 = vpack.c.b16 %v741, %v740
      %v863 = vpack.c.b16 %v743, %v742
      %v864 = vpack.c.b16 %v745, %v744
      %v865 = vpack.c.b16 %v747, %v746
      %v866 = vpack.c.b16 %v749, %v748
      %v867 = vpack.c.b16 %v751, %v750
      %v868 = vpack.c.b16 %v753, %v752
      %v869 = vpack.c.b16 %v755, %v754
      %v870 = vpack.c.b16 %v757, %v756
      %v871 = vpack.c.b16 %v759, %v758
      %v872 = vpack.c.b16 %v761, %v760
      %v873 = vpack.c.b16 %v763, %v762
      %v874 = vpack.c.b16 %v765, %v764
      %v875 = vpack.c.b16 %v767, %v766
      %v876 = vpack.c.b16 %v769, %v768
      %v877 = vpack.c.b16 %v771, %v770
      %v878 = vpack.c.b16 %v773, %v772
      %v879 = vpack.c.b16 %v775, %v774
      %v880 = vpack.c.b16 %v777, %v776
      %v881 = vpack.c.b16 %v779, %v778
      %v882 = vpack.c.b16 %v781, %v780
      %v883 = vpack.c.b16 %v783, %v782
      %v884 = vpack.c.b16 %v785, %v784
      %v885 = vpack.c.b16 %v787, %v786
      %v886 = vpack.c.b16 %v789, %v788
      %v887 = vpack.c.b16 %v791, %v790
      %v888 = vpack.c.b16 %v793, %v792
      %v889 = vpack.c.b16 %v795, %v794
      %v890 = vpack.c.b16 %v797, %v796
      %v891 = vpack.c.b16 %v799, %v798
      %v892 = vpack.c.b16 %v801, %v800
      %v893 = vpack.c.b16 %v803, %v802
      %v894 = vpack.c.b16 %v805, %v804
      %v895 = vpack.c.b16 %v807, %v806
      %v896 = vpack.c.b16 %v809, %v808
      %v897 = vpack.c.b16 %v811, %v810
      %v898 = vpack.c.b16 %v813, %v812
      %v899 = vpack.c.b16 %v815, %v814
      %v900 = vpack.c.b16 %v817, %v816
      %v901 = vpack.c.b16 %v819, %v818
      %v902 = vpack.c.b16 %v821, %v820
      %v903 = vpack.c.b16 %v823, %v822
      %v904 = vpack.c.b16 %v825, %v824
      %v905 = vpack.c.b16 %v827, %v826
      %v906 = vpack.c.b16 %v829, %v828
      %v907 = vpack.c.b16 %v831, %v830
      %v908 = vpack.c.b16 %v833, %v832
      %v909 = vpack.c.b16 %v835, %v834
      %v910 = vpack.c.b16 %v837, %v836
      %v911 = vpack.c.b16 %v839, %v838
      %v912 = vpack.c.b16 %v841, %v840
      %v913 = vpack.c.b16 %v843, %v842
      %v914 = vpack.c.b16 %v845, %v844
      %v915 = vpack.c.b16 %v847, %v846
      %v916 = vpack.c.b16 %v849, %v848
      %v917 = vpack.c.b16 %v851, %v850
      %v918 = vpack.c.b16 %v853, %v852
      %v919 = vpack.c.b16 %v855, %v854
      %984 = vmatprep.subr.bf16.mxu0 0
      %985 = vmatpush1.bf16.msra.mxu0 %v856
      %986 = vmatprep.subr.bf16.mxu0 0
      %987 = vmatpush1.bf16.msra.mxu0 %v857
      %988 = vmatprep.subr.bf16.mxu0 0
      %989 = vmatpush1.bf16.msra.mxu0 %v858
      %990 = vmatprep.subr.bf16.mxu0 0
      %991 = vmatpush1.bf16.msra.mxu0 %v859
      %992 = vmatprep.subr.bf16.mxu0 0
      %993 = vmatpush1.bf16.msra.mxu0 %v860
      %994 = vmatprep.subr.bf16.mxu0 0
      %995 = vmatpush1.bf16.msra.mxu0 %v861
      %996 = vmatprep.subr.bf16.mxu0 0
      %997 = vmatpush1.bf16.msra.mxu0 %v862
      %998 = vmatprep.subr.bf16.mxu0 0
      %999 = vmatpush1.bf16.msra.mxu0 %v863
      %1000 = vmatprep.subr.bf16.mxu0 0
      %1001 = vmatpush1.bf16.msra.mxu0 %v864
      %1002 = vmatprep.subr.bf16.mxu0 0
      %1003 = vmatpush1.bf16.msra.mxu0 %v865
      %1004 = vmatprep.subr.bf16.mxu0 0
      %1005 = vmatpush1.bf16.msra.mxu0 %v866
      %1006 = vmatprep.subr.bf16.mxu0 0
      %1007 = vmatpush1.bf16.msra.mxu0 %v867
      %1008 = vmatprep.subr.bf16.mxu0 0
      %1009 = vmatpush1.bf16.msra.mxu0 %v868
      %1010 = vmatprep.subr.bf16.mxu0 0
      %1011 = vmatpush1.bf16.msra.mxu0 %v869
      %1012 = vmatprep.subr.bf16.mxu0 0
      %1013 = vmatpush1.bf16.msra.mxu0 %v870
      %1014 = vmatprep.subr.bf16.mxu0 0
      %1015 = vmatpush1.bf16.msra.mxu0 %v871
      %1016 = vmatprep.mubr.bf16.mxu0 %v465
      %1017 = vmatmul.mubr.bf16.gmra.mrb[0].mxu0 %v464
      %v1018 = vpop.f32.mrb[0].mxu0
      %v1019 = vadd.f32 0.0, %v1018
      %v1020 = vpop.f32.mrb[0].mxu0
      %v1021 = vpop.f32.mrb[0].mxu0
      %v1022 = vadd.f32 0.0, %v1021
      %v1023 = vpop.f32.mrb[0].mxu0
      %1024 = vdwg.mxu0
      %1025 = vmatprep.subr.bf16.mxu0 0
      %1026 = vmatpush1.bf16.msra.mxu0 %v872
      %1027 = vmatprep.subr.bf16.mxu0 0
      %1028 = vmatpush1.bf16.msra.mxu0 %v873
      %1029 = vmatprep.subr.bf16.mxu0 0
      %1030 = vmatpush1.bf16.msra.mxu0 %v874
      %1031 = vmatprep.subr.bf16.mxu0 0
      %1032 = vmatpush1.bf16.msra.mxu0 %v875
      %1033 = vmatprep.subr.bf16.mxu0 0
      %1034 = vmatpush1.bf16.msra.mxu0 %v876
      %1035 = vmatprep.subr.bf16.mxu0 0
      %1036 = vmatpush1.bf16.msra.mxu0 %v877
      %1037 = vmatprep.subr.bf16.mxu0 0
      %1038 = vmatpush1.bf16.msra.mxu0 %v878
      %1039 = vmatprep.subr.bf16.mxu0 0
      %1040 = vmatpush1.bf16.msra.mxu0 %v879
      %1041 = vmatprep.subr.bf16.mxu0 0
      %1042 = vmatpush1.bf16.msra.mxu0 %v880
      %1043 = vmatprep.subr.bf16.mxu0 0
      %1044 = vmatpush1.bf16.msra.mxu0 %v881
      %1045 = vmatprep.subr.bf16.mxu0 0
      %1046 = vmatpush1.bf16.msra.mxu0 %v882
      %1047 = vmatprep.subr.bf16.mxu0 0
      %1048 = vmatpush1.bf16.msra.mxu0 %v883
      %1049 = vmatprep.subr.bf16.mxu0 0
      %1050 = vmatpush1.bf16.msra.mxu0 %v884
      %1051 = vmatprep.subr.bf16.mxu0 0
      %1052 = vmatpush1.bf16.msra.mxu0 %v885
      %1053 = vmatprep.subr.bf16.mxu0 0
      %1054 = vmatpush1.bf16.msra.mxu0 %v886
      %1055 = vmatprep.subr.bf16.mxu0 0
      %1056 = vmatpush1.bf16.msra.mxu0 %v887
      %1057 = vmatprep.mubr.bf16.mxu0 %v467
      %1058 = vmatmul.mubr.bf16.gmra.mrb[0].mxu0 %v466
      %v1059 = vpop.f32.mrb[0].mxu0
      %v1060 = vadd.f32 %v1019, %v1059
      %v1061 = vpop.f32.mrb[0].mxu0
      %v1062 = vpop.f32.mrb[0].mxu0
      %v1063 = vadd.f32 %v1022, %v1062
      %v1064 = vpop.f32.mrb[0].mxu0
      %1065 = vdwg.mxu0
      %1066 = vmatprep.subr.bf16.mxu0 0
      %1067 = vmatpush1.bf16.msra.mxu0 %v888
      %1068 = vmatprep.subr.bf16.mxu0 0
      %1069 = vmatpush1.bf16.msra.mxu0 %v889
      %1070 = vmatprep.subr.bf16.mxu0 0
      %1071 = vmatpush1.bf16.msra.mxu0 %v890
      %1072 = vmatprep.subr.bf16.mxu0 0
      %1073 = vmatpush1.bf16.msra.mxu0 %v891
      %1074 = vmatprep.subr.bf16.mxu0 0
      %1075 = vmatpush1.bf16.msra.mxu0 %v892
      %1076 = vmatprep.subr.bf16.mxu0 0
      %1077 = vmatpush1.bf16.msra.mxu0 %v893
      %1078 = vmatprep.subr.bf16.mxu0 0
      %1079 = vmatpush1.bf16.msra.mxu0 %v894
      %1080 = vmatprep.subr.bf16.mxu0 0
      %1081 = vmatpush1.bf16.msra.mxu0 %v895
      %1082 = vmatprep.subr.bf16.mxu0 0
      %1083 = vmatpush1.bf16.msra.mxu0 %v896
      %1084 = vmatprep.subr.bf16.mxu0 0
      %1085 = vmatpush1.bf16.msra.mxu0 %v897
      %1086 = vmatprep.subr.bf16.mxu0 0
      %1087 = vmatpush1.bf16.msra.mxu0 %v898
      %1088 = vmatprep.subr.bf16.mxu0 0
      %1089 = vmatpush1.bf16.msra.mxu0 %v899
      %1090 = vmatprep.subr.bf16.mxu0 0
      %1091 = vmatpush1.bf16.msra.mxu0 %v900
      %1092 = vmatprep.subr.bf16.mxu0 0
      %1093 = vmatpush1.bf16.msra.mxu0 %v901
      %1094 = vmatprep.subr.bf16.mxu0 0
      %1095 = vmatpush1.bf16.msra.mxu0 %v902
      %1096 = vmatprep.subr.bf16.mxu0 0
      %1097 = vmatpush1.bf16.msra.mxu0 %v903
      %1098 = vmatprep.mubr.bf16.mxu0 %v469
      %1099 = vmatmul.mubr.bf16.gmra.mrb[0].mxu0 %v468
      %v1100 = vpop.f32.mrb[0].mxu0
      %v1101 = vadd.f32 %v1060, %v1100
      %v1102 = vpop.f32.mrb[0].mxu0
      %v1103 = vpop.f32.mrb[0].mxu0
      %v1104 = vadd.f32 %v1063, %v1103
      %v1105 = vpop.f32.mrb[0].mxu0
      %1106 = vdwg.mxu0
      %1107 = vmatprep.subr.bf16.mxu0 0
      %1108 = vmatpush1.bf16.msra.mxu0 %v904
      %1109 = vmatprep.subr.bf16.mxu0 0
      %1110 = vmatpush1.bf16.msra.mxu0 %v905
      %1111 = vmatprep.subr.bf16.mxu0 0
      %1112 = vmatpush1.bf16.msra.mxu0 %v906
      %1113 = vmatprep.subr.bf16.mxu0 0
      %1114 = vmatpush1.bf16.msra.mxu0 %v907
      %1115 = vmatprep.subr.bf16.mxu0 0
      %1116 = vmatpush1.bf16.msra.mxu0 %v908
      %1117 = vmatprep.subr.bf16.mxu0 0
      %1118 = vmatpush1.bf16.msra.mxu0 %v909
      %1119 = vmatprep.subr.bf16.mxu0 0
      %1120 = vmatpush1.bf16.msra.mxu0 %v910
      %1121 = vmatprep.subr.bf16.mxu0 0
      %1122 = vmatpush1.bf16.msra.mxu0 %v911
      %1123 = vmatprep.subr.bf16.mxu0 0
      %1124 = vmatpush1.bf16.msra.mxu0 %v912
      %1125 = vmatprep.subr.bf16.mxu0 0
      %1126 = vmatpush1.bf16.msra.mxu0 %v913
      %1127 = vmatprep.subr.bf16.mxu0 0
      %1128 = vmatpush1.bf16.msra.mxu0 %v914
      %1129 = vmatprep.subr.bf16.mxu0 0
      %1130 = vmatpush1.bf16.msra.mxu0 %v915
      %1131 = vmatprep.subr.bf16.mxu0 0
      %1132 = vmatpush1.bf16.msra.mxu0 %v916
      %1133 = vmatprep.subr.bf16.mxu0 0
      %1134 = vmatpush1.bf16.msra.mxu0 %v917
      %1135 = vmatprep.subr.bf16.mxu0 0
      %1136 = vmatpush1.bf16.msra.mxu0 %v918
      %1137 = vmatprep.subr.bf16.mxu0 0
      %1138 = vmatpush1.bf16.msra.mxu0 %v919
      %1139 = vmatprep.mubr.bf16.mxu0 %v471
      %1140 = vmatmul.mubr.bf16.gmra.mrb[0].mxu0 %v470
      %v1141 = vpop.f32.mrb[0].mxu0
      %v1142 = vadd.f32 %v1101, %v1141
      %v1143 = vpop.f32.mrb[0].mxu0
      %v1144 = vpop.f32.mrb[0].mxu0
      %v1145 = vadd.f32 %v1104, %v1144
      %v1146 = vpop.f32.mrb[0].mxu0
      %1147 = vdwg.mxu0
      %v1148 = vadd.f32 %v1142, %v1145
      %v1149 = vrot.slane %v1148, 4
      %v1150 = vadd.f32 %v1148, %v1149
      %v1151 = vrot.slane %v1150, 2
      %v1152 = vadd.f32 %v1150, %v1151
      %v1153 = vrot.slane %v1152, 1
      %v1154 = vadd.f32 %v1152, %v1153
      %1155 = vst [vmem:[%s271] sm:$0x1] %v1154
      %v1156 = vmul.f32 %v1142, %v1142
      %v1157 = vmul.f32 %v1145, %v1145
      %v1158 = vadd.f32 %v1156, %v1157
      %v1159 = vrot.slane %v1158, 4
      %v1160 = vadd.f32 %v1158, %v1159
      %v1161 = vrot.slane %v1160, 2
      %v1162 = vadd.f32 %v1160, %v1161
      %v1163 = vrot.slane %v1162, 1
      %v1164 = vadd.f32 %v1162, %v1163
      %1165 = vst [vmem:[%s274] sm:$0x1] %v1164
      %v1166 = vpack.c.bf16 %v1145, %v1142
      %v1168 = vunpack.c.l.b16 %v1166
      %v1169 = vunpack.c.h.b16 %v1166
      %v1170 = vpack.c.b16 %v1168, %v1168
      %v1171 = vpack.c.b16 %v1169, %v1169
      %1174 = vst [vmem:[%s267] sm:$0xf] %v1170
      %1175 = vst [vmem:[%s267 + $0x4] sm:$0xf] %v1171
      %s1176 = smul.u32 2, %s18
      %p1177 = scmp.lt.s32.totalorder %s1176, 3
      %s1178 = scalar_select %p1177, %s1176, 3
      %s1179 = smul.addr %s1178, 4
      %s1180 = scalar_lea.vmem %s4, %s1179
      %p1181 = scmp.lt.s32.totalorder %s18, 1
      %s1182 = scalar_select %p1181, %s18, 1
      %s1183 = scalar_lea.vmem %s5, %s1182
      %p1184 = scmp.lt.s32.totalorder %s18, 1
      %s1185 = scalar_select %p1184, %s18, 1
      %s1186 = scalar_lea.vmem %s6, %s1185
      // Predicated region
      $region37: #{discriminator_forward.7} parent=35 // pred_check
        %p1187 = pneg %p125
      $region38: #{discriminator_forward.7} parent=35 // pred_check_branch
        %1189 = sbr.rel (%p1187) target = $region40
      $region39: #{discriminator_forward.7} parent=35 // pred_region
        %s1190 = smul.u32 2, %s18
      $region40: #{discriminator_forward.7} parent=35 // pred_fallthru
        _
      // Predicated region
      $region41: #{discriminator_forward.7} parent=35 // pred_check
        %p1191 = pneg %p151
      $region42: #{discriminator_forward.7} parent=35 // pred_check_branch
        %1193 = sbr.rel (%p1191) target = $region44
      $region43: #{discriminator_forward.7} parent=35 // pred_region
        _
      $region44: #{discriminator_forward.7} parent=35 // pred_fallthru
        _
      // Predicated region
      $region45: #{discriminator_forward.7} parent=35 // pred_check
        %p1194 = pneg %p177
      $region46: #{discriminator_forward.7} parent=35 // pred_check_branch
        %1196 = sbr.rel (%p1194) target = $region48
      $region47: #{discriminator_forward.7} parent=35 // pred_region
        _
      $region48: #{discriminator_forward.7} parent=35 // pred_fallthru
        _
    $region36: #{discriminator_forward.7} parent=5 // pred_fallthru
      _
    %p1197 = scmp.le.s32.totalorder 2, %s13
    // Predicated region
    $region49: #{discriminator_forward.7} parent=5 // pred_check
      %p1198 = pneg %p1197
    $region50: #{discriminator_forward.7} parent=5 // pred_check_branch
      %1200 = sbr.rel (%p1198) target = $region52
    $region51: #{discriminator_forward.7} parent=5 // pred_region
      %s1201 = ssub.s32 %s13, 2
      // Predicated region
      $region53: #{discriminator_forward.7} parent=51 // pred_check
        %p1202 = pneg %p131
      $region54: #{discriminator_forward.7} parent=51 // pred_check_branch
        %1204 = sbr.rel (%p1202) target = $region56
      $region55: #{discriminator_forward.7} parent=51 // pred_region
        %s1205 = smul.u32 2, %s19
        %p1206 = scmp.lt.s32.totalorder %s1205, 3
        %s1207 = scalar_select %p1206, %s1205, 3
        %s1208 = smul.addr %s1207, 4
        %s1209 = scalar_lea.vmem %s4, %s1208
      $region56: #{discriminator_forward.7} parent=51 // pred_fallthru
        _
      // Predicated region
      $region57: #{discriminator_forward.7} parent=51 // pred_check
        %p1210 = pneg %p157
      $region58: #{discriminator_forward.7} parent=51 // pred_check_branch
        %1212 = sbr.rel (%p1210) target = $region60
      $region59: #{discriminator_forward.7} parent=51 // pred_region
        %p1213 = scmp.lt.s32.totalorder %s19, 1
        %s1214 = scalar_select %p1213, %s19, 1
        %s1215 = scalar_lea.vmem %s5, %s1214
      $region60: #{discriminator_forward.7} parent=51 // pred_fallthru
        _
      // Predicated region
      $region61: #{discriminator_forward.7} parent=51 // pred_check
        %p1216 = pneg %p183
      $region62: #{discriminator_forward.7} parent=51 // pred_check_branch
        %1218 = sbr.rel (%p1216) target = $region64
      $region63: #{discriminator_forward.7} parent=51 // pred_region
        %p1219 = scmp.lt.s32.totalorder %s19, 1
        %s1220 = scalar_select %p1219, %s19, 1
        %s1221 = scalar_lea.vmem %s6, %s1220
      $region64: #{discriminator_forward.7} parent=51 // pred_fallthru
        _
    $region52: #{discriminator_forward.7} parent=5 // pred_fallthru
      _
  $region6: #{discriminator_forward.7} parent=0 // loop_footer
    %s17 = sadd.s32 1, %s13
  $region7: #{discriminator_forward.7} parent=0 // loop_footer_branch
    %12 = sbr.rel target = $region3
  $region8: #{discriminator_forward.7} parent=0 // loop_exit
    _

</llo_original>
